<compile_context>
chip_gen: v6e
topology: v6e:2x2x1
jax: 0.10.0
libtpu: 0.0.40
codegen_flags: <defaults>
</compile_context>

<pallas_src>
import jax
import jax.numpy as jnp
from jax import lax
from jax.experimental import pallas as pl
from jax.experimental.pallas import tpu as pltpu


def _round_up(x, m):
    return ((x + m - 1) // m) * m


# ----------------------------------------------------------------------------
# Pallas kernel: whole decoder forward in one invocation.
# ----------------------------------------------------------------------------
def _gru_decoder_kernel(
    emb_ref,     # (T, B, E)     time-major embeddings
    h0_ref,      # (B, Hp)       initial hidden state (zero-padded)
    wih_e_ref,   # (E, 3*Hp)     fused input->hidden weights (embedding rows)
    wih_c_ref,   # (Hp, 3*Hp)    fused input->hidden weights (context rows)
    whh_ref,     # (Hp, 3*Hp)    fused hidden->hidden weights
    bih_ref,     # (1, 3*Hp)
    bhh_ref,     # (1, 3*Hp)
    wout_ref,    # (Hp, Vp)      output projection
    bout_ref,    # (1, Vp)
    logits_ref,  # (T, B, Vp)    output: per-step logits (lane-dense)
    hout_ref,    # (B, Hp)       output: final hidden state
    ih_scr,      # (T, B, 3*Hp)  f32 VMEM scratch: hoisted ih matmul results
    h_scr,       # (B, Hp)       f32 VMEM scratch: recurrent hidden state
    hall_scr,    # (T, B, Hp)    f32 VMEM scratch: all hidden states
):
    T, B, E = emb_ref.shape
    Hp = h0_ref.shape[-1]
    Vp = wout_ref.shape[-1]

    # ---- Phase 1 (off the serial path): one batched ih matmul for all steps.
    emb_flat = emb_ref[...].reshape(T * B, E)
    ih_scr[...] = jnp.dot(
        emb_flat, wih_e_ref[...], preferred_element_type=jnp.float32
    ).reshape(T, B, 3 * Hp)

    # The encoder context is the same h0 at every step: fold its contribution
    # (and the input bias) into a single per-batch constant.
    ctx_bias = (
        jnp.dot(h0_ref[...], wih_c_ref[...], preferred_element_type=jnp.float32)
        + bih_ref[...]
    )  # (B, 3*Hp)

    h_scr[...] = h0_ref[...]

    # ---- Phase 2: the serial GRU recurrence.  Per step only one small
    # (B,Hp)@(Hp,3Hp) matmul + VPU/EUP gate math remains on the critical path.
    def step(t, carry):
        h = h_scr[...]                                            # (B, Hp)
        ih = ih_scr[t] + ctx_bias                                 # (B, 3Hp)
        hh = (jnp.dot(h, whh_ref[...], preferred_element_type=jnp.float32)
              + bhh_ref[...])                                     # (B, 3Hp)
        r = jax.nn.sigmoid(ih[:, 0 * Hp:1 * Hp] + hh[:, 0 * Hp:1 * Hp])
        z = jax.nn.sigmoid(ih[:, 1 * Hp:2 * Hp] + hh[:, 1 * Hp:2 * Hp])
        n = jnp.tanh(ih[:, 2 * Hp:3 * Hp] + r * hh[:, 2 * Hp:3 * Hp])
        h_new = (1.0 - z) * n + z * h
        h_scr[...] = h_new
        hall_scr[t] = h_new
        return carry

    lax.fori_loop(0, T, step, 0, unroll=True)

    # ---- Phase 3 (off the serial path): vocab projection as one big matmul.
    h_all = hall_scr[...].reshape(T * B, Hp)
    logits = (jnp.dot(h_all, wout_ref[...], preferred_element_type=jnp.float32)
              + bout_ref[...])
    logits_ref[...] = logits.reshape(T, B, Vp).astype(logits_ref.dtype)
    hout_ref[...] = h_scr[...].astype(hout_ref.dtype)


def gru_decoder_pallas(emb_tbe, h0_p, kp):
    """emb_tbe: (T, B, E) f32; h0_p: (B, Hp) f32 (zero-padded); kp: padded params."""
    T, B, E = emb_tbe.shape
    Hp = h0_p.shape[-1]
    Vp = kp["w_out"].shape[-1]

    grid_spec = pltpu.PrefetchScalarGridSpec(
        num_scalar_prefetch=0,
        grid=(1,),
        in_specs=[
            pl.BlockSpec((T, B, E), lambda i: (0, 0, 0)),
            pl.BlockSpec((B, Hp), lambda i: (0, 0)),
            pl.BlockSpec((E, 3 * Hp), lambda i: (0, 0)),
            pl.BlockSpec((Hp, 3 * Hp), lambda i: (0, 0)),
            pl.BlockSpec((Hp, 3 * Hp), lambda i: (0, 0)),
            pl.BlockSpec((1, 3 * Hp), lambda i: (0, 0)),
            pl.BlockSpec((1, 3 * Hp), lambda i: (0, 0)),
            pl.BlockSpec((Hp, Vp), lambda i: (0, 0)),
            pl.BlockSpec((1, Vp), lambda i: (0, 0)),
        ],
        out_specs=[
            pl.BlockSpec((T, B, Vp), lambda i: (0, 0, 0)),
            pl.BlockSpec((B, Hp), lambda i: (0, 0)),
        ],
        scratch_shapes=[
            pltpu.VMEM((T, B, 3 * Hp), jnp.float32),
            pltpu.VMEM((B, Hp), jnp.float32),
            pltpu.VMEM((T, B, Hp), jnp.float32),
        ],
    )

    logits, h_final = pl.pallas_call(
        _gru_decoder_kernel,
        out_shape=(
            jax.ShapeDtypeStruct((T, B, Vp), jnp.float32),
            jax.ShapeDtypeStruct((B, Hp), jnp.float32),
        ),
        grid_spec=grid_spec,
        compiler_params=pltpu.CompilerParams(
            dimension_semantics=("arbitrary",)),
    )(emb_tbe, h0_p, kp["w_ih_e"], kp["w_ih_c"], kp["w_hh"],
      kp["b_ih"], kp["b_hh"], kp["w_out"], kp["b_out"])
    return logits, h_final


# ----------------------------------------------------------------------------
# Decoder module (embedding lookup / transposes in plain JAX, everything else
# in the Pallas kernel).
# ----------------------------------------------------------------------------
class Decoder:
    def __init__(self, vocab_size, embed_size, hidden_size, key):
        self.vocab_size = vocab_size
        self.embed_size = embed_size
        self.hidden_size = hidden_size
        ks = jax.random.split(key, 7)
        I = embed_size + hidden_size  # GRU input = embedding ++ encoder context
        s = 0.1
        # Canonical (unpadded) parameters; gate order [r, z, n].
        self.params = {
            "embedding": s * jax.random.normal(ks[0], (vocab_size, embed_size),
                                               jnp.float32),
            "w_ih": s * jax.random.normal(ks[1], (3, I, hidden_size), jnp.float32),
            "w_hh": s * jax.random.normal(ks[2], (3, hidden_size, hidden_size),
                                          jnp.float32),
            "b_ih": s * jax.random.normal(ks[3], (3, hidden_size), jnp.float32),
            "b_hh": s * jax.random.normal(ks[4], (3, hidden_size), jnp.float32),
            "w_out": s * jax.random.normal(ks[5], (hidden_size, vocab_size),
                                           jnp.float32),
            "b_out": s * jax.random.normal(ks[6], (vocab_size,), jnp.float32),
        }
        self._build_kernel_params()

    def _build_kernel_params(self):
        """Gate-fused, lane-padded (multiples of 128) weight layout for the kernel.

        Padding is inert: padded hidden channels receive zero pre-activations,
        start at 0 and stay exactly 0; padded vocab columns are sliced off.
        """
        p = self.params
        E, H, V = self.embed_size, self.hidden_size, self.vocab_size
        Hp = _round_up(H, 128)
        Vp = _round_up(V, 128)
        self.Hp, self.Vp = Hp, Vp

        w_ih_e = jnp.zeros((E, 3 * Hp), jnp.float32)
        w_ih_c = jnp.zeros((Hp, 3 * Hp), jnp.float32)
        w_hh_f = jnp.zeros((Hp, 3 * Hp), jnp.float32)
        b_ih_f = jnp.zeros((1, 3 * Hp), jnp.float32)
        b_hh_f = jnp.zeros((1, 3 * Hp), jnp.float32)
        for k in range(3):
            col = slice(k * Hp, k * Hp + H)
            w_ih_e = w_ih_e.at[:, col].set(p["w_ih"][k, :E, :])
            w_ih_c = w_ih_c.at[:H, col].set(p["w_ih"][k, E:, :])
            w_hh_f = w_hh_f.at[:H, col].set(p["w_hh"][k])
            b_ih_f = b_ih_f.at[0, col].set(p["b_ih"][k])
            b_hh_f = b_hh_f.at[0, col].set(p["b_hh"][k])
        w_out_p = jnp.zeros((Hp, Vp), jnp.float32).at[:H, :V].set(p["w_out"])
        b_out_p = jnp.zeros((1, Vp), jnp.float32).at[0, :V].set(p["b_out"])

        self.kernel_params = {
            "w_ih_e": w_ih_e, "w_ih_c": w_ih_c, "w_hh": w_hh_f,
            "b_ih": b_ih_f, "b_hh": b_hh_f,
            "w_out": w_out_p, "b_out": b_out_p,
        }

    def init_state(self, en_outputs):
        # en_outputs = (encoder_outputs, encoder_hidden_state)
        return en_outputs[1]  # (num_layers=1, B, H)

    def forward(self, x, state):
        """x: (B, T) int32 token ids; state: (1, B, H) f32.
        Returns (logits (B, T, V), new_state (1, B, H))."""
        H, V = self.hidden_size, self.vocab_size
        emb = self.params["embedding"][x]              # (B, T, E)
        emb = jnp.transpose(emb, (1, 0, 2))            # (T, B, E) time-major
        B = emb.shape[1]
        h0 = state[-1]                                 # (B, H)
        h0_p = jnp.zeros((B, self.Hp), jnp.float32).at[:, :H].set(h0)

        logits_p, h_final_p = gru_decoder_pallas(emb, h0_p, self.kernel_params)

        logits_btv = jnp.transpose(logits_p[:, :, :V], (1, 0, 2))  # (B, T, V)
        return logits_btv, h_final_p[:, :H][None]

    __call__ = forward


# ----------------------------------------------------------------------------
# Pure-JAX reference (lax.scan, unpadded params) for correctness checking.
# ----------------------------------------------------------------------------
def reference_forward(dec, x, state):
    p = dec.params
    emb = p["embedding"][x]
    emb = jnp.transpose(emb, (1, 0, 2))
    T = emb.shape[0]
    context = jnp.broadcast_to(state[-1], (T,) + state[-1].shape)
    xs = jnp.concatenate([emb, context], axis=-1)

    def step(h, x_t):
        r = jax.nn.sigmoid(x_t @ p["w_ih"][0] + p["b_ih"][0]
                           + h @ p["w_hh"][0] + p["b_hh"][0])
        z = jax.nn.sigmoid(x_t @ p["w_ih"][1] + p["b_ih"][1]
                           + h @ p["w_hh"][1] + p["b_hh"][1])
        n = jnp.tanh(x_t @ p["w_ih"][2] + p["b_ih"][2]
                     + r * (h @ p["w_hh"][2] + p["b_hh"][2]))
        h_new = (1.0 - z) * n + z * h
        return h_new, h_new @ p["w_out"] + p["b_out"]

    h_final, logits_tbv = lax.scan(step, state[-1], xs)
    return jnp.transpose(logits_tbv, (1, 0, 2)), h_final[None]


if __name__ == "__main__":
    key = jax.random.PRNGKey(0)
    k_param, k_x, k_h = jax.random.split(key, 3)

    vocab_size, embed_size, hidden_size = 32, 16, 32
    batch, seq = 8, 8

    dec = Decoder(vocab_size, embed_size, hidden_size, k_param)

    x_ids = jax.random.randint(k_x, (batch, seq), 0, vocab_size, jnp.int32)
    # Pretend encoder hidden state (what init_state would return).
    enc_hidden = 0.1 * jax.random.normal(k_h, (1, batch, hidden_size), jnp.float32)
    state = dec.init_state((None, enc_hidden))

    logits, new_state = dec(x_ids, state)
    logits = jax.block_until_ready(logits)
    new_state = jax.block_until_ready(new_state)

    ref_logits, ref_state = reference_forward(dec, x_ids, state)

    assert logits.shape == (batch, seq, vocab_size)
    assert new_state.shape == (1, batch, hidden_size)
    assert jnp.allclose(logits, ref_logits, atol=1e-4, rtol=1e-4)
    assert jnp.allclose(new_state, ref_state, atol=1e-4, rtol=1e-4)

    print("KERNEL_OK")
</pallas_src>

<mosaic_0001>
module attributes {stable_mosaic.version = 11 : i64} {
  func.func @_gru_decoder_kernel(%arg0: i32, %arg1: memref<8x8x16xf32, #tpu.memory_space<vmem>>, %arg2: memref<8x128xf32, #tpu.memory_space<vmem>>, %arg3: memref<16x384xf32, #tpu.memory_space<vmem>>, %arg4: memref<128x384xf32, #tpu.memory_space<vmem>>, %arg5: memref<128x384xf32, #tpu.memory_space<vmem>>, %arg6: memref<1x384xf32, #tpu.memory_space<vmem>>, %arg7: memref<1x384xf32, #tpu.memory_space<vmem>>, %arg8: memref<128x128xf32, #tpu.memory_space<vmem>>, %arg9: memref<1x128xf32, #tpu.memory_space<vmem>>, %arg10: memref<8x8x128xf32, #tpu.memory_space<vmem>>, %arg11: memref<8x128xf32, #tpu.memory_space<vmem>>, %arg12: memref<8x8x384xf32, #tpu.memory_space<vmem>>, %arg13: memref<8x128xf32, #tpu.memory_space<vmem>>, %arg14: memref<8x8x128xf32, #tpu.memory_space<vmem>>) attributes {dimension_semantics = [#tpu.dimension_semantics<arbitrary>], iteration_bounds = array<i64: 1>, scalar_prefetch = 0 : i64, scratch_operands = 3 : i64, tpu.core_type = #tpu.core_type<tc>, window_params = [{pipeline_mode = #tpu.pipeline_mode<synchronous>, transform_indices = @transform_0, window_bounds = array<i64: 8, 8, 16>}, {pipeline_mode = #tpu.pipeline_mode<synchronous>, transform_indices = @transform_1, window_bounds = array<i64: 8, 128>}, {pipeline_mode = #tpu.pipeline_mode<synchronous>, transform_indices = @transform_2, window_bounds = array<i64: 16, 384>}, {pipeline_mode = #tpu.pipeline_mode<synchronous>, transform_indices = @transform_3, window_bounds = array<i64: 128, 384>}, {pipeline_mode = #tpu.pipeline_mode<synchronous>, transform_indices = @transform_4, window_bounds = array<i64: 128, 384>}, {pipeline_mode = #tpu.pipeline_mode<synchronous>, transform_indices = @transform_5, window_bounds = array<i64: 1, 384>}, {pipeline_mode = #tpu.pipeline_mode<synchronous>, transform_indices = @transform_6, window_bounds = array<i64: 1, 384>}, {pipeline_mode = #tpu.pipeline_mode<synchronous>, transform_indices = @transform_7, window_bounds = array<i64: 128, 128>}, {pipeline_mode = #tpu.pipeline_mode<synchronous>, transform_indices = @transform_8, window_bounds = array<i64: 1, 128>}, {pipeline_mode = #tpu.pipeline_mode<synchronous>, transform_indices = @transform_9, window_bounds = array<i64: 8, 8, 128>}, {pipeline_mode = #tpu.pipeline_mode<synchronous>, transform_indices = @transform_10, window_bounds = array<i64: 8, 128>}]} {
    %c0 = arith.constant 0 : index
    %c0_0 = arith.constant 0 : index
    %c0_1 = arith.constant 0 : index
    %0 = vector.load %arg1[%c0, %c0_0, %c0_1] : memref<8x8x16xf32, #tpu.memory_space<vmem>>, vector<8x8x16xf32>
    %1 = vector.shape_cast %0 : vector<8x8x16xf32> to vector<64x16xf32>
    %c0_2 = arith.constant 0 : index
    %c0_3 = arith.constant 0 : index
    %2 = vector.load %arg3[%c0_2, %c0_3] : memref<16x384xf32, #tpu.memory_space<vmem>>, vector<16x384xf32>
    %cst = arith.constant dense<0.000000e+00> : vector<64x384xf32>
    %3 = tpu.matmul %1, %2, %cst {dimension_numbers = #tpu.dot_dimension_numbers<[1], [0], [0], [1], [0, 0, 1, 1], [], []>} : vector<64x16xf32>, vector<16x384xf32>, vector<64x384xf32> -> vector<64x384xf32>
    %4 = vector.shape_cast %3 : vector<64x384xf32> to vector<8x8x384xf32>
    %c0_4 = arith.constant 0 : index
    %c0_5 = arith.constant 0 : index
    %c0_6 = arith.constant 0 : index
    %5 = vector.load %arg12[%c0_4, %c0_5, %c0_6] : memref<8x8x384xf32, #tpu.memory_space<vmem>>, vector<8x8x384xf32>
    tpu.vector_store %arg12[%c0_4, %c0_5, %c0_6], %4 {strides = array<i32>} : memref<8x8x384xf32, #tpu.memory_space<vmem>>, vector<8x8x384xf32>,
    %c0_7 = arith.constant 0 : index
    %c0_8 = arith.constant 0 : index
    %6 = vector.load %arg2[%c0_7, %c0_8] : memref<8x128xf32, #tpu.memory_space<vmem>>, vector<8x128xf32>
    %c0_9 = arith.constant 0 : index
    %c0_10 = arith.constant 0 : index
    %7 = vector.load %arg4[%c0_9, %c0_10] : memref<128x384xf32, #tpu.memory_space<vmem>>, vector<128x384xf32>
    %cst_11 = arith.constant dense<0.000000e+00> : vector<8x384xf32>
    %8 = tpu.matmul %6, %7, %cst_11 {dimension_numbers = #tpu.dot_dimension_numbers<[1], [0], [0], [1], [0, 0, 1, 1], [], []>} : vector<8x128xf32>, vector<128x384xf32>, vector<8x384xf32> -> vector<8x384xf32>
    %c0_12 = arith.constant 0 : index
    %c0_13 = arith.constant 0 : index
    %9 = vector.load %arg6[%c0_12, %c0_13] : memref<1x384xf32, #tpu.memory_space<vmem>>, vector<1x384xf32>
    %10 = vector.broadcast %9 : vector<1x384xf32> to vector<8x384xf32>
    %11 = arith.addf %8, %10 : vector<8x384xf32>
    %c0_14 = arith.constant 0 : index
    %c0_15 = arith.constant 0 : index
    %12 = vector.load %arg2[%c0_14, %c0_15] : memref<8x128xf32, #tpu.memory_space<vmem>>, vector<8x128xf32>
    %c0_16 = arith.constant 0 : index
    %c0_17 = arith.constant 0 : index
    %13 = vector.load %arg13[%c0_16, %c0_17] : memref<8x128xf32, #tpu.memory_space<vmem>>, vector<8x128xf32>
    tpu.vector_store %arg13[%c0_16, %c0_17], %12 {strides = array<i32>} : memref<8x128xf32, #tpu.memory_space<vmem>>, vector<8x128xf32>,
    %c0_i32 = arith.constant 0 : i32
    %c0_18 = arith.constant 0 : index
    %c0_19 = arith.constant 0 : index
    %14 = vector.load %arg13[%c0_18, %c0_19] : memref<8x128xf32, #tpu.memory_space<vmem>>, vector<8x128xf32>
    %15 = arith.index_cast %c0_i32 : i32 to index
    %c0_20 = arith.constant 0 : index
    %c0_21 = arith.constant 0 : index
    %16 = vector.load %arg12[%15, %c0_20, %c0_21] : memref<8x8x384xf32, #tpu.memory_space<vmem>>, vector<1x8x384xf32>
    %17 = vector.shape_cast %16 : vector<1x8x384xf32> to vector<8x384xf32>
    %18 = arith.addf %17, %11 : vector<8x384xf32>
    %c0_22 = arith.constant 0 : index
    %c0_23 = arith.constant 0 : index
    %19 = vector.load %arg5[%c0_22, %c0_23] : memref<128x384xf32, #tpu.memory_space<vmem>>, vector<128x384xf32>
    %cst_24 = arith.constant dense<0.000000e+00> : vector<8x384xf32>
    %20 = tpu.matmul %14, %19, %cst_24 {dimension_numbers = #tpu.dot_dimension_numbers<[1], [0], [0], [1], [0, 0, 1, 1], [], []>} : vector<8x128xf32>, vector<128x384xf32>, vector<8x384xf32> -> vector<8x384xf32>
    %c0_25 = arith.constant 0 : index
    %c0_26 = arith.constant 0 : index
    %21 = vector.load %arg7[%c0_25, %c0_26] : memref<1x384xf32, #tpu.memory_space<vmem>>, vector<1x384xf32>
    %22 = vector.broadcast %21 : vector<1x384xf32> to vector<8x384xf32>
    %23 = arith.addf %20, %22 : vector<8x384xf32>
    %24 = vector.extract_strided_slice %18 {offsets = [0, 0], sizes = [8, 128], strides = [1, 1]} : vector<8x384xf32> to vector<8x128xf32>
    %25 = vector.extract_strided_slice %23 {offsets = [0, 0], sizes = [8, 128], strides = [1, 1]} : vector<8x384xf32> to vector<8x128xf32>
    %26 = arith.addf %24, %25 : vector<8x128xf32>
    %27 = arith.negf %26 : vector<8x128xf32>
    %28 = math.exp %27 : vector<8x128xf32>
    %cst_27 = arith.constant 1.000000e+00 : f32
    %29 = vector.broadcast %cst_27 : f32 to vector<8x128xf32>
    %30 = arith.addf %29, %28 : vector<8x128xf32>
    %31 = arith.divf %29, %30 : vector<8x128xf32>
    %32 = vector.extract_strided_slice %18 {offsets = [0, 128], sizes = [8, 128], strides = [1, 1]} : vector<8x384xf32> to vector<8x128xf32>
    %33 = vector.extract_strided_slice %23 {offsets = [0, 128], sizes = [8, 128], strides = [1, 1]} : vector<8x384xf32> to vector<8x128xf32>
    %34 = arith.addf %32, %33 : vector<8x128xf32>
    %35 = arith.negf %34 : vector<8x128xf32>
    %36 = math.exp %35 : vector<8x128xf32>
    %cst_28 = arith.constant 1.000000e+00 : f32
    %37 = vector.broadcast %cst_28 : f32 to vector<8x128xf32>
    %38 = arith.addf %37, %36 : vector<8x128xf32>
    %39 = arith.divf %37, %38 : vector<8x128xf32>
    %40 = vector.extract_strided_slice %18 {offsets = [0, 256], sizes = [8, 128], strides = [1, 1]} : vector<8x384xf32> to vector<8x128xf32>
    %41 = vector.extract_strided_slice %23 {offsets = [0, 256], sizes = [8, 128], strides = [1, 1]} : vector<8x384xf32> to vector<8x128xf32>
    %42 = arith.mulf %31, %41 : vector<8x128xf32>
    %43 = arith.addf %40, %42 : vector<8x128xf32>
    %44 = math.tanh %43 : vector<8x128xf32>
    %cst_29 = arith.constant 1.000000e+00 : f32
    %45 = vector.broadcast %cst_29 : f32 to vector<8x128xf32>
    %46 = arith.subf %45, %39 : vector<8x128xf32>
    %47 = arith.mulf %46, %44 : vector<8x128xf32>
    %48 = arith.mulf %39, %14 : vector<8x128xf32>
    %49 = arith.addf %47, %48 : vector<8x128xf32>
    %c0_30 = arith.constant 0 : index
    %c0_31 = arith.constant 0 : index
    %50 = vector.load %arg13[%c0_30, %c0_31] : memref<8x128xf32, #tpu.memory_space<vmem>>, vector<8x128xf32>
    tpu.vector_store %arg13[%c0_30, %c0_31], %49 {strides = array<i32>} : memref<8x128xf32, #tpu.memory_space<vmem>>, vector<8x128xf32>,
    %51 = arith.index_cast %c0_i32 : i32 to index
    %c0_32 = arith.constant 0 : index
    %c0_33 = arith.constant 0 : index
    %52 = vector.load %arg14[%51, %c0_32, %c0_33] : memref<8x8x128xf32, #tpu.memory_space<vmem>>, vector<1x8x128xf32>
    %53 = vector.shape_cast %52 : vector<1x8x128xf32> to vector<8x128xf32>
    %54 = vector.shape_cast %49 : vector<8x128xf32> to vector<1x8x128xf32>
    tpu.vector_store %arg14[%51, %c0_32, %c0_33], %54 {strides = array<i32>} : memref<8x8x128xf32, #tpu.memory_space<vmem>>, vector<1x8x128xf32>,
    %c1_i32 = arith.constant 1 : i32
    %c0_34 = arith.constant 0 : index
    %c0_35 = arith.constant 0 : index
    %55 = vector.load %arg13[%c0_34, %c0_35] : memref<8x128xf32, #tpu.memory_space<vmem>>, vector<8x128xf32>
    %56 = arith.index_cast %c1_i32 : i32 to index
    %c0_36 = arith.constant 0 : index
    %c0_37 = arith.constant 0 : index
    %57 = vector.load %arg12[%56, %c0_36, %c0_37] : memref<8x8x384xf32, #tpu.memory_space<vmem>>, vector<1x8x384xf32>
    %58 = vector.shape_cast %57 : vector<1x8x384xf32> to vector<8x384xf32>
    %59 = arith.addf %58, %11 : vector<8x384xf32>
    %c0_38 = arith.constant 0 : index
    %c0_39 = arith.constant 0 : index
    %60 = vector.load %arg5[%c0_38, %c0_39] : memref<128x384xf32, #tpu.memory_space<vmem>>, vector<128x384xf32>
    %cst_40 = arith.constant dense<0.000000e+00> : vector<8x384xf32>
    %61 = tpu.matmul %55, %60, %cst_40 {dimension_numbers = #tpu.dot_dimension_numbers<[1], [0], [0], [1], [0, 0, 1, 1], [], []>} : vector<8x128xf32>, vector<128x384xf32>, vector<8x384xf32> -> vector<8x384xf32>
    %c0_41 = arith.constant 0 : index
    %c0_42 = arith.constant 0 : index
    %62 = vector.load %arg7[%c0_41, %c0_42] : memref<1x384xf32, #tpu.memory_space<vmem>>, vector<1x384xf32>
    %63 = vector.broadcast %62 : vector<1x384xf32> to vector<8x384xf32>
    %64 = arith.addf %61, %63 : vector<8x384xf32>
    %65 = vector.extract_strided_slice %59 {offsets = [0, 0], sizes = [8, 128], strides = [1, 1]} : vector<8x384xf32> to vector<8x128xf32>
    %66 = vector.extract_strided_slice %64 {offsets = [0, 0], sizes = [8, 128], strides = [1, 1]} : vector<8x384xf32> to vector<8x128xf32>
    %67 = arith.addf %65, %66 : vector<8x128xf32>
    %68 = arith.negf %67 : vector<8x128xf32>
    %69 = math.exp %68 : vector<8x128xf32>
    %cst_43 = arith.constant 1.000000e+00 : f32
    %70 = vector.broadcast %cst_43 : f32 to vector<8x128xf32>
    %71 = arith.addf %70, %69 : vector<8x128xf32>
    %72 = arith.divf %70, %71 : vector<8x128xf32>
    %73 = vector.extract_strided_slice %59 {offsets = [0, 128], sizes = [8, 128], strides = [1, 1]} : vector<8x384xf32> to vector<8x128xf32>
    %74 = vector.extract_strided_slice %64 {offsets = [0, 128], sizes = [8, 128], strides = [1, 1]} : vector<8x384xf32> to vector<8x128xf32>
    %75 = arith.addf %73, %74 : vector<8x128xf32>
    %76 = arith.negf %75 : vector<8x128xf32>
    %77 = math.exp %76 : vector<8x128xf32>
    %cst_44 = arith.constant 1.000000e+00 : f32
    %78 = vector.broadcast %cst_44 : f32 to vector<8x128xf32>
    %79 = arith.addf %78, %77 : vector<8x128xf32>
    %80 = arith.divf %78, %79 : vector<8x128xf32>
    %81 = vector.extract_strided_slice %59 {offsets = [0, 256], sizes = [8, 128], strides = [1, 1]} : vector<8x384xf32> to vector<8x128xf32>
    %82 = vector.extract_strided_slice %64 {offsets = [0, 256], sizes = [8, 128], strides = [1, 1]} : vector<8x384xf32> to vector<8x128xf32>
    %83 = arith.mulf %72, %82 : vector<8x128xf32>
    %84 = arith.addf %81, %83 : vector<8x128xf32>
    %85 = math.tanh %84 : vector<8x128xf32>
    %cst_45 = arith.constant 1.000000e+00 : f32
    %86 = vector.broadcast %cst_45 : f32 to vector<8x128xf32>
    %87 = arith.subf %86, %80 : vector<8x128xf32>
    %88 = arith.mulf %87, %85 : vector<8x128xf32>
    %89 = arith.mulf %80, %55 : vector<8x128xf32>
    %90 = arith.addf %88, %89 : vector<8x128xf32>
    %c0_46 = arith.constant 0 : index
    %c0_47 = arith.constant 0 : index
    %91 = vector.load %arg13[%c0_46, %c0_47] : memref<8x128xf32, #tpu.memory_space<vmem>>, vector<8x128xf32>
    tpu.vector_store %arg13[%c0_46, %c0_47], %90 {strides = array<i32>} : memref<8x128xf32, #tpu.memory_space<vmem>>, vector<8x128xf32>,
    %92 = arith.index_cast %c1_i32 : i32 to index
    %c0_48 = arith.constant 0 : index
    %c0_49 = arith.constant 0 : index
    %93 = vector.load %arg14[%92, %c0_48, %c0_49] : memref<8x8x128xf32, #tpu.memory_space<vmem>>, vector<1x8x128xf32>
    %94 = vector.shape_cast %93 : vector<1x8x128xf32> to vector<8x128xf32>
    %95 = vector.shape_cast %90 : vector<8x128xf32> to vector<1x8x128xf32>
    tpu.vector_store %arg14[%92, %c0_48, %c0_49], %95 {strides = array<i32>} : memref<8x8x128xf32, #tpu.memory_space<vmem>>, vector<1x8x128xf32>,
    %c2_i32 = arith.constant 2 : i32
    %c0_50 = arith.constant 0 : index
    %c0_51 = arith.constant 0 : index
    %96 = vector.load %arg13[%c0_50, %c0_51] : memref<8x128xf32, #tpu.memory_space<vmem>>, vector<8x128xf32>
    %97 = arith.index_cast %c2_i32 : i32 to index
    %c0_52 = arith.constant 0 : index
    %c0_53 = arith.constant 0 : index
    %98 = vector.load %arg12[%97, %c0_52, %c0_53] : memref<8x8x384xf32, #tpu.memory_space<vmem>>, vector<1x8x384xf32>
    %99 = vector.shape_cast %98 : vector<1x8x384xf32> to vector<8x384xf32>
    %100 = arith.addf %99, %11 : vector<8x384xf32>
    %c0_54 = arith.constant 0 : index
    %c0_55 = arith.constant 0 : index
    %101 = vector.load %arg5[%c0_54, %c0_55] : memref<128x384xf32, #tpu.memory_space<vmem>>, vector<128x384xf32>
    %cst_56 = arith.constant dense<0.000000e+00> : vector<8x384xf32>
    %102 = tpu.matmul %96, %101, %cst_56 {dimension_numbers = #tpu.dot_dimension_numbers<[1], [0], [0], [1], [0, 0, 1, 1], [], []>} : vector<8x128xf32>, vector<128x384xf32>, vector<8x384xf32> -> vector<8x384xf32>
    %c0_57 = arith.constant 0 : index
    %c0_58 = arith.constant 0 : index
    %103 = vector.load %arg7[%c0_57, %c0_58] : memref<1x384xf32, #tpu.memory_space<vmem>>, vector<1x384xf32>
    %104 = vector.broadcast %103 : vector<1x384xf32> to vector<8x384xf32>
    %105 = arith.addf %102, %104 : vector<8x384xf32>
    %106 = vector.extract_strided_slice %100 {offsets = [0, 0], sizes = [8, 128], strides = [1, 1]} : vector<8x384xf32> to vector<8x128xf32>
    %107 = vector.extract_strided_slice %105 {offsets = [0, 0], sizes = [8, 128], strides = [1, 1]} : vector<8x384xf32> to vector<8x128xf32>
    %108 = arith.addf %106, %107 : vector<8x128xf32>
    %109 = arith.negf %108 : vector<8x128xf32>
    %110 = math.exp %109 : vector<8x128xf32>
    %cst_59 = arith.constant 1.000000e+00 : f32
    %111 = vector.broadcast %cst_59 : f32 to vector<8x128xf32>
    %112 = arith.addf %111, %110 : vector<8x128xf32>
    %113 = arith.divf %111, %112 : vector<8x128xf32>
    %114 = vector.extract_strided_slice %100 {offsets = [0, 128], sizes = [8, 128], strides = [1, 1]} : vector<8x384xf32> to vector<8x128xf32>
    %115 = vector.extract_strided_slice %105 {offsets = [0, 128], sizes = [8, 128], strides = [1, 1]} : vector<8x384xf32> to vector<8x128xf32>
    %116 = arith.addf %114, %115 : vector<8x128xf32>
    %117 = arith.negf %116 : vector<8x128xf32>
    %118 = math.exp %117 : vector<8x128xf32>
    %cst_60 = arith.constant 1.000000e+00 : f32
    %119 = vector.broadcast %cst_60 : f32 to vector<8x128xf32>
    %120 = arith.addf %119, %118 : vector<8x128xf32>
    %121 = arith.divf %119, %120 : vector<8x128xf32>
    %122 = vector.extract_strided_slice %100 {offsets = [0, 256], sizes = [8, 128], strides = [1, 1]} : vector<8x384xf32> to vector<8x128xf32>
    %123 = vector.extract_strided_slice %105 {offsets = [0, 256], sizes = [8, 128], strides = [1, 1]} : vector<8x384xf32> to vector<8x128xf32>
    %124 = arith.mulf %113, %123 : vector<8x128xf32>
    %125 = arith.addf %122, %124 : vector<8x128xf32>
    %126 = math.tanh %125 : vector<8x128xf32>
    %cst_61 = arith.constant 1.000000e+00 : f32
    %127 = vector.broadcast %cst_61 : f32 to vector<8x128xf32>
    %128 = arith.subf %127, %121 : vector<8x128xf32>
    %129 = arith.mulf %128, %126 : vector<8x128xf32>
    %130 = arith.mulf %121, %96 : vector<8x128xf32>
    %131 = arith.addf %129, %130 : vector<8x128xf32>
    %c0_62 = arith.constant 0 : index
    %c0_63 = arith.constant 0 : index
    %132 = vector.load %arg13[%c0_62, %c0_63] : memref<8x128xf32, #tpu.memory_space<vmem>>, vector<8x128xf32>
    tpu.vector_store %arg13[%c0_62, %c0_63], %131 {strides = array<i32>} : memref<8x128xf32, #tpu.memory_space<vmem>>, vector<8x128xf32>,
    %133 = arith.index_cast %c2_i32 : i32 to index
    %c0_64 = arith.constant 0 : index
    %c0_65 = arith.constant 0 : index
    %134 = vector.load %arg14[%133, %c0_64, %c0_65] : memref<8x8x128xf32, #tpu.memory_space<vmem>>, vector<1x8x128xf32>
    %135 = vector.shape_cast %134 : vector<1x8x128xf32> to vector<8x128xf32>
    %136 = vector.shape_cast %131 : vector<8x128xf32> to vector<1x8x128xf32>
    tpu.vector_store %arg14[%133, %c0_64, %c0_65], %136 {strides = array<i32>} : memref<8x8x128xf32, #tpu.memory_space<vmem>>, vector<1x8x128xf32>,
    %c3_i32 = arith.constant 3 : i32
    %c0_66 = arith.constant 0 : index
    %c0_67 = arith.constant 0 : index
    %137 = vector.load %arg13[%c0_66, %c0_67] : memref<8x128xf32, #tpu.memory_space<vmem>>, vector<8x128xf32>
    %138 = arith.index_cast %c3_i32 : i32 to index
    %c0_68 = arith.constant 0 : index
    %c0_69 = arith.constant 0 : index
    %139 = vector.load %arg12[%138, %c0_68, %c0_69] : memref<8x8x384xf32, #tpu.memory_space<vmem>>, vector<1x8x384xf32>
    %140 = vector.shape_cast %139 : vector<1x8x384xf32> to vector<8x384xf32>
    %141 = arith.addf %140, %11 : vector<8x384xf32>
    %c0_70 = arith.constant 0 : index
    %c0_71 = arith.constant 0 : index
    %142 = vector.load %arg5[%c0_70, %c0_71] : memref<128x384xf32, #tpu.memory_space<vmem>>, vector<128x384xf32>
    %cst_72 = arith.constant dense<0.000000e+00> : vector<8x384xf32>
    %143 = tpu.matmul %137, %142, %cst_72 {dimension_numbers = #tpu.dot_dimension_numbers<[1], [0], [0], [1], [0, 0, 1, 1], [], []>} : vector<8x128xf32>, vector<128x384xf32>, vector<8x384xf32> -> vector<8x384xf32>
    %c0_73 = arith.constant 0 : index
    %c0_74 = arith.constant 0 : index
    %144 = vector.load %arg7[%c0_73, %c0_74] : memref<1x384xf32, #tpu.memory_space<vmem>>, vector<1x384xf32>
    %145 = vector.broadcast %144 : vector<1x384xf32> to vector<8x384xf32>
    %146 = arith.addf %143, %145 : vector<8x384xf32>
    %147 = vector.extract_strided_slice %141 {offsets = [0, 0], sizes = [8, 128], strides = [1, 1]} : vector<8x384xf32> to vector<8x128xf32>
    %148 = vector.extract_strided_slice %146 {offsets = [0, 0], sizes = [8, 128], strides = [1, 1]} : vector<8x384xf32> to vector<8x128xf32>
    %149 = arith.addf %147, %148 : vector<8x128xf32>
    %150 = arith.negf %149 : vector<8x128xf32>
    %151 = math.exp %150 : vector<8x128xf32>
    %cst_75 = arith.constant 1.000000e+00 : f32
    %152 = vector.broadcast %cst_75 : f32 to vector<8x128xf32>
    %153 = arith.addf %152, %151 : vector<8x128xf32>
    %154 = arith.divf %152, %153 : vector<8x128xf32>
    %155 = vector.extract_strided_slice %141 {offsets = [0, 128], sizes = [8, 128], strides = [1, 1]} : vector<8x384xf32> to vector<8x128xf32>
    %156 = vector.extract_strided_slice %146 {offsets = [0, 128], sizes = [8, 128], strides = [1, 1]} : vector<8x384xf32> to vector<8x128xf32>
    %157 = arith.addf %155, %156 : vector<8x128xf32>
    %158 = arith.negf %157 : vector<8x128xf32>
    %159 = math.exp %158 : vector<8x128xf32>
    %cst_76 = arith.constant 1.000000e+00 : f32
    %160 = vector.broadcast %cst_76 : f32 to vector<8x128xf32>
    %161 = arith.addf %160, %159 : vector<8x128xf32>
    %162 = arith.divf %160, %161 : vector<8x128xf32>
    %163 = vector.extract_strided_slice %141 {offsets = [0, 256], sizes = [8, 128], strides = [1, 1]} : vector<8x384xf32> to vector<8x128xf32>
    %164 = vector.extract_strided_slice %146 {offsets = [0, 256], sizes = [8, 128], strides = [1, 1]} : vector<8x384xf32> to vector<8x128xf32>
    %165 = arith.mulf %154, %164 : vector<8x128xf32>
    %166 = arith.addf %163, %165 : vector<8x128xf32>
    %167 = math.tanh %166 : vector<8x128xf32>
    %cst_77 = arith.constant 1.000000e+00 : f32
    %168 = vector.broadcast %cst_77 : f32 to vector<8x128xf32>
    %169 = arith.subf %168, %162 : vector<8x128xf32>
    %170 = arith.mulf %169, %167 : vector<8x128xf32>
    %171 = arith.mulf %162, %137 : vector<8x128xf32>
    %172 = arith.addf %170, %171 : vector<8x128xf32>
    %c0_78 = arith.constant 0 : index
    %c0_79 = arith.constant 0 : index
    %173 = vector.load %arg13[%c0_78, %c0_79] : memref<8x128xf32, #tpu.memory_space<vmem>>, vector<8x128xf32>
    tpu.vector_store %arg13[%c0_78, %c0_79], %172 {strides = array<i32>} : memref<8x128xf32, #tpu.memory_space<vmem>>, vector<8x128xf32>,
    %174 = arith.index_cast %c3_i32 : i32 to index
    %c0_80 = arith.constant 0 : index
    %c0_81 = arith.constant 0 : index
    %175 = vector.load %arg14[%174, %c0_80, %c0_81] : memref<8x8x128xf32, #tpu.memory_space<vmem>>, vector<1x8x128xf32>
    %176 = vector.shape_cast %175 : vector<1x8x128xf32> to vector<8x128xf32>
    %177 = vector.shape_cast %172 : vector<8x128xf32> to vector<1x8x128xf32>
    tpu.vector_store %arg14[%174, %c0_80, %c0_81], %177 {strides = array<i32>} : memref<8x8x128xf32, #tpu.memory_space<vmem>>, vector<1x8x128xf32>,
    %c4_i32 = arith.constant 4 : i32
    %c0_82 = arith.constant 0 : index
    %c0_83 = arith.constant 0 : index
    %178 = vector.load %arg13[%c0_82, %c0_83] : memref<8x128xf32, #tpu.memory_space<vmem>>, vector<8x128xf32>
    %179 = arith.index_cast %c4_i32 : i32 to index
    %c0_84 = arith.constant 0 : index
    %c0_85 = arith.constant 0 : index
    %180 = vector.load %arg12[%179, %c0_84, %c0_85] : memref<8x8x384xf32, #tpu.memory_space<vmem>>, vector<1x8x384xf32>
    %181 = vector.shape_cast %180 : vector<1x8x384xf32> to vector<8x384xf32>
    %182 = arith.addf %181, %11 : vector<8x384xf32>
    %c0_86 = arith.constant 0 : index
    %c0_87 = arith.constant 0 : index
    %183 = vector.load %arg5[%c0_86, %c0_87] : memref<128x384xf32, #tpu.memory_space<vmem>>, vector<128x384xf32>
    %cst_88 = arith.constant dense<0.000000e+00> : vector<8x384xf32>
    %184 = tpu.matmul %178, %183, %cst_88 {dimension_numbers = #tpu.dot_dimension_numbers<[1], [0], [0], [1], [0, 0, 1, 1], [], []>} : vector<8x128xf32>, vector<128x384xf32>, vector<8x384xf32> -> vector<8x384xf32>
    %c0_89 = arith.constant 0 : index
    %c0_90 = arith.constant 0 : index
    %185 = vector.load %arg7[%c0_89, %c0_90] : memref<1x384xf32, #tpu.memory_space<vmem>>, vector<1x384xf32>
    %186 = vector.broadcast %185 : vector<1x384xf32> to vector<8x384xf32>
    %187 = arith.addf %184, %186 : vector<8x384xf32>
    %188 = vector.extract_strided_slice %182 {offsets = [0, 0], sizes = [8, 128], strides = [1, 1]} : vector<8x384xf32> to vector<8x128xf32>
    %189 = vector.extract_strided_slice %187 {offsets = [0, 0], sizes = [8, 128], strides = [1, 1]} : vector<8x384xf32> to vector<8x128xf32>
    %190 = arith.addf %188, %189 : vector<8x128xf32>
    %191 = arith.negf %190 : vector<8x128xf32>
    %192 = math.exp %191 : vector<8x128xf32>
    %cst_91 = arith.constant 1.000000e+00 : f32
    %193 = vector.broadcast %cst_91 : f32 to vector<8x128xf32>
    %194 = arith.addf %193, %192 : vector<8x128xf32>
    %195 = arith.divf %193, %194 : vector<8x128xf32>
    %196 = vector.extract_strided_slice %182 {offsets = [0, 128], sizes = [8, 128], strides = [1, 1]} : vector<8x384xf32> to vector<8x128xf32>
    %197 = vector.extract_strided_slice %187 {offsets = [0, 128], sizes = [8, 128], strides = [1, 1]} : vector<8x384xf32> to vector<8x128xf32>
    %198 = arith.addf %196, %197 : vector<8x128xf32>
    %199 = arith.negf %198 : vector<8x128xf32>
    %200 = math.exp %199 : vector<8x128xf32>
    %cst_92 = arith.constant 1.000000e+00 : f32
    %201 = vector.broadcast %cst_92 : f32 to vector<8x128xf32>
    %202 = arith.addf %201, %200 : vector<8x128xf32>
    %203 = arith.divf %201, %202 : vector<8x128xf32>
    %204 = vector.extract_strided_slice %182 {offsets = [0, 256], sizes = [8, 128], strides = [1, 1]} : vector<8x384xf32> to vector<8x128xf32>
    %205 = vector.extract_strided_slice %187 {offsets = [0, 256], sizes = [8, 128], strides = [1, 1]} : vector<8x384xf32> to vector<8x128xf32>
    %206 = arith.mulf %195, %205 : vector<8x128xf32>
    %207 = arith.addf %204, %206 : vector<8x128xf32>
    %208 = math.tanh %207 : vector<8x128xf32>
    %cst_93 = arith.constant 1.000000e+00 : f32
    %209 = vector.broadcast %cst_93 : f32 to vector<8x128xf32>
    %210 = arith.subf %209, %203 : vector<8x128xf32>
    %211 = arith.mulf %210, %208 : vector<8x128xf32>
    %212 = arith.mulf %203, %178 : vector<8x128xf32>
    %213 = arith.addf %211, %212 : vector<8x128xf32>
    %c0_94 = arith.constant 0 : index
    %c0_95 = arith.constant 0 : index
    %214 = vector.load %arg13[%c0_94, %c0_95] : memref<8x128xf32, #tpu.memory_space<vmem>>, vector<8x128xf32>
    tpu.vector_store %arg13[%c0_94, %c0_95], %213 {strides = array<i32>} : memref<8x128xf32, #tpu.memory_space<vmem>>, vector<8x128xf32>,
    %215 = arith.index_cast %c4_i32 : i32 to index
    %c0_96 = arith.constant 0 : index
    %c0_97 = arith.constant 0 : index
    %216 = vector.load %arg14[%215, %c0_96, %c0_97] : memref<8x8x128xf32, #tpu.memory_space<vmem>>, vector<1x8x128xf32>
    %217 = vector.shape_cast %216 : vector<1x8x128xf32> to vector<8x128xf32>
    %218 = vector.shape_cast %213 : vector<8x128xf32> to vector<1x8x128xf32>
    tpu.vector_store %arg14[%215, %c0_96, %c0_97], %218 {strides = array<i32>} : memref<8x8x128xf32, #tpu.memory_space<vmem>>, vector<1x8x128xf32>,
    %c5_i32 = arith.constant 5 : i32
    %c0_98 = arith.constant 0 : index
    %c0_99 = arith.constant 0 : index
    %219 = vector.load %arg13[%c0_98, %c0_99] : memref<8x128xf32, #tpu.memory_space<vmem>>, vector<8x128xf32>
    %220 = arith.index_cast %c5_i32 : i32 to index
    %c0_100 = arith.constant 0 : index
    %c0_101 = arith.constant 0 : index
    %221 = vector.load %arg12[%220, %c0_100, %c0_101] : memref<8x8x384xf32, #tpu.memory_space<vmem>>, vector<1x8x384xf32>
    %222 = vector.shape_cast %221 : vector<1x8x384xf32> to vector<8x384xf32>
    %223 = arith.addf %222, %11 : vector<8x384xf32>
    %c0_102 = arith.constant 0 : index
    %c0_103 = arith.constant 0 : index
    %224 = vector.load %arg5[%c0_102, %c0_103] : memref<128x384xf32, #tpu.memory_space<vmem>>, vector<128x384xf32>
    %cst_104 = arith.constant dense<0.000000e+00> : vector<8x384xf32>
    %225 = tpu.matmul %219, %224, %cst_104 {dimension_numbers = #tpu.dot_dimension_numbers<[1], [0], [0], [1], [0, 0, 1, 1], [], []>} : vector<8x128xf32>, vector<128x384xf32>, vector<8x384xf32> -> vector<8x384xf32>
    %c0_105 = arith.constant 0 : index
    %c0_106 = arith.constant 0 : index
    %226 = vector.load %arg7[%c0_105, %c0_106] : memref<1x384xf32, #tpu.memory_space<vmem>>, vector<1x384xf32>
    %227 = vector.broadcast %226 : vector<1x384xf32> to vector<8x384xf32>
    %228 = arith.addf %225, %227 : vector<8x384xf32>
    %229 = vector.extract_strided_slice %223 {offsets = [0, 0], sizes = [8, 128], strides = [1, 1]} : vector<8x384xf32> to vector<8x128xf32>
    %230 = vector.extract_strided_slice %228 {offsets = [0, 0], sizes = [8, 128], strides = [1, 1]} : vector<8x384xf32> to vector<8x128xf32>
    %231 = arith.addf %229, %230 : vector<8x128xf32>
    %232 = arith.negf %231 : vector<8x128xf32>
    %233 = math.exp %232 : vector<8x128xf32>
    %cst_107 = arith.constant 1.000000e+00 : f32
    %234 = vector.broadcast %cst_107 : f32 to vector<8x128xf32>
    %235 = arith.addf %234, %233 : vector<8x128xf32>
    %236 = arith.divf %234, %235 : vector<8x128xf32>
    %237 = vector.extract_strided_slice %223 {offsets = [0, 128], sizes = [8, 128], strides = [1, 1]} : vector<8x384xf32> to vector<8x128xf32>
    %238 = vector.extract_strided_slice %228 {offsets = [0, 128], sizes = [8, 128], strides = [1, 1]} : vector<8x384xf32> to vector<8x128xf32>
    %239 = arith.addf %237, %238 : vector<8x128xf32>
    %240 = arith.negf %239 : vector<8x128xf32>
    %241 = math.exp %240 : vector<8x128xf32>
    %cst_108 = arith.constant 1.000000e+00 : f32
    %242 = vector.broadcast %cst_108 : f32 to vector<8x128xf32>
    %243 = arith.addf %242, %241 : vector<8x128xf32>
    %244 = arith.divf %242, %243 : vector<8x128xf32>
    %245 = vector.extract_strided_slice %223 {offsets = [0, 256], sizes = [8, 128], strides = [1, 1]} : vector<8x384xf32> to vector<8x128xf32>
    %246 = vector.extract_strided_slice %228 {offsets = [0, 256], sizes = [8, 128], strides = [1, 1]} : vector<8x384xf32> to vector<8x128xf32>
    %247 = arith.mulf %236, %246 : vector<8x128xf32>
    %248 = arith.addf %245, %247 : vector<8x128xf32>
    %249 = math.tanh %248 : vector<8x128xf32>
    %cst_109 = arith.constant 1.000000e+00 : f32
    %250 = vector.broadcast %cst_109 : f32 to vector<8x128xf32>
    %251 = arith.subf %250, %244 : vector<8x128xf32>
    %252 = arith.mulf %251, %249 : vector<8x128xf32>
    %253 = arith.mulf %244, %219 : vector<8x128xf32>
    %254 = arith.addf %252, %253 : vector<8x128xf32>
    %c0_110 = arith.constant 0 : index
    %c0_111 = arith.constant 0 : index
    %255 = vector.load %arg13[%c0_110, %c0_111] : memref<8x128xf32, #tpu.memory_space<vmem>>, vector<8x128xf32>
    tpu.vector_store %arg13[%c0_110, %c0_111], %254 {strides = array<i32>} : memref<8x128xf32, #tpu.memory_space<vmem>>, vector<8x128xf32>,
    %256 = arith.index_cast %c5_i32 : i32 to index
    %c0_112 = arith.constant 0 : index
    %c0_113 = arith.constant 0 : index
    %257 = vector.load %arg14[%256, %c0_112, %c0_113] : memref<8x8x128xf32, #tpu.memory_space<vmem>>, vector<1x8x128xf32>
    %258 = vector.shape_cast %257 : vector<1x8x128xf32> to vector<8x128xf32>
    %259 = vector.shape_cast %254 : vector<8x128xf32> to vector<1x8x128xf32>
    tpu.vector_store %arg14[%256, %c0_112, %c0_113], %259 {strides = array<i32>} : memref<8x8x128xf32, #tpu.memory_space<vmem>>, vector<1x8x128xf32>,
    %c6_i32 = arith.constant 6 : i32
    %c0_114 = arith.constant 0 : index
    %c0_115 = arith.constant 0 : index
    %260 = vector.load %arg13[%c0_114, %c0_115] : memref<8x128xf32, #tpu.memory_space<vmem>>, vector<8x128xf32>
    %261 = arith.index_cast %c6_i32 : i32 to index
    %c0_116 = arith.constant 0 : index
    %c0_117 = arith.constant 0 : index
    %262 = vector.load %arg12[%261, %c0_116, %c0_117] : memref<8x8x384xf32, #tpu.memory_space<vmem>>, vector<1x8x384xf32>
    %263 = vector.shape_cast %262 : vector<1x8x384xf32> to vector<8x384xf32>
    %264 = arith.addf %263, %11 : vector<8x384xf32>
    %c0_118 = arith.constant 0 : index
    %c0_119 = arith.constant 0 : index
    %265 = vector.load %arg5[%c0_118, %c0_119] : memref<128x384xf32, #tpu.memory_space<vmem>>, vector<128x384xf32>
    %cst_120 = arith.constant dense<0.000000e+00> : vector<8x384xf32>
    %266 = tpu.matmul %260, %265, %cst_120 {dimension_numbers = #tpu.dot_dimension_numbers<[1], [0], [0], [1], [0, 0, 1, 1], [], []>} : vector<8x128xf32>, vector<128x384xf32>, vector<8x384xf32> -> vector<8x384xf32>
    %c0_121 = arith.constant 0 : index
    %c0_122 = arith.constant 0 : index
    %267 = vector.load %arg7[%c0_121, %c0_122] : memref<1x384xf32, #tpu.memory_space<vmem>>, vector<1x384xf32>
    %268 = vector.broadcast %267 : vector<1x384xf32> to vector<8x384xf32>
    %269 = arith.addf %266, %268 : vector<8x384xf32>
    %270 = vector.extract_strided_slice %264 {offsets = [0, 0], sizes = [8, 128], strides = [1, 1]} : vector<8x384xf32> to vector<8x128xf32>
    %271 = vector.extract_strided_slice %269 {offsets = [0, 0], sizes = [8, 128], strides = [1, 1]} : vector<8x384xf32> to vector<8x128xf32>
    %272 = arith.addf %270, %271 : vector<8x128xf32>
    %273 = arith.negf %272 : vector<8x128xf32>
    %274 = math.exp %273 : vector<8x128xf32>
    %cst_123 = arith.constant 1.000000e+00 : f32
    %275 = vector.broadcast %cst_123 : f32 to vector<8x128xf32>
    %276 = arith.addf %275, %274 : vector<8x128xf32>
    %277 = arith.divf %275, %276 : vector<8x128xf32>
    %278 = vector.extract_strided_slice %264 {offsets = [0, 128], sizes = [8, 128], strides = [1, 1]} : vector<8x384xf32> to vector<8x128xf32>
    %279 = vector.extract_strided_slice %269 {offsets = [0, 128], sizes = [8, 128], strides = [1, 1]} : vector<8x384xf32> to vector<8x128xf32>
    %280 = arith.addf %278, %279 : vector<8x128xf32>
    %281 = arith.negf %280 : vector<8x128xf32>
    %282 = math.exp %281 : vector<8x128xf32>
    %cst_124 = arith.constant 1.000000e+00 : f32
    %283 = vector.broadcast %cst_124 : f32 to vector<8x128xf32>
    %284 = arith.addf %283, %282 : vector<8x128xf32>
    %285 = arith.divf %283, %284 : vector<8x128xf32>
    %286 = vector.extract_strided_slice %264 {offsets = [0, 256], sizes = [8, 128], strides = [1, 1]} : vector<8x384xf32> to vector<8x128xf32>
    %287 = vector.extract_strided_slice %269 {offsets = [0, 256], sizes = [8, 128], strides = [1, 1]} : vector<8x384xf32> to vector<8x128xf32>
    %288 = arith.mulf %277, %287 : vector<8x128xf32>
    %289 = arith.addf %286, %288 : vector<8x128xf32>
    %290 = math.tanh %289 : vector<8x128xf32>
    %cst_125 = arith.constant 1.000000e+00 : f32
    %291 = vector.broadcast %cst_125 : f32 to vector<8x128xf32>
    %292 = arith.subf %291, %285 : vector<8x128xf32>
    %293 = arith.mulf %292, %290 : vector<8x128xf32>
    %294 = arith.mulf %285, %260 : vector<8x128xf32>
    %295 = arith.addf %293, %294 : vector<8x128xf32>
    %c0_126 = arith.constant 0 : index
    %c0_127 = arith.constant 0 : index
    %296 = vector.load %arg13[%c0_126, %c0_127] : memref<8x128xf32, #tpu.memory_space<vmem>>, vector<8x128xf32>
    tpu.vector_store %arg13[%c0_126, %c0_127], %295 {strides = array<i32>} : memref<8x128xf32, #tpu.memory_space<vmem>>, vector<8x128xf32>,
    %297 = arith.index_cast %c6_i32 : i32 to index
    %c0_128 = arith.constant 0 : index
    %c0_129 = arith.constant 0 : index
    %298 = vector.load %arg14[%297, %c0_128, %c0_129] : memref<8x8x128xf32, #tpu.memory_space<vmem>>, vector<1x8x128xf32>
    %299 = vector.shape_cast %298 : vector<1x8x128xf32> to vector<8x128xf32>
    %300 = vector.shape_cast %295 : vector<8x128xf32> to vector<1x8x128xf32>
    tpu.vector_store %arg14[%297, %c0_128, %c0_129], %300 {strides = array<i32>} : memref<8x8x128xf32, #tpu.memory_space<vmem>>, vector<1x8x128xf32>,
    %c7_i32 = arith.constant 7 : i32
    %c0_130 = arith.constant 0 : index
    %c0_131 = arith.constant 0 : index
    %301 = vector.load %arg13[%c0_130, %c0_131] : memref<8x128xf32, #tpu.memory_space<vmem>>, vector<8x128xf32>
    %302 = arith.index_cast %c7_i32 : i32 to index
    %c0_132 = arith.constant 0 : index
    %c0_133 = arith.constant 0 : index
    %303 = vector.load %arg12[%302, %c0_132, %c0_133] : memref<8x8x384xf32, #tpu.memory_space<vmem>>, vector<1x8x384xf32>
    %304 = vector.shape_cast %303 : vector<1x8x384xf32> to vector<8x384xf32>
    %305 = arith.addf %304, %11 : vector<8x384xf32>
    %c0_134 = arith.constant 0 : index
    %c0_135 = arith.constant 0 : index
    %306 = vector.load %arg5[%c0_134, %c0_135] : memref<128x384xf32, #tpu.memory_space<vmem>>, vector<128x384xf32>
    %cst_136 = arith.constant dense<0.000000e+00> : vector<8x384xf32>
    %307 = tpu.matmul %301, %306, %cst_136 {dimension_numbers = #tpu.dot_dimension_numbers<[1], [0], [0], [1], [0, 0, 1, 1], [], []>} : vector<8x128xf32>, vector<128x384xf32>, vector<8x384xf32> -> vector<8x384xf32>
    %c0_137 = arith.constant 0 : index
    %c0_138 = arith.constant 0 : index
    %308 = vector.load %arg7[%c0_137, %c0_138] : memref<1x384xf32, #tpu.memory_space<vmem>>, vector<1x384xf32>
    %309 = vector.broadcast %308 : vector<1x384xf32> to vector<8x384xf32>
    %310 = arith.addf %307, %309 : vector<8x384xf32>
    %311 = vector.extract_strided_slice %305 {offsets = [0, 0], sizes = [8, 128], strides = [1, 1]} : vector<8x384xf32> to vector<8x128xf32>
    %312 = vector.extract_strided_slice %310 {offsets = [0, 0], sizes = [8, 128], strides = [1, 1]} : vector<8x384xf32> to vector<8x128xf32>
    %313 = arith.addf %311, %312 : vector<8x128xf32>
    %314 = arith.negf %313 : vector<8x128xf32>
    %315 = math.exp %314 : vector<8x128xf32>
    %cst_139 = arith.constant 1.000000e+00 : f32
    %316 = vector.broadcast %cst_139 : f32 to vector<8x128xf32>
    %317 = arith.addf %316, %315 : vector<8x128xf32>
    %318 = arith.divf %316, %317 : vector<8x128xf32>
    %319 = vector.extract_strided_slice %305 {offsets = [0, 128], sizes = [8, 128], strides = [1, 1]} : vector<8x384xf32> to vector<8x128xf32>
    %320 = vector.extract_strided_slice %310 {offsets = [0, 128], sizes = [8, 128], strides = [1, 1]} : vector<8x384xf32> to vector<8x128xf32>
    %321 = arith.addf %319, %320 : vector<8x128xf32>
    %322 = arith.negf %321 : vector<8x128xf32>
    %323 = math.exp %322 : vector<8x128xf32>
    %cst_140 = arith.constant 1.000000e+00 : f32
    %324 = vector.broadcast %cst_140 : f32 to vector<8x128xf32>
    %325 = arith.addf %324, %323 : vector<8x128xf32>
    %326 = arith.divf %324, %325 : vector<8x128xf32>
    %327 = vector.extract_strided_slice %305 {offsets = [0, 256], sizes = [8, 128], strides = [1, 1]} : vector<8x384xf32> to vector<8x128xf32>
    %328 = vector.extract_strided_slice %310 {offsets = [0, 256], sizes = [8, 128], strides = [1, 1]} : vector<8x384xf32> to vector<8x128xf32>
    %329 = arith.mulf %318, %328 : vector<8x128xf32>
    %330 = arith.addf %327, %329 : vector<8x128xf32>
    %331 = math.tanh %330 : vector<8x128xf32>
    %cst_141 = arith.constant 1.000000e+00 : f32
    %332 = vector.broadcast %cst_141 : f32 to vector<8x128xf32>
    %333 = arith.subf %332, %326 : vector<8x128xf32>
    %334 = arith.mulf %333, %331 : vector<8x128xf32>
    %335 = arith.mulf %326, %301 : vector<8x128xf32>
    %336 = arith.addf %334, %335 : vector<8x128xf32>
    %c0_142 = arith.constant 0 : index
    %c0_143 = arith.constant 0 : index
    %337 = vector.load %arg13[%c0_142, %c0_143] : memref<8x128xf32, #tpu.memory_space<vmem>>, vector<8x128xf32>
    tpu.vector_store %arg13[%c0_142, %c0_143], %336 {strides = array<i32>} : memref<8x128xf32, #tpu.memory_space<vmem>>, vector<8x128xf32>,
    %338 = arith.index_cast %c7_i32 : i32 to index
    %c0_144 = arith.constant 0 : index
    %c0_145 = arith.constant 0 : index
    %339 = vector.load %arg14[%338, %c0_144, %c0_145] : memref<8x8x128xf32, #tpu.memory_space<vmem>>, vector<1x8x128xf32>
    %340 = vector.shape_cast %339 : vector<1x8x128xf32> to vector<8x128xf32>
    %341 = vector.shape_cast %336 : vector<8x128xf32> to vector<1x8x128xf32>
    tpu.vector_store %arg14[%338, %c0_144, %c0_145], %341 {strides = array<i32>} : memref<8x8x128xf32, #tpu.memory_space<vmem>>, vector<1x8x128xf32>,
    %c8_i32 = arith.constant 8 : i32
    %c0_146 = arith.constant 0 : index
    %c0_147 = arith.constant 0 : index
    %c0_148 = arith.constant 0 : index
    %342 = vector.load %arg14[%c0_146, %c0_147, %c0_148] : memref<8x8x128xf32, #tpu.memory_space<vmem>>, vector<8x8x128xf32>
    %343 = vector.shape_cast %342 : vector<8x8x128xf32> to vector<64x128xf32>
    %c0_149 = arith.constant 0 : index
    %c0_150 = arith.constant 0 : index
    %344 = vector.load %arg8[%c0_149, %c0_150] : memref<128x128xf32, #tpu.memory_space<vmem>>, vector<128x128xf32>
    %cst_151 = arith.constant dense<0.000000e+00> : vector<64x128xf32>
    %345 = tpu.matmul %343, %344, %cst_151 {dimension_numbers = #tpu.dot_dimension_numbers<[1], [0], [0], [1], [0, 0, 1, 1], [], []>} : vector<64x128xf32>, vector<128x128xf32>, vector<64x128xf32> -> vector<64x128xf32>
    %c0_152 = arith.constant 0 : index
    %c0_153 = arith.constant 0 : index
    %346 = vector.load %arg9[%c0_152, %c0_153] : memref<1x128xf32, #tpu.memory_space<vmem>>, vector<1x128xf32>
    %347 = vector.broadcast %346 : vector<1x128xf32> to vector<64x128xf32>
    %348 = arith.addf %345, %347 : vector<64x128xf32>
    %349 = vector.shape_cast %348 : vector<64x128xf32> to vector<8x8x128xf32>
    %c0_154 = arith.constant 0 : index
    %c0_155 = arith.constant 0 : index
    %c0_156 = arith.constant 0 : index
    %350 = vector.load %arg10[%c0_154, %c0_155, %c0_156] : memref<8x8x128xf32, #tpu.memory_space<vmem>>, vector<8x8x128xf32>
    tpu.vector_store %arg10[%c0_154, %c0_155, %c0_156], %349 {strides = array<i32>} : memref<8x8x128xf32, #tpu.memory_space<vmem>>, vector<8x8x128xf32>,
    %c0_157 = arith.constant 0 : index
    %c0_158 = arith.constant 0 : index
    %351 = vector.load %arg13[%c0_157, %c0_158] : memref<8x128xf32, #tpu.memory_space<vmem>>, vector<8x128xf32>
    %c0_159 = arith.constant 0 : index
    %c0_160 = arith.constant 0 : index
    %352 = vector.load %arg11[%c0_159, %c0_160] : memref<8x128xf32, #tpu.memory_space<vmem>>, vector<8x128xf32>
    tpu.vector_store %arg11[%c0_159, %c0_160], %351 {strides = array<i32>} : memref<8x128xf32, #tpu.memory_space<vmem>>, vector<8x128xf32>,
    return
  }
  func.func @transform_0(%arg0: i32) -> (i32, i32, i32) {
    %c0_i32 = arith.constant 0 : i32
    %c0_i32_0 = arith.constant 0 : i32
    %c0_i32_1 = arith.constant 0 : i32
    %c0_i32_2 = arith.constant 0 : i32
    return %c0_i32, %c0_i32_0, %c0_i32_1 : i32, i32, i32
  }
  func.func @transform_1(%arg0: i32) -> (i32, i32) {
    %c0_i32 = arith.constant 0 : i32
    %c0_i32_0 = arith.constant 0 : i32
    %c0_i32_1 = arith.constant 0 : i32
    return %c0_i32, %c0_i32_0 : i32, i32
  }
  func.func @transform_2(%arg0: i32) -> (i32, i32) {
    %c0_i32 = arith.constant 0 : i32
    %c0_i32_0 = arith.constant 0 : i32
    %c0_i32_1 = arith.constant 0 : i32
    return %c0_i32, %c0_i32_0 : i32, i32
  }
  func.func @transform_3(%arg0: i32) -> (i32, i32) {
    %c0_i32 = arith.constant 0 : i32
    %c0_i32_0 = arith.constant 0 : i32
    %c0_i32_1 = arith.constant 0 : i32
    return %c0_i32, %c0_i32_0 : i32, i32
  }
  func.func @transform_4(%arg0: i32) -> (i32, i32) {
    %c0_i32 = arith.constant 0 : i32
    %c0_i32_0 = arith.constant 0 : i32
    %c0_i32_1 = arith.constant 0 : i32
    return %c0_i32, %c0_i32_0 : i32, i32
  }
  func.func @transform_5(%arg0: i32) -> (i32, i32) {
    %c0_i32 = arith.constant 0 : i32
    %c0_i32_0 = arith.constant 0 : i32
    %c0_i32_1 = arith.constant 0 : i32
    return %c0_i32, %c0_i32_0 : i32, i32
  }
  func.func @transform_6(%arg0: i32) -> (i32, i32) {
    %c0_i32 = arith.constant 0 : i32
    %c0_i32_0 = arith.constant 0 : i32
    %c0_i32_1 = arith.constant 0 : i32
    return %c0_i32, %c0_i32_0 : i32, i32
  }
  func.func @transform_7(%arg0: i32) -> (i32, i32) {
    %c0_i32 = arith.constant 0 : i32
    %c0_i32_0 = arith.constant 0 : i32
    %c0_i32_1 = arith.constant 0 : i32
    return %c0_i32, %c0_i32_0 : i32, i32
  }
  func.func @transform_8(%arg0: i32) -> (i32, i32) {
    %c0_i32 = arith.constant 0 : i32
    %c0_i32_0 = arith.constant 0 : i32
    %c0_i32_1 = arith.constant 0 : i32
    return %c0_i32, %c0_i32_0 : i32, i32
  }
  func.func @transform_9(%arg0: i32) -> (i32, i32, i32) {
    %c0_i32 = arith.constant 0 : i32
    %c0_i32_0 = arith.constant 0 : i32
    %c0_i32_1 = arith.constant 0 : i32
    %c0_i32_2 = arith.constant 0 : i32
    return %c0_i32, %c0_i32_0, %c0_i32_1 : i32, i32, i32
  }
  func.func @transform_10(%arg0: i32) -> (i32, i32) {
    %c0_i32 = arith.constant 0 : i32
    %c0_i32_0 = arith.constant 0 : i32
    %c0_i32_1 = arith.constant 0 : i32
    return %c0_i32, %c0_i32_0 : i32, i32
  }
}

</mosaic_0001>

<llo_original>
// kernel: tpu_custom_call.1
$region0: #{tpu_custom_call.1}
  #allocation0 [shape = 'u32[]', space=smem, size = 0x4, offset = 0x4, fixed_abs, tag = 'smem constant byte address 0x4 - core index']
  #allocation1 [shape = 'u32[144,128]{1,0:T(1,128)}', space=vmem, size = 0x12000, scoped, tag = 'internal scratch']
  #allocation2 [shape = 'f32[8,8,384]{2,1,0:T(8,128)}', space=vmem, size = 0x18000, scoped, tag = 'scratch operand']
  #allocation3 [shape = 'f32[8,128]{1,0:T(8,128)}', space=vmem, size = 0x1000, scoped, tag = 'scratch operand']
  #allocation4 [shape = 'f32[8,8,128]{2,1,0:T(8,128)}', space=vmem, size = 0x8000, scoped, tag = 'scratch operand']
  %s0 = inlined_call_operand.hbm [shape: f32[8,8,16], index: 0, kind: input, shape index: {}]
  %s1 = inlined_call_operand.hbm [shape: f32[8,128], index: 1, kind: input, shape index: {}]
  %s2 = inlined_call_operand.hbm [shape: f32[16,384], index: 2, kind: input, shape index: {}]
  %s3 = inlined_call_operand.hbm [shape: f32[128,384], index: 3, kind: input, shape index: {}]
  %s4 = inlined_call_operand.hbm [shape: f32[128,384], index: 4, kind: input, shape index: {}]
  %s5 = inlined_call_operand.vmem [shape: f32[1,384], index: 5, kind: input, shape index: {}]
  %s6 = inlined_call_operand.vmem [shape: f32[1,384], index: 6, kind: input, shape index: {}]
  %s7 = inlined_call_operand.hbm [shape: f32[128,128], index: 7, kind: input, shape index: {}]
  %s8 = inlined_call_operand.vmem [shape: f32[1,128], index: 8, kind: input, shape index: {}]
  %s9 = inlined_call_operand.hbm [shape: f32[8,8,128], index: 9, kind: output, shape index: {0}]
  %s10 = inlined_call_operand.hbm [shape: f32[8,128], index: 10, kind: output, shape index: {1}]
  %11 = xla_tuple %s9, %s10
  %s12 = sld [smem:[#allocation0]]
  $region78: #{tpu_custom_call.1} parent=0
    _
  %s14 = ssub.s32 1, %s12
  %s15 = scalar_select 0, %s14, %s12
  $region1: #{tpu_custom_call.1} parent=0
    #allocation5 [shape = 'u8[32768]{0}', space=vmem, size = 0x8000, scoped, tag = 'input window, operand 0, single buffered']
    #allocation6 [shape = 's32[1]{0}', space=sflag, size = 0x4, scoped, tag = 'scoped memory for tpu_custom_call.1']
    #allocation7 [shape = 's32[1]{0}', space=sflag, size = 0x4, scoped, tag = 'scoped memory for tpu_custom_call.1']
    #allocation8 [shape = 'u8[4096]{0}', space=vmem, size = 0x1000, scoped, tag = 'input window, operand 1, single buffered']
    #allocation9 [shape = 's32[1]{0}', space=sflag, size = 0x4, scoped, tag = 'scoped memory for tpu_custom_call.1']
    #allocation10 [shape = 'u8[24576]{0}', space=vmem, size = 0x6000, scoped, tag = 'input window, operand 2, single buffered']
    #allocation11 [shape = 'u8[196608]{0}', space=vmem, size = 0x30000, scoped, tag = 'input window, operand 3, single buffered']
    #allocation12 [shape = 's32[1]{0}', space=sflag, size = 0x4, scoped, tag = 'scoped memory for tpu_custom_call.1']
    #allocation13 [shape = 'u8[196608]{0}', space=vmem, size = 0x30000, scoped, tag = 'input window, operand 4, single buffered']
    #allocation14 [shape = 'u8[65536]{0}', space=vmem, size = 0x10000, scoped, tag = 'input window, operand 7, single buffered']
    #allocation15 [shape = 's32[1]{0}', space=sflag, size = 0x4, scoped, tag = 'scoped memory for tpu_custom_call.1']
    #allocation16 [shape = 'u8[32768]{0}', space=vmem, size = 0x8000, scoped, tag = 'output window, operand 0, single buffered']
    #allocation17 [shape = 'u8[4096]{0}', space=vmem, size = 0x1000, scoped, tag = 'output window, operand 1, single buffered']
    #allocation18 [shape = 's32[1]{0}', space=sflag, size = 0x4, scoped, tag = 'scoped memory for tpu_custom_call.1']
    %16 = vsyncpa [#allocation6], 0
    %17 = vsyncpa [#allocation9], 0
    %18 = vsyncpa [#allocation12], 0
    %19 = vsyncpa [#allocation15], 0
    %20 = vsyncpa [#allocation7], 0
    %21 = vsyncpa [#allocation18], 0
    // Predicated region
    $region2: #{tpu_custom_call.1} parent=1 // pred_check
      _
    $region3: #{tpu_custom_call.1} parent=1 // pred_check_branch
      %23 = sbr.rel (0) target = $region5
    $region4: #{tpu_custom_call.1} parent=1 // pred_region
      %s25 = ssub.s32 1024, 1024
      %26 = vsyncadd [#allocation6], %s25
      %s27 = sshll.u32 [#allocation5], 4
      %s28 = int_to_ptr.vmem [resolvable:$true] %s27
      %33 = dma.hbm_to_vmem [thread:$0]  %s0, 1024, %s28, [#allocation6], 128, 128, 8
    $region5: #{tpu_custom_call.1} parent=1 // pred_fallthru
      _
    // Predicated region
    $region6: #{tpu_custom_call.1} parent=1 // pred_check
      _
    $region7: #{tpu_custom_call.1} parent=1 // pred_check_branch
      %35 = sbr.rel (0) target = $region9
    $region8: #{tpu_custom_call.1} parent=1 // pred_region
      %s37 = ssub.s32 128, 128
      %38 = vsyncadd [#allocation9], %s37
      %s40 = sshll.u32 [#allocation8], 4
      %s41 = int_to_ptr.vmem [resolvable:$true] %s40
      %43 = dma.hbm_to_vmem [thread:$0]  %s1, 128, %s41, [#allocation9]
    $region9: #{tpu_custom_call.1} parent=1 // pred_fallthru
      _
    // Predicated region
    $region10: #{tpu_custom_call.1} parent=1 // pred_check
      _
    $region11: #{tpu_custom_call.1} parent=1 // pred_check_branch
      %45 = sbr.rel (0) target = $region13
    $region12: #{tpu_custom_call.1} parent=1 // pred_region
      %s47 = ssub.s32 768, 768
      %48 = vsyncadd [#allocation9], %s47
      %s49 = sshll.u32 [#allocation10], 4
      %s50 = int_to_ptr.vmem [resolvable:$true] %s49
      %55 = dma.hbm_to_vmem [thread:$0]  %s2, 768, %s50, [#allocation9], 384, 384, 24
    $region13: #{tpu_custom_call.1} parent=1 // pred_fallthru
      _
    // Predicated region
    $region14: #{tpu_custom_call.1} parent=1 // pred_check
      _
    $region15: #{tpu_custom_call.1} parent=1 // pred_check_branch
      %57 = sbr.rel (0) target = $region17
    $region16: #{tpu_custom_call.1} parent=1 // pred_region
      %s59 = ssub.s32 6144, 6144
      %60 = vsyncadd [#allocation12], %s59
      %s61 = sshll.u32 [#allocation11], 4
      %s62 = int_to_ptr.vmem [resolvable:$true] %s61
      %67 = dma.hbm_to_vmem [thread:$0]  %s3, 6144, %s62, [#allocation12], 384, 384, 24
    $region17: #{tpu_custom_call.1} parent=1 // pred_fallthru
      _
    // Predicated region
    $region18: #{tpu_custom_call.1} parent=1 // pred_check
      _
    $region19: #{tpu_custom_call.1} parent=1 // pred_check_branch
      %69 = sbr.rel (0) target = $region21
    $region20: #{tpu_custom_call.1} parent=1 // pred_region
      %s71 = ssub.s32 6144, 6144
      %72 = vsyncadd [#allocation12], %s71
      %s73 = sshll.u32 [#allocation13], 4
      %s74 = int_to_ptr.vmem [resolvable:$true] %s73
      %79 = dma.hbm_to_vmem [thread:$0]  %s4, 6144, %s74, [#allocation12], 384, 384, 24
    $region21: #{tpu_custom_call.1} parent=1 // pred_fallthru
      _
    // Predicated region
    $region22: #{tpu_custom_call.1} parent=1 // pred_check
      _
    $region23: #{tpu_custom_call.1} parent=1 // pred_check_branch
      %81 = sbr.rel (0) target = $region25
    $region24: #{tpu_custom_call.1} parent=1 // pred_region
      _
    $region25: #{tpu_custom_call.1} parent=1 // pred_fallthru
      _
    // Predicated region
    $region26: #{tpu_custom_call.1} parent=1 // pred_check
      _
    $region27: #{tpu_custom_call.1} parent=1 // pred_check_branch
      %83 = sbr.rel (0) target = $region29
    $region28: #{tpu_custom_call.1} parent=1 // pred_region
      _
    $region29: #{tpu_custom_call.1} parent=1 // pred_fallthru
      _
    // Predicated region
    $region30: #{tpu_custom_call.1} parent=1 // pred_check
      _
    $region31: #{tpu_custom_call.1} parent=1 // pred_check_branch
      %85 = sbr.rel (0) target = $region33
    $region32: #{tpu_custom_call.1} parent=1 // pred_region
      %s87 = ssub.s32 2048, 2048
      %88 = vsyncadd [#allocation15], %s87
      %s89 = sshll.u32 [#allocation14], 4
      %s90 = int_to_ptr.vmem [resolvable:$true] %s89
      %95 = dma.hbm_to_vmem [thread:$0]  %s7, 2048, %s90, [#allocation15], 128, 128, 8
    $region33: #{tpu_custom_call.1} parent=1 // pred_fallthru
      _
    // Predicated region
    $region34: #{tpu_custom_call.1} parent=1 // pred_check
      _
    $region35: #{tpu_custom_call.1} parent=1 // pred_check_branch
      %97 = sbr.rel (0) target = $region37
    $region36: #{tpu_custom_call.1} parent=1 // pred_region
      _
    $region37: #{tpu_custom_call.1} parent=1 // pred_fallthru
      _
    // Predicated region
    $region38: #{tpu_custom_call.1} parent=1 // pred_check
      _
    $region39: #{tpu_custom_call.1} parent=1 // pred_check_branch
      %99 = sbr.rel (0) target = $region41
    $region40: #{tpu_custom_call.1} parent=1 // pred_region
      %100 = dma.done [#allocation6], 1024
    $region41: #{tpu_custom_call.1} parent=1 // pred_fallthru
      _
    // Predicated region
    $region42: #{tpu_custom_call.1} parent=1 // pred_check
      _
    $region43: #{tpu_custom_call.1} parent=1 // pred_check_branch
      %102 = sbr.rel (0) target = $region45
    $region44: #{tpu_custom_call.1} parent=1 // pred_region
      %103 = dma.done [#allocation9], 128
    $region45: #{tpu_custom_call.1} parent=1 // pred_fallthru
      _
    // Predicated region
    $region46: #{tpu_custom_call.1} parent=1 // pred_check
      _
    $region47: #{tpu_custom_call.1} parent=1 // pred_check_branch
      %105 = sbr.rel (0) target = $region49
    $region48: #{tpu_custom_call.1} parent=1 // pred_region
      %106 = dma.done [#allocation9], 768
    $region49: #{tpu_custom_call.1} parent=1 // pred_fallthru
      _
    // Predicated region
    $region50: #{tpu_custom_call.1} parent=1 // pred_check
      _
    $region51: #{tpu_custom_call.1} parent=1 // pred_check_branch
      %108 = sbr.rel (0) target = $region53
    $region52: #{tpu_custom_call.1} parent=1 // pred_region
      %109 = dma.done [#allocation12], 6144
    $region53: #{tpu_custom_call.1} parent=1 // pred_fallthru
      _
    // Predicated region
    $region54: #{tpu_custom_call.1} parent=1 // pred_check
      _
    $region55: #{tpu_custom_call.1} parent=1 // pred_check_branch
      %111 = sbr.rel (0) target = $region57
    $region56: #{tpu_custom_call.1} parent=1 // pred_region
      %112 = dma.done [#allocation12], 6144
    $region57: #{tpu_custom_call.1} parent=1 // pred_fallthru
      _
    // Predicated region
    $region58: #{tpu_custom_call.1} parent=1 // pred_check
      _
    $region59: #{tpu_custom_call.1} parent=1 // pred_check_branch
      %114 = sbr.rel (0) target = $region61
    $region60: #{tpu_custom_call.1} parent=1 // pred_region
      %115 = dma.done [#allocation15], 2048
    $region61: #{tpu_custom_call.1} parent=1 // pred_fallthru
      _
    %v116 = vld [vmem:[#allocation5] sm:$0xff]
    %v117 = vld [vmem:[#allocation5 + $0x8] sm:$0xff]
    %v118 = vld [vmem:[#allocation5 + $0x10] sm:$0xff]
    %v119 = vld [vmem:[#allocation5 + $0x18] sm:$0xff]
    %v120 = vld [vmem:[#allocation5 + $0x20] sm:$0xff]
    %v121 = vld [vmem:[#allocation5 + $0x28] sm:$0xff]
    %v122 = vld [vmem:[#allocation5 + $0x30] sm:$0xff]
    %v123 = vld [vmem:[#allocation5 + $0x38] sm:$0xff]
    %v124 = vld [vmem:[#allocation10] sm:$0xff]
    %v125 = vld [vmem:[#allocation10 + $0x8] sm:$0xff]
    %v126 = vld [vmem:[#allocation10 + $0x10] sm:$0xff]
    %v127 = vld [vmem:[#allocation10 + $0x18] sm:$0xff]
    %v128 = vld [vmem:[#allocation10 + $0x20] sm:$0xff]
    %v129 = vld [vmem:[#allocation10 + $0x28] sm:$0xff]
    %vm130 = vcmask 130048
    %v132 = vsel %vm130, %v116, 0
    %v135 = vsel %vm130, %v117, 0
    %v138 = vsel %vm130, %v118, 0
    %v141 = vsel %vm130, %v119, 0
    %v144 = vsel %vm130, %v120, 0
    %v147 = vsel %vm130, %v121, 0
    %v150 = vsel %vm130, %v122, 0
    %v153 = vsel %vm130, %v123, 0
    %155 = vmatprep.subr.mxu0 0.0
    %156 = vmatpush1.msra.mxu0 0.0
    %157 = vmatprep.subr.mxu0 0.0
    %158 = vmatpush1.msra.mxu0 0.0
    %159 = vmatprep.subr.mxu0 0.0
    %160 = vmatpush1.msra.mxu0 0.0
    %161 = vmatprep.subr.mxu0 0.0
    %162 = vmatpush1.msra.mxu0 0.0
    %163 = vmatprep.subr.mxu0 0.0
    %164 = vmatpush1.msra.mxu0 0.0
    %165 = vmatprep.subr.mxu0 0.0
    %166 = vmatpush1.msra.mxu0 0.0
    %167 = vmatprep.subr.mxu0 0.0
    %168 = vmatpush1.msra.mxu0 0.0
    %169 = vmatprep.subr.mxu0 0.0
    %170 = vmatpush1.msra.mxu0 0.0
    %171 = vmatprep.subr.mxu0 0.0
    %172 = vmatpush1.msra.mxu0 0.0
    %173 = vmatprep.subr.mxu0 0.0
    %174 = vmatpush1.msra.mxu0 0.0
    %175 = vmatprep.subr.mxu0 0.0
    %176 = vmatpush1.msra.mxu0 0.0
    %177 = vmatprep.subr.mxu0 0.0
    %178 = vmatpush1.msra.mxu0 0.0
    %179 = vmatprep.subr.mxu0 0.0
    %180 = vmatpush1.msra.mxu0 0.0
    %181 = vmatprep.subr.mxu0 0.0
    %182 = vmatpush1.msra.mxu0 0.0
    %183 = vmatprep.subr.mxu0 %v128
    %184 = vmatpush1.msra.mxu0 %v127
    %185 = vmatprep.subr.mxu0 %v125
    %186 = vmatpush1.msra.mxu0 %v124
    %187 = vmatprep.subr.mxu0 0.0
    %188 = vmatpush2.msra.mxu0 0.0
    %189 = vmatprep.subr.mxu0 0.0
    %190 = vmatpush2.msra.mxu0 0.0
    %191 = vmatprep.subr.mxu0 0.0
    %192 = vmatpush2.msra.mxu0 0.0
    %193 = vmatprep.subr.mxu0 0.0
    %194 = vmatpush2.msra.mxu0 0.0
    %195 = vmatprep.subr.mxu0 0.0
    %196 = vmatpush2.msra.mxu0 0.0
    %197 = vmatprep.subr.mxu0 0.0
    %198 = vmatpush2.msra.mxu0 0.0
    %199 = vmatprep.subr.mxu0 0.0
    %200 = vmatpush2.msra.mxu0 0.0
    %201 = vmatprep.subr.mxu0 0.0
    %202 = vmatpush2.msra.mxu0 0.0
    %203 = vmatprep.subr.mxu0 0.0
    %204 = vmatpush2.msra.mxu0 0.0
    %205 = vmatprep.subr.mxu0 0.0
    %206 = vmatpush2.msra.mxu0 0.0
    %207 = vmatprep.subr.mxu0 0.0
    %208 = vmatpush2.msra.mxu0 0.0
    %209 = vmatprep.subr.mxu0 0.0
    %210 = vmatpush2.msra.mxu0 0.0
    %211 = vmatprep.subr.mxu0 0.0
    %212 = vmatpush2.msra.mxu0 0.0
    %213 = vmatprep.subr.mxu0 0.0
    %214 = vmatpush2.msra.mxu0 0.0
    %215 = vmatprep.subr.mxu0 0.0
    %216 = vmatpush2.msra.mxu0 0.0
    %217 = vmatprep.subr.mxu0 0.0
    %218 = vmatpush2.msra.mxu0 0.0
    %219 = vmatprep.mubr.f32.mxu0 0.0
    %220 = vmatmul.mubr.f32.gmra.mxu0 %v132
    %v221 = vpop.f32.mrf.mxu0
    %v222 = vadd.f32 0.0, %v221
    %v223 = vpop.f32.mrf.mxu0
    %v224 = vadd.f32 0.0, %v223
    %225 = vmatprep.mubr.f32.mxu0 0.0
    %226 = vmatmul.mubr.f32.gmra.mxu0 %v135
    %v227 = vpop.f32.mrf.mxu0
    %v228 = vadd.f32 0.0, %v227
    %v229 = vpop.f32.mrf.mxu0
    %v230 = vadd.f32 0.0, %v229
    %231 = vmatprep.mubr.f32.mxu0 0.0
    %232 = vmatmul.mubr.f32.gmra.mxu0 %v138
    %v233 = vpop.f32.mrf.mxu0
    %v234 = vadd.f32 0.0, %v233
    %v235 = vpop.f32.mrf.mxu0
    %v236 = vadd.f32 0.0, %v235
    %237 = vmatprep.mubr.f32.mxu0 0.0
    %238 = vmatmul.mubr.f32.gmra.mxu0 %v141
    %v239 = vpop.f32.mrf.mxu0
    %v240 = vadd.f32 0.0, %v239
    %v241 = vpop.f32.mrf.mxu0
    %v242 = vadd.f32 0.0, %v241
    %243 = vmatprep.mubr.f32.mxu0 0.0
    %244 = vmatmul.mubr.f32.gmra.mxu0 %v144
    %v245 = vpop.f32.mrf.mxu0
    %v246 = vadd.f32 0.0, %v245
    %v247 = vpop.f32.mrf.mxu0
    %v248 = vadd.f32 0.0, %v247
    %249 = vmatprep.mubr.f32.mxu0 0.0
    %250 = vmatmul.mubr.f32.gmra.mxu0 %v147
    %v251 = vpop.f32.mrf.mxu0
    %v252 = vadd.f32 0.0, %v251
    %v253 = vpop.f32.mrf.mxu0
    %v254 = vadd.f32 0.0, %v253
    %255 = vmatprep.mubr.f32.mxu0 0.0
    %256 = vmatmul.mubr.f32.gmra.mxu0 %v150
    %v257 = vpop.f32.mrf.mxu0
    %v258 = vadd.f32 0.0, %v257
    %v259 = vpop.f32.mrf.mxu0
    %v260 = vadd.f32 0.0, %v259
    %261 = vmatprep.mubr.f32.mxu0 0.0
    %262 = vmatmul.mubr.f32.gmra.mxu0 %v153
    %v263 = vpop.f32.mrf.mxu0
    %v264 = vadd.f32 0.0, %v263
    %v265 = vpop.f32.mrf.mxu0
    %v266 = vadd.f32 0.0, %v265
    %267 = vdwg.mxu0
    %268 = vmatprep.subr.mxu0 0.0
    %269 = vmatpush1.msra.mxu0 0.0
    %270 = vmatprep.subr.mxu0 0.0
    %271 = vmatpush1.msra.mxu0 0.0
    %272 = vmatprep.subr.mxu0 0.0
    %273 = vmatpush1.msra.mxu0 0.0
    %274 = vmatprep.subr.mxu0 0.0
    %275 = vmatpush1.msra.mxu0 0.0
    %276 = vmatprep.subr.mxu0 0.0
    %277 = vmatpush1.msra.mxu0 0.0
    %278 = vmatprep.subr.mxu0 0.0
    %279 = vmatpush1.msra.mxu0 0.0
    %280 = vmatprep.subr.mxu0 0.0
    %281 = vmatpush1.msra.mxu0 0.0
    %282 = vmatprep.subr.mxu0 0.0
    %283 = vmatpush1.msra.mxu0 0.0
    %284 = vmatprep.subr.mxu0 0.0
    %285 = vmatpush1.msra.mxu0 0.0
    %286 = vmatprep.subr.mxu0 0.0
    %287 = vmatpush1.msra.mxu0 0.0
    %288 = vmatprep.subr.mxu0 0.0
    %289 = vmatpush1.msra.mxu0 0.0
    %290 = vmatprep.subr.mxu0 0.0
    %291 = vmatpush1.msra.mxu0 0.0
    %292 = vmatprep.subr.mxu0 0.0
    %293 = vmatpush1.msra.mxu0 0.0
    %294 = vmatprep.subr.mxu0 0.0
    %295 = vmatpush1.msra.mxu0 0.0
    %296 = vmatprep.subr.mxu0 0.0
    %297 = vmatpush1.msra.mxu0 %v129
    %298 = vmatprep.subr.mxu0 0.0
    %299 = vmatpush1.msra.mxu0 %v126
    %300 = vmatprep.subr.mxu0 0.0
    %301 = vmatpush2.msra.mxu0 0.0
    %302 = vmatprep.subr.mxu0 0.0
    %303 = vmatpush2.msra.mxu0 0.0
    %304 = vmatprep.subr.mxu0 0.0
    %305 = vmatpush2.msra.mxu0 0.0
    %306 = vmatprep.subr.mxu0 0.0
    %307 = vmatpush2.msra.mxu0 0.0
    %308 = vmatprep.subr.mxu0 0.0
    %309 = vmatpush2.msra.mxu0 0.0
    %310 = vmatprep.subr.mxu0 0.0
    %311 = vmatpush2.msra.mxu0 0.0
    %312 = vmatprep.subr.mxu0 0.0
    %313 = vmatpush2.msra.mxu0 0.0
    %314 = vmatprep.subr.mxu0 0.0
    %315 = vmatpush2.msra.mxu0 0.0
    %316 = vmatprep.subr.mxu0 0.0
    %317 = vmatpush2.msra.mxu0 0.0
    %318 = vmatprep.subr.mxu0 0.0
    %319 = vmatpush2.msra.mxu0 0.0
    %320 = vmatprep.subr.mxu0 0.0
    %321 = vmatpush2.msra.mxu0 0.0
    %322 = vmatprep.subr.mxu0 0.0
    %323 = vmatpush2.msra.mxu0 0.0
    %324 = vmatprep.subr.mxu0 0.0
    %325 = vmatpush2.msra.mxu0 0.0
    %326 = vmatprep.subr.mxu0 0.0
    %327 = vmatpush2.msra.mxu0 0.0
    %328 = vmatprep.subr.mxu0 0.0
    %329 = vmatpush2.msra.mxu0 0.0
    %330 = vmatprep.subr.mxu0 0.0
    %331 = vmatpush2.msra.mxu0 0.0
    %332 = vmatprep.mubr.f32.mxu0 0.0
    %333 = vmatmul.mubr.f32.gmra.mxu0 %v132
    %v334 = vpop.f32.mrf.mxu0
    %v335 = vadd.f32 0.0, %v334
    %v336 = vpop.f32.mrf.mxu0
    %337 = vmatprep.mubr.f32.mxu0 0.0
    %338 = vmatmul.mubr.f32.gmra.mxu0 %v135
    %v339 = vpop.f32.mrf.mxu0
    %v340 = vadd.f32 0.0, %v339
    %v341 = vpop.f32.mrf.mxu0
    %342 = vmatprep.mubr.f32.mxu0 0.0
    %343 = vmatmul.mubr.f32.gmra.mxu0 %v138
    %v344 = vpop.f32.mrf.mxu0
    %v345 = vadd.f32 0.0, %v344
    %v346 = vpop.f32.mrf.mxu0
    %347 = vmatprep.mubr.f32.mxu0 0.0
    %348 = vmatmul.mubr.f32.gmra.mxu0 %v141
    %v349 = vpop.f32.mrf.mxu0
    %v350 = vadd.f32 0.0, %v349
    %v351 = vpop.f32.mrf.mxu0
    %352 = vmatprep.mubr.f32.mxu0 0.0
    %353 = vmatmul.mubr.f32.gmra.mxu0 %v144
    %v354 = vpop.f32.mrf.mxu0
    %v355 = vadd.f32 0.0, %v354
    %v356 = vpop.f32.mrf.mxu0
    %357 = vmatprep.mubr.f32.mxu0 0.0
    %358 = vmatmul.mubr.f32.gmra.mxu0 %v147
    %v359 = vpop.f32.mrf.mxu0
    %v360 = vadd.f32 0.0, %v359
    %v361 = vpop.f32.mrf.mxu0
    %362 = vmatprep.mubr.f32.mxu0 0.0
    %363 = vmatmul.mubr.f32.gmra.mxu0 %v150
    %v364 = vpop.f32.mrf.mxu0
    %v365 = vadd.f32 0.0, %v364
    %v366 = vpop.f32.mrf.mxu0
    %367 = vmatprep.mubr.f32.mxu0 0.0
    %368 = vmatmul.mubr.f32.gmra.mxu0 %v153
    %v369 = vpop.f32.mrf.mxu0
    %v370 = vadd.f32 0.0, %v369
    %v371 = vpop.f32.mrf.mxu0
    %372 = vdwg.mxu0
    %373 = vst [vmem:[#allocation2] sm:$0xff] %v222
    %374 = vst [vmem:[#allocation2 + $0x8] sm:$0xff] %v224
    %375 = vst [vmem:[#allocation2 + $0x10] sm:$0xff] %v335
    %376 = vst [vmem:[#allocation2 + $0x18] sm:$0xff] %v228
    %377 = vst [vmem:[#allocation2 + $0x20] sm:$0xff] %v230
    %378 = vst [vmem:[#allocation2 + $0x28] sm:$0xff] %v340
    %379 = vst [vmem:[#allocation2 + $0x30] sm:$0xff] %v234
    %380 = vst [vmem:[#allocation2 + $0x38] sm:$0xff] %v236
    %381 = vst [vmem:[#allocation2 + $0x40] sm:$0xff] %v345
    %382 = vst [vmem:[#allocation2 + $0x48] sm:$0xff] %v240
    %383 = vst [vmem:[#allocation2 + $0x50] sm:$0xff] %v242
    %384 = vst [vmem:[#allocation2 + $0x58] sm:$0xff] %v350
    %385 = vst [vmem:[#allocation2 + $0x60] sm:$0xff] %v246
    %386 = vst [vmem:[#allocation2 + $0x68] sm:$0xff] %v248
    %387 = vst [vmem:[#allocation2 + $0x70] sm:$0xff] %v355
    %388 = vst [vmem:[#allocation2 + $0x78] sm:$0xff] %v252
    %389 = vst [vmem:[#allocation2 + $0x80] sm:$0xff] %v254
    %390 = vst [vmem:[#allocation2 + $0x88] sm:$0xff] %v360
    %391 = vst [vmem:[#allocation2 + $0x90] sm:$0xff] %v258
    %392 = vst [vmem:[#allocation2 + $0x98] sm:$0xff] %v260
    %393 = vst [vmem:[#allocation2 + $0xa0] sm:$0xff] %v365
    %394 = vst [vmem:[#allocation2 + $0xa8] sm:$0xff] %v264
    %395 = vst [vmem:[#allocation2 + $0xb0] sm:$0xff] %v266
    %396 = vst [vmem:[#allocation2 + $0xb8] sm:$0xff] %v370
    %v397 = vld [vmem:[#allocation8] sm:$0xff]
    %v398 = vld [vmem:[#allocation11] sm:$0xff]
    %v399 = vld [vmem:[#allocation11 + $0x8] sm:$0xff]
    %v400 = vld [vmem:[#allocation11 + $0x10] sm:$0xff]
    %v401 = vld [vmem:[#allocation11 + $0x18] sm:$0xff]
    %v402 = vld [vmem:[#allocation11 + $0x20] sm:$0xff]
    %v403 = vld [vmem:[#allocation11 + $0x28] sm:$0xff]
    %v404 = vld [vmem:[#allocation11 + $0x30] sm:$0xff]
    %v405 = vld [vmem:[#allocation11 + $0x38] sm:$0xff]
    %v406 = vld [vmem:[#allocation11 + $0x40] sm:$0xff]
    %v407 = vld [vmem:[#allocation11 + $0x48] sm:$0xff]
    %v408 = vld [vmem:[#allocation11 + $0x50] sm:$0xff]
    %v409 = vld [vmem:[#allocation11 + $0x58] sm:$0xff]
    %v410 = vld [vmem:[#allocation11 + $0x60] sm:$0xff]
    %v411 = vld [vmem:[#allocation11 + $0x68] sm:$0xff]
    %v412 = vld [vmem:[#allocation11 + $0x70] sm:$0xff]
    %v413 = vld [vmem:[#allocation11 + $0x78] sm:$0xff]
    %v414 = vld [vmem:[#allocation11 + $0x80] sm:$0xff]
    %v415 = vld [vmem:[#allocation11 + $0x88] sm:$0xff]
    %v416 = vld [vmem:[#allocation11 + $0x90] sm:$0xff]
    %v417 = vld [vmem:[#allocation11 + $0x98] sm:$0xff]
    %v418 = vld [vmem:[#allocation11 + $0xa0] sm:$0xff]
    %v419 = vld [vmem:[#allocation11 + $0xa8] sm:$0xff]
    %v420 = vld [vmem:[#allocation11 + $0xb0] sm:$0xff]
    %v421 = vld [vmem:[#allocation11 + $0xb8] sm:$0xff]
    %v422 = vld [vmem:[#allocation11 + $0xc0] sm:$0xff]
    %v423 = vld [vmem:[#allocation11 + $0xc8] sm:$0xff]
    %v424 = vld [vmem:[#allocation11 + $0xd0] sm:$0xff]
    %v425 = vld [vmem:[#allocation11 + $0xd8] sm:$0xff]
    %v426 = vld [vmem:[#allocation11 + $0xe0] sm:$0xff]
    %v427 = vld [vmem:[#allocation11 + $0xe8] sm:$0xff]
    %v428 = vld [vmem:[#allocation11 + $0xf0] sm:$0xff]
    %v429 = vld [vmem:[#allocation11 + $0xf8] sm:$0xff]
    %v430 = vld [vmem:[#allocation11 + $0x100] sm:$0xff]
    %v431 = vld [vmem:[#allocation11 + $0x108] sm:$0xff]
    %v432 = vld [vmem:[#allocation11 + $0x110] sm:$0xff]
    %v433 = vld [vmem:[#allocation11 + $0x118] sm:$0xff]
    %v434 = vld [vmem:[#allocation11 + $0x120] sm:$0xff]
    %v435 = vld [vmem:[#allocation11 + $0x128] sm:$0xff]
    %v436 = vld [vmem:[#allocation11 + $0x130] sm:$0xff]
    %v437 = vld [vmem:[#allocation11 + $0x138] sm:$0xff]
    %v438 = vld [vmem:[#allocation11 + $0x140] sm:$0xff]
    %v439 = vld [vmem:[#allocation11 + $0x148] sm:$0xff]
    %v440 = vld [vmem:[#allocation11 + $0x150] sm:$0xff]
    %v441 = vld [vmem:[#allocation11 + $0x158] sm:$0xff]
    %v442 = vld [vmem:[#allocation11 + $0x160] sm:$0xff]
    %v443 = vld [vmem:[#allocation11 + $0x168] sm:$0xff]
    %v444 = vld [vmem:[#allocation11 + $0x170] sm:$0xff]
    %v445 = vld [vmem:[#allocation11 + $0x178] sm:$0xff]
    %v446 = vld [vmem:[%s5] sm:$0x7]
    %v448 = vlaneseq
    %v449 = vshrl.u32 %v448, 7
    %v450 = vsub.s32 0, %v449
    %v451 = vrot.slane %v446, %v450
    %v452 = vlaneseq
    %v453 = vshrl.u32 %v452, 7
    %v454 = vsub.s32 1, %v453
    %v455 = vrot.slane %v446, %v454
    %v456 = vlaneseq
    %v457 = vshrl.u32 %v456, 7
    %v458 = vsub.s32 2, %v457
    %v459 = vrot.slane %v446, %v458
    %463 = vmatprep.subr.mxu0 %v444
    %464 = vmatpush1.msra.mxu0 %v443
    %465 = vmatprep.subr.mxu0 %v441
    %466 = vmatpush1.msra.mxu0 %v440
    %467 = vmatprep.subr.mxu0 %v438
    %468 = vmatpush1.msra.mxu0 %v437
    %469 = vmatprep.subr.mxu0 %v435
    %470 = vmatpush1.msra.mxu0 %v434
    %471 = vmatprep.subr.mxu0 %v432
    %472 = vmatpush1.msra.mxu0 %v431
    %473 = vmatprep.subr.mxu0 %v429
    %474 = vmatpush1.msra.mxu0 %v428
    %475 = vmatprep.subr.mxu0 %v426
    %476 = vmatpush1.msra.mxu0 %v425
    %477 = vmatprep.subr.mxu0 %v423
    %478 = vmatpush1.msra.mxu0 %v422
    %479 = vmatprep.subr.mxu0 %v420
    %480 = vmatpush1.msra.mxu0 %v419
    %481 = vmatprep.subr.mxu0 %v417
    %482 = vmatpush1.msra.mxu0 %v416
    %483 = vmatprep.subr.mxu0 %v414
    %484 = vmatpush1.msra.mxu0 %v413
    %485 = vmatprep.subr.mxu0 %v411
    %486 = vmatpush1.msra.mxu0 %v410
    %487 = vmatprep.subr.mxu0 %v408
    %488 = vmatpush1.msra.mxu0 %v407
    %489 = vmatprep.subr.mxu0 %v405
    %490 = vmatpush1.msra.mxu0 %v404
    %491 = vmatprep.subr.mxu0 %v402
    %492 = vmatpush1.msra.mxu0 %v401
    %493 = vmatprep.subr.mxu0 %v399
    %494 = vmatpush1.msra.mxu0 %v398
    %495 = vmatprep.subr.mxu0 0.0
    %496 = vmatpush2.msra.mxu0 0.0
    %497 = vmatprep.subr.mxu0 0.0
    %498 = vmatpush2.msra.mxu0 0.0
    %499 = vmatprep.subr.mxu0 0.0
    %500 = vmatpush2.msra.mxu0 0.0
    %501 = vmatprep.subr.mxu0 0.0
    %502 = vmatpush2.msra.mxu0 0.0
    %503 = vmatprep.subr.mxu0 0.0
    %504 = vmatpush2.msra.mxu0 0.0
    %505 = vmatprep.subr.mxu0 0.0
    %506 = vmatpush2.msra.mxu0 0.0
    %507 = vmatprep.subr.mxu0 0.0
    %508 = vmatpush2.msra.mxu0 0.0
    %509 = vmatprep.subr.mxu0 0.0
    %510 = vmatpush2.msra.mxu0 0.0
    %511 = vmatprep.subr.mxu0 0.0
    %512 = vmatpush2.msra.mxu0 0.0
    %513 = vmatprep.subr.mxu0 0.0
    %514 = vmatpush2.msra.mxu0 0.0
    %515 = vmatprep.subr.mxu0 0.0
    %516 = vmatpush2.msra.mxu0 0.0
    %517 = vmatprep.subr.mxu0 0.0
    %518 = vmatpush2.msra.mxu0 0.0
    %519 = vmatprep.subr.mxu0 0.0
    %520 = vmatpush2.msra.mxu0 0.0
    %521 = vmatprep.subr.mxu0 0.0
    %522 = vmatpush2.msra.mxu0 0.0
    %523 = vmatprep.subr.mxu0 0.0
    %524 = vmatpush2.msra.mxu0 0.0
    %525 = vmatprep.subr.mxu0 0.0
    %526 = vmatpush2.msra.mxu0 0.0
    %527 = vmatprep.mubr.f32.mxu0 0.0
    %528 = vmatmul.mubr.f32.gmra.mxu0 %v397
    %v529 = vpop.f32.mrf.mxu0
    %v530 = vadd.f32 %v451, %v529
    %v531 = vpop.f32.mrf.mxu0
    %v532 = vadd.f32 %v455, %v531
    %533 = vdwg.mxu0
    %534 = vmatprep.subr.mxu0 0.0
    %535 = vmatpush1.msra.mxu0 %v445
    %536 = vmatprep.subr.mxu0 0.0
    %537 = vmatpush1.msra.mxu0 %v442
    %538 = vmatprep.subr.mxu0 0.0
    %539 = vmatpush1.msra.mxu0 %v439
    %540 = vmatprep.subr.mxu0 0.0
    %541 = vmatpush1.msra.mxu0 %v436
    %542 = vmatprep.subr.mxu0 0.0
    %543 = vmatpush1.msra.mxu0 %v433
    %544 = vmatprep.subr.mxu0 0.0
    %545 = vmatpush1.msra.mxu0 %v430
    %546 = vmatprep.subr.mxu0 0.0
    %547 = vmatpush1.msra.mxu0 %v427
    %548 = vmatprep.subr.mxu0 0.0
    %549 = vmatpush1.msra.mxu0 %v424
    %550 = vmatprep.subr.mxu0 0.0
    %551 = vmatpush1.msra.mxu0 %v421
    %552 = vmatprep.subr.mxu0 0.0
    %553 = vmatpush1.msra.mxu0 %v418
    %554 = vmatprep.subr.mxu0 0.0
    %555 = vmatpush1.msra.mxu0 %v415
    %556 = vmatprep.subr.mxu0 0.0
    %557 = vmatpush1.msra.mxu0 %v412
    %558 = vmatprep.subr.mxu0 0.0
    %559 = vmatpush1.msra.mxu0 %v409
    %560 = vmatprep.subr.mxu0 0.0
    %561 = vmatpush1.msra.mxu0 %v406
    %562 = vmatprep.subr.mxu0 0.0
    %563 = vmatpush1.msra.mxu0 %v403
    %564 = vmatprep.subr.mxu0 0.0
    %565 = vmatpush1.msra.mxu0 %v400
    %566 = vmatprep.subr.mxu0 0.0
    %567 = vmatpush2.msra.mxu0 0.0
    %568 = vmatprep.subr.mxu0 0.0
    %569 = vmatpush2.msra.mxu0 0.0
    %570 = vmatprep.subr.mxu0 0.0
    %571 = vmatpush2.msra.mxu0 0.0
    %572 = vmatprep.subr.mxu0 0.0
    %573 = vmatpush2.msra.mxu0 0.0
    %574 = vmatprep.subr.mxu0 0.0
    %575 = vmatpush2.msra.mxu0 0.0
    %576 = vmatprep.subr.mxu0 0.0
    %577 = vmatpush2.msra.mxu0 0.0
    %578 = vmatprep.subr.mxu0 0.0
    %579 = vmatpush2.msra.mxu0 0.0
    %580 = vmatprep.subr.mxu0 0.0
    %581 = vmatpush2.msra.mxu0 0.0
    %582 = vmatprep.subr.mxu0 0.0
    %583 = vmatpush2.msra.mxu0 0.0
    %584 = vmatprep.subr.mxu0 0.0
    %585 = vmatpush2.msra.mxu0 0.0
    %586 = vmatprep.subr.mxu0 0.0
    %587 = vmatpush2.msra.mxu0 0.0
    %588 = vmatprep.subr.mxu0 0.0
    %589 = vmatpush2.msra.mxu0 0.0
    %590 = vmatprep.subr.mxu0 0.0
    %591 = vmatpush2.msra.mxu0 0.0
    %592 = vmatprep.subr.mxu0 0.0
    %593 = vmatpush2.msra.mxu0 0.0
    %594 = vmatprep.subr.mxu0 0.0
    %595 = vmatpush2.msra.mxu0 0.0
    %596 = vmatprep.subr.mxu0 0.0
    %597 = vmatpush2.msra.mxu0 0.0
    %598 = vmatprep.mubr.f32.mxu0 0.0
    %599 = vmatmul.mubr.f32.gmra.mxu0 %v397
    %v600 = vpop.f32.mrf.mxu0
    %v601 = vadd.f32 %v459, %v600
    %v602 = vpop.f32.mrf.mxu0
    %603 = vdwg.mxu0
    %604 = vst [vmem:[#allocation3] sm:$0xff] %v397
    %v605 = vld [vmem:[#allocation3] sm:$0xff]
    %v606 = vld [vmem:[#allocation2] sm:$0xff]
    %v607 = vld [vmem:[#allocation2 + $0x8] sm:$0xff]
    %v608 = vld [vmem:[#allocation2 + $0x10] sm:$0xff]
    %v609 = vadd.f32 %v606, %v530
    %v610 = vadd.f32 %v607, %v532
    %v611 = vadd.f32 %v608, %v601
    %v612 = vld [vmem:[#allocation13] sm:$0xff]
    %v613 = vld [vmem:[#allocation13 + $0x8] sm:$0xff]
    %v614 = vld [vmem:[#allocation13 + $0x10] sm:$0xff]
    %v615 = vld [vmem:[#allocation13 + $0x18] sm:$0xff]
    %v616 = vld [vmem:[#allocation13 + $0x20] sm:$0xff]
    %v617 = vld [vmem:[#allocation13 + $0x28] sm:$0xff]
    %v618 = vld [vmem:[#allocation13 + $0x30] sm:$0xff]
    %v619 = vld [vmem:[#allocation13 + $0x38] sm:$0xff]
    %v620 = vld [vmem:[#allocation13 + $0x40] sm:$0xff]
    %v621 = vld [vmem:[#allocation13 + $0x48] sm:$0xff]
    %v622 = vld [vmem:[#allocation13 + $0x50] sm:$0xff]
    %v623 = vld [vmem:[#allocation13 + $0x58] sm:$0xff]
    %v624 = vld [vmem:[#allocation13 + $0x60] sm:$0xff]
    %v625 = vld [vmem:[#allocation13 + $0x68] sm:$0xff]
    %v626 = vld [vmem:[#allocation13 + $0x70] sm:$0xff]
    %v627 = vld [vmem:[#allocation13 + $0x78] sm:$0xff]
    %v628 = vld [vmem:[#allocation13 + $0x80] sm:$0xff]
    %v629 = vld [vmem:[#allocation13 + $0x88] sm:$0xff]
    %v630 = vld [vmem:[#allocation13 + $0x90] sm:$0xff]
    %v631 = vld [vmem:[#allocation13 + $0x98] sm:$0xff]
    %v632 = vld [vmem:[#allocation13 + $0xa0] sm:$0xff]
    %v633 = vld [vmem:[#allocation13 + $0xa8] sm:$0xff]
    %v634 = vld [vmem:[#allocation13 + $0xb0] sm:$0xff]
    %v635 = vld [vmem:[#allocation13 + $0xb8] sm:$0xff]
    %v636 = vld [vmem:[#allocation13 + $0xc0] sm:$0xff]
    %v637 = vld [vmem:[#allocation13 + $0xc8] sm:$0xff]
    %v638 = vld [vmem:[#allocation13 + $0xd0] sm:$0xff]
    %v639 = vld [vmem:[#allocation13 + $0xd8] sm:$0xff]
    %v640 = vld [vmem:[#allocation13 + $0xe0] sm:$0xff]
    %v641 = vld [vmem:[#allocation13 + $0xe8] sm:$0xff]
    %v642 = vld [vmem:[#allocation13 + $0xf0] sm:$0xff]
    %v643 = vld [vmem:[#allocation13 + $0xf8] sm:$0xff]
    %v644 = vld [vmem:[#allocation13 + $0x100] sm:$0xff]
    %v645 = vld [vmem:[#allocation13 + $0x108] sm:$0xff]
    %v646 = vld [vmem:[#allocation13 + $0x110] sm:$0xff]
    %v647 = vld [vmem:[#allocation13 + $0x118] sm:$0xff]
    %v648 = vld [vmem:[#allocation13 + $0x120] sm:$0xff]
    %v649 = vld [vmem:[#allocation13 + $0x128] sm:$0xff]
    %v650 = vld [vmem:[#allocation13 + $0x130] sm:$0xff]
    %v651 = vld [vmem:[#allocation13 + $0x138] sm:$0xff]
    %v652 = vld [vmem:[#allocation13 + $0x140] sm:$0xff]
    %v653 = vld [vmem:[#allocation13 + $0x148] sm:$0xff]
    %v654 = vld [vmem:[#allocation13 + $0x150] sm:$0xff]
    %v655 = vld [vmem:[#allocation13 + $0x158] sm:$0xff]
    %v656 = vld [vmem:[#allocation13 + $0x160] sm:$0xff]
    %v657 = vld [vmem:[#allocation13 + $0x168] sm:$0xff]
    %v658 = vld [vmem:[#allocation13 + $0x170] sm:$0xff]
    %v659 = vld [vmem:[#allocation13 + $0x178] sm:$0xff]
    %v660 = vld [vmem:[%s6] sm:$0x7]
    %v662 = vlaneseq
    %v663 = vshrl.u32 %v662, 7
    %v664 = vsub.s32 0, %v663
    %v665 = vrot.slane %v660, %v664
    %v666 = vlaneseq
    %v667 = vshrl.u32 %v666, 7
    %v668 = vsub.s32 1, %v667
    %v669 = vrot.slane %v660, %v668
    %v670 = vlaneseq
    %v671 = vshrl.u32 %v670, 7
    %v672 = vsub.s32 2, %v671
    %v673 = vrot.slane %v660, %v672
    %677 = vmatprep.subr.mxu0 %v658
    %678 = vmatpush1.msra.mxu0 %v657
    %679 = vmatprep.subr.mxu0 %v655
    %680 = vmatpush1.msra.mxu0 %v654
    %681 = vmatprep.subr.mxu0 %v652
    %682 = vmatpush1.msra.mxu0 %v651
    %683 = vmatprep.subr.mxu0 %v649
    %684 = vmatpush1.msra.mxu0 %v648
    %685 = vmatprep.subr.mxu0 %v646
    %686 = vmatpush1.msra.mxu0 %v645
    %687 = vmatprep.subr.mxu0 %v643
    %688 = vmatpush1.msra.mxu0 %v642
    %689 = vmatprep.subr.mxu0 %v640
    %690 = vmatpush1.msra.mxu0 %v639
    %691 = vmatprep.subr.mxu0 %v637
    %692 = vmatpush1.msra.mxu0 %v636
    %693 = vmatprep.subr.mxu0 %v634
    %694 = vmatpush1.msra.mxu0 %v633
    %695 = vmatprep.subr.mxu0 %v631
    %696 = vmatpush1.msra.mxu0 %v630
    %697 = vmatprep.subr.mxu0 %v628
    %698 = vmatpush1.msra.mxu0 %v627
    %699 = vmatprep.subr.mxu0 %v625
    %700 = vmatpush1.msra.mxu0 %v624
    %701 = vmatprep.subr.mxu0 %v622
    %702 = vmatpush1.msra.mxu0 %v621
    %703 = vmatprep.subr.mxu0 %v619
    %704 = vmatpush1.msra.mxu0 %v618
    %705 = vmatprep.subr.mxu0 %v616
    %706 = vmatpush1.msra.mxu0 %v615
    %707 = vmatprep.subr.mxu0 %v613
    %708 = vmatpush1.msra.mxu0 %v612
    %709 = vmatprep.subr.mxu0 0.0
    %710 = vmatpush2.msra.mxu0 0.0
    %711 = vmatprep.subr.mxu0 0.0
    %712 = vmatpush2.msra.mxu0 0.0
    %713 = vmatprep.subr.mxu0 0.0
    %714 = vmatpush2.msra.mxu0 0.0
    %715 = vmatprep.subr.mxu0 0.0
    %716 = vmatpush2.msra.mxu0 0.0
    %717 = vmatprep.subr.mxu0 0.0
    %718 = vmatpush2.msra.mxu0 0.0
    %719 = vmatprep.subr.mxu0 0.0
    %720 = vmatpush2.msra.mxu0 0.0
    %721 = vmatprep.subr.mxu0 0.0
    %722 = vmatpush2.msra.mxu0 0.0
    %723 = vmatprep.subr.mxu0 0.0
    %724 = vmatpush2.msra.mxu0 0.0
    %725 = vmatprep.subr.mxu0 0.0
    %726 = vmatpush2.msra.mxu0 0.0
    %727 = vmatprep.subr.mxu0 0.0
    %728 = vmatpush2.msra.mxu0 0.0
    %729 = vmatprep.subr.mxu0 0.0
    %730 = vmatpush2.msra.mxu0 0.0
    %731 = vmatprep.subr.mxu0 0.0
    %732 = vmatpush2.msra.mxu0 0.0
    %733 = vmatprep.subr.mxu0 0.0
    %734 = vmatpush2.msra.mxu0 0.0
    %735 = vmatprep.subr.mxu0 0.0
    %736 = vmatpush2.msra.mxu0 0.0
    %737 = vmatprep.subr.mxu0 0.0
    %738 = vmatpush2.msra.mxu0 0.0
    %739 = vmatprep.subr.mxu0 0.0
    %740 = vmatpush2.msra.mxu0 0.0
    %741 = vmatprep.mubr.f32.mxu0 0.0
    %742 = vmatmul.mubr.f32.gmra.mxu0 %v605
    %v743 = vpop.f32.mrf.mxu0
    %v744 = vadd.f32 %v665, %v743
    %v745 = vpop.f32.mrf.mxu0
    %v746 = vadd.f32 %v669, %v745
    %747 = vdwg.mxu0
    %748 = vmatprep.subr.mxu0 0.0
    %749 = vmatpush1.msra.mxu0 %v659
    %750 = vmatprep.subr.mxu0 0.0
    %751 = vmatpush1.msra.mxu0 %v656
    %752 = vmatprep.subr.mxu0 0.0
    %753 = vmatpush1.msra.mxu0 %v653
    %754 = vmatprep.subr.mxu0 0.0
    %755 = vmatpush1.msra.mxu0 %v650
    %756 = vmatprep.subr.mxu0 0.0
    %757 = vmatpush1.msra.mxu0 %v647
    %758 = vmatprep.subr.mxu0 0.0
    %759 = vmatpush1.msra.mxu0 %v644
    %760 = vmatprep.subr.mxu0 0.0
    %761 = vmatpush1.msra.mxu0 %v641
    %762 = vmatprep.subr.mxu0 0.0
    %763 = vmatpush1.msra.mxu0 %v638
    %764 = vmatprep.subr.mxu0 0.0
    %765 = vmatpush1.msra.mxu0 %v635
    %766 = vmatprep.subr.mxu0 0.0
    %767 = vmatpush1.msra.mxu0 %v632
    %768 = vmatprep.subr.mxu0 0.0
    %769 = vmatpush1.msra.mxu0 %v629
    %770 = vmatprep.subr.mxu0 0.0
    %771 = vmatpush1.msra.mxu0 %v626
    %772 = vmatprep.subr.mxu0 0.0
    %773 = vmatpush1.msra.mxu0 %v623
    %774 = vmatprep.subr.mxu0 0.0
    %775 = vmatpush1.msra.mxu0 %v620
    %776 = vmatprep.subr.mxu0 0.0
    %777 = vmatpush1.msra.mxu0 %v617
    %778 = vmatprep.subr.mxu0 0.0
    %779 = vmatpush1.msra.mxu0 %v614
    %780 = vmatprep.subr.mxu0 0.0
    %781 = vmatpush2.msra.mxu0 0.0
    %782 = vmatprep.subr.mxu0 0.0
    %783 = vmatpush2.msra.mxu0 0.0
    %784 = vmatprep.subr.mxu0 0.0
    %785 = vmatpush2.msra.mxu0 0.0
    %786 = vmatprep.subr.mxu0 0.0
    %787 = vmatpush2.msra.mxu0 0.0
    %788 = vmatprep.subr.mxu0 0.0
    %789 = vmatpush2.msra.mxu0 0.0
    %790 = vmatprep.subr.mxu0 0.0
    %791 = vmatpush2.msra.mxu0 0.0
    %792 = vmatprep.subr.mxu0 0.0
    %793 = vmatpush2.msra.mxu0 0.0
    %794 = vmatprep.subr.mxu0 0.0
    %795 = vmatpush2.msra.mxu0 0.0
    %796 = vmatprep.subr.mxu0 0.0
    %797 = vmatpush2.msra.mxu0 0.0
    %798 = vmatprep.subr.mxu0 0.0
    %799 = vmatpush2.msra.mxu0 0.0
    %800 = vmatprep.subr.mxu0 0.0
    %801 = vmatpush2.msra.mxu0 0.0
    %802 = vmatprep.subr.mxu0 0.0
    %803 = vmatpush2.msra.mxu0 0.0
    %804 = vmatprep.subr.mxu0 0.0
    %805 = vmatpush2.msra.mxu0 0.0
    %806 = vmatprep.subr.mxu0 0.0
    %807 = vmatpush2.msra.mxu0 0.0
    %808 = vmatprep.subr.mxu0 0.0
    %809 = vmatpush2.msra.mxu0 0.0
    %810 = vmatprep.subr.mxu0 0.0
    %811 = vmatpush2.msra.mxu0 0.0
    %812 = vmatprep.mubr.f32.mxu0 0.0
    %813 = vmatmul.mubr.f32.gmra.mxu0 %v605
    %v814 = vpop.f32.mrf.mxu0
    %v815 = vadd.f32 %v673, %v814
    %v816 = vpop.f32.mrf.mxu0
    %817 = vdwg.mxu0
    %v818 = vadd.f32 %v609, %v744
    %v819 = vxor.u32 %v818, 2147483648
    %v820 = vmul.f32 %v819, 1.442695
    %v821 = vpow.pop %v820
    %v822 = vadd.f32 %v821, 1.0
    %v823 = vrcp.pop %v822
    %v824 = vmul.f32 1.0, %v823
    %v825 = vadd.f32 %v610, %v746
    %v826 = vxor.u32 %v825, 2147483648
    %v827 = vmul.f32 %v826, 1.442695
    %v828 = vpow.pop %v827
    %v829 = vadd.f32 %v828, 1.0
    %v830 = vrcp.pop %v829
    %v831 = vmul.f32 1.0, %v830
    %v832 = vmul.f32 %v824, %v815
    %v833 = vadd.f32 %v611, %v832
    %v834 = vtanh.pop %v833
    %v835 = vsub.f32 1.0, %v831
    %v836 = vmul.f32 %v835, %v834
    %v837 = vmul.f32 %v831, %v605
    %v838 = vadd.f32 %v836, %v837
    %839 = vst [vmem:[#allocation3] sm:$0xff] %v838
    %840 = vst [vmem:[#allocation4] sm:$0xff] %v838
    %v841 = vld [vmem:[#allocation3] sm:$0xff]
    %s842 = scalar_lea.vmem [#allocation2], 24
    %v843 = vld [vmem:[%s842] sm:$0xff]
    %v844 = vld [vmem:[%s842 + $0x8] sm:$0xff]
    %v845 = vld [vmem:[%s842 + $0x10] sm:$0xff]
    %v846 = vadd.f32 %v843, %v530
    %v847 = vadd.f32 %v844, %v532
    %v848 = vadd.f32 %v845, %v601
    %v849 = vld [vmem:[#allocation13] sm:$0xff]
    %v850 = vld [vmem:[#allocation13 + $0x8] sm:$0xff]
    %v851 = vld [vmem:[#allocation13 + $0x10] sm:$0xff]
    %v852 = vld [vmem:[#allocation13 + $0x18] sm:$0xff]
    %v853 = vld [vmem:[#allocation13 + $0x20] sm:$0xff]
    %v854 = vld [vmem:[#allocation13 + $0x28] sm:$0xff]
    %v855 = vld [vmem:[#allocation13 + $0x30] sm:$0xff]
    %v856 = vld [vmem:[#allocation13 + $0x38] sm:$0xff]
    %v857 = vld [vmem:[#allocation13 + $0x40] sm:$0xff]
    %v858 = vld [vmem:[#allocation13 + $0x48] sm:$0xff]
    %v859 = vld [vmem:[#allocation13 + $0x50] sm:$0xff]
    %v860 = vld [vmem:[#allocation13 + $0x58] sm:$0xff]
    %v861 = vld [vmem:[#allocation13 + $0x60] sm:$0xff]
    %v862 = vld [vmem:[#allocation13 + $0x68] sm:$0xff]
    %v863 = vld [vmem:[#allocation13 + $0x70] sm:$0xff]
    %v864 = vld [vmem:[#allocation13 + $0x78] sm:$0xff]
    %v865 = vld [vmem:[#allocation13 + $0x80] sm:$0xff]
    %v866 = vld [vmem:[#allocation13 + $0x88] sm:$0xff]
    %v867 = vld [vmem:[#allocation13 + $0x90] sm:$0xff]
    %v868 = vld [vmem:[#allocation13 + $0x98] sm:$0xff]
    %v869 = vld [vmem:[#allocation13 + $0xa0] sm:$0xff]
    %v870 = vld [vmem:[#allocation13 + $0xa8] sm:$0xff]
    %v871 = vld [vmem:[#allocation13 + $0xb0] sm:$0xff]
    %v872 = vld [vmem:[#allocation13 + $0xb8] sm:$0xff]
    %v873 = vld [vmem:[#allocation13 + $0xc0] sm:$0xff]
    %v874 = vld [vmem:[#allocation13 + $0xc8] sm:$0xff]
    %v875 = vld [vmem:[#allocation13 + $0xd0] sm:$0xff]
    %v876 = vld [vmem:[#allocation13 + $0xd8] sm:$0xff]
    %v877 = vld [vmem:[#allocation13 + $0xe0] sm:$0xff]
    %v878 = vld [vmem:[#allocation13 + $0xe8] sm:$0xff]
    %v879 = vld [vmem:[#allocation13 + $0xf0] sm:$0xff]
    %v880 = vld [vmem:[#allocation13 + $0xf8] sm:$0xff]
    %v881 = vld [vmem:[#allocation13 + $0x100] sm:$0xff]
    %v882 = vld [vmem:[#allocation13 + $0x108] sm:$0xff]
    %v883 = vld [vmem:[#allocation13 + $0x110] sm:$0xff]
    %v884 = vld [vmem:[#allocation13 + $0x118] sm:$0xff]
    %v885 = vld [vmem:[#allocation13 + $0x120] sm:$0xff]
    %v886 = vld [vmem:[#allocation13 + $0x128] sm:$0xff]
    %v887 = vld [vmem:[#allocation13 + $0x130] sm:$0xff]
    %v888 = vld [vmem:[#allocation13 + $0x138] sm:$0xff]
    %v889 = vld [vmem:[#allocation13 + $0x140] sm:$0xff]
    %v890 = vld [vmem:[#allocation13 + $0x148] sm:$0xff]
    %v891 = vld [vmem:[#allocation13 + $0x150] sm:$0xff]
    %v892 = vld [vmem:[#allocation13 + $0x158] sm:$0xff]
    %v893 = vld [vmem:[#allocation13 + $0x160] sm:$0xff]
    %v894 = vld [vmem:[#allocation13 + $0x168] sm:$0xff]
    %v895 = vld [vmem:[#allocation13 + $0x170] sm:$0xff]
    %v896 = vld [vmem:[#allocation13 + $0x178] sm:$0xff]
    %v897 = vld [vmem:[%s6] sm:$0x7]
    %v899 = vlaneseq
    %v900 = vshrl.u32 %v899, 7
    %v901 = vsub.s32 0, %v900
    %v902 = vrot.slane %v897, %v901
    %v903 = vlaneseq
    %v904 = vshrl.u32 %v903, 7
    %v905 = vsub.s32 1, %v904
    %v906 = vrot.slane %v897, %v905
    %v907 = vlaneseq
    %v908 = vshrl.u32 %v907, 7
    %v909 = vsub.s32 2, %v908
    %v910 = vrot.slane %v897, %v909
    %914 = vmatprep.subr.mxu0 %v895
    %915 = vmatpush1.msra.mxu0 %v894
    %916 = vmatprep.subr.mxu0 %v892
    %917 = vmatpush1.msra.mxu0 %v891
    %918 = vmatprep.subr.mxu0 %v889
    %919 = vmatpush1.msra.mxu0 %v888
    %920 = vmatprep.subr.mxu0 %v886
    %921 = vmatpush1.msra.mxu0 %v885
    %922 = vmatprep.subr.mxu0 %v883
    %923 = vmatpush1.msra.mxu0 %v882
    %924 = vmatprep.subr.mxu0 %v880
    %925 = vmatpush1.msra.mxu0 %v879
    %926 = vmatprep.subr.mxu0 %v877
    %927 = vmatpush1.msra.mxu0 %v876
    %928 = vmatprep.subr.mxu0 %v874
    %929 = vmatpush1.msra.mxu0 %v873
    %930 = vmatprep.subr.mxu0 %v871
    %931 = vmatpush1.msra.mxu0 %v870
    %932 = vmatprep.subr.mxu0 %v868
    %933 = vmatpush1.msra.mxu0 %v867
    %934 = vmatprep.subr.mxu0 %v865
    %935 = vmatpush1.msra.mxu0 %v864
    %936 = vmatprep.subr.mxu0 %v862
    %937 = vmatpush1.msra.mxu0 %v861
    %938 = vmatprep.subr.mxu0 %v859
    %939 = vmatpush1.msra.mxu0 %v858
    %940 = vmatprep.subr.mxu0 %v856
    %941 = vmatpush1.msra.mxu0 %v855
    %942 = vmatprep.subr.mxu0 %v853
    %943 = vmatpush1.msra.mxu0 %v852
    %944 = vmatprep.subr.mxu0 %v850
    %945 = vmatpush1.msra.mxu0 %v849
    %946 = vmatprep.subr.mxu0 0.0
    %947 = vmatpush2.msra.mxu0 0.0
    %948 = vmatprep.subr.mxu0 0.0
    %949 = vmatpush2.msra.mxu0 0.0
    %950 = vmatprep.subr.mxu0 0.0
    %951 = vmatpush2.msra.mxu0 0.0
    %952 = vmatprep.subr.mxu0 0.0
    %953 = vmatpush2.msra.mxu0 0.0
    %954 = vmatprep.subr.mxu0 0.0
    %955 = vmatpush2.msra.mxu0 0.0
    %956 = vmatprep.subr.mxu0 0.0
    %957 = vmatpush2.msra.mxu0 0.0
    %958 = vmatprep.subr.mxu0 0.0
    %959 = vmatpush2.msra.mxu0 0.0
    %960 = vmatprep.subr.mxu0 0.0
    %961 = vmatpush2.msra.mxu0 0.0
    %962 = vmatprep.subr.mxu0 0.0
    %963 = vmatpush2.msra.mxu0 0.0
    %964 = vmatprep.subr.mxu0 0.0
    %965 = vmatpush2.msra.mxu0 0.0
    %966 = vmatprep.subr.mxu0 0.0
    %967 = vmatpush2.msra.mxu0 0.0
    %968 = vmatprep.subr.mxu0 0.0
    %969 = vmatpush2.msra.mxu0 0.0
    %970 = vmatprep.subr.mxu0 0.0
    %971 = vmatpush2.msra.mxu0 0.0
    %972 = vmatprep.subr.mxu0 0.0
    %973 = vmatpush2.msra.mxu0 0.0
    %974 = vmatprep.subr.mxu0 0.0
    %975 = vmatpush2.msra.mxu0 0.0
    %976 = vmatprep.subr.mxu0 0.0
    %977 = vmatpush2.msra.mxu0 0.0
    %978 = vmatprep.mubr.f32.mxu0 0.0
    %979 = vmatmul.mubr.f32.gmra.mxu0 %v841
    %v980 = vpop.f32.mrf.mxu0
    %v981 = vadd.f32 %v902, %v980
    %v982 = vpop.f32.mrf.mxu0
    %v983 = vadd.f32 %v906, %v982
    %984 = vdwg.mxu0
    %985 = vmatprep.subr.mxu0 0.0
    %986 = vmatpush1.msra.mxu0 %v896
    %987 = vmatprep.subr.mxu0 0.0
    %988 = vmatpush1.msra.mxu0 %v893
    %989 = vmatprep.subr.mxu0 0.0
    %990 = vmatpush1.msra.mxu0 %v890
    %991 = vmatprep.subr.mxu0 0.0
    %992 = vmatpush1.msra.mxu0 %v887
    %993 = vmatprep.subr.mxu0 0.0
    %994 = vmatpush1.msra.mxu0 %v884
    %995 = vmatprep.subr.mxu0 0.0
    %996 = vmatpush1.msra.mxu0 %v881
    %997 = vmatprep.subr.mxu0 0.0
    %998 = vmatpush1.msra.mxu0 %v878
    %999 = vmatprep.subr.mxu0 0.0
    %1000 = vmatpush1.msra.mxu0 %v875
    %1001 = vmatprep.subr.mxu0 0.0
    %1002 = vmatpush1.msra.mxu0 %v872
    %1003 = vmatprep.subr.mxu0 0.0
    %1004 = vmatpush1.msra.mxu0 %v869
    %1005 = vmatprep.subr.mxu0 0.0
    %1006 = vmatpush1.msra.mxu0 %v866
    %1007 = vmatprep.subr.mxu0 0.0
    %1008 = vmatpush1.msra.mxu0 %v863
    %1009 = vmatprep.subr.mxu0 0.0
    %1010 = vmatpush1.msra.mxu0 %v860
    %1011 = vmatprep.subr.mxu0 0.0
    %1012 = vmatpush1.msra.mxu0 %v857
    %1013 = vmatprep.subr.mxu0 0.0
    %1014 = vmatpush1.msra.mxu0 %v854
    %1015 = vmatprep.subr.mxu0 0.0
    %1016 = vmatpush1.msra.mxu0 %v851
    %1017 = vmatprep.subr.mxu0 0.0
    %1018 = vmatpush2.msra.mxu0 0.0
    %1019 = vmatprep.subr.mxu0 0.0
    %1020 = vmatpush2.msra.mxu0 0.0
    %1021 = vmatprep.subr.mxu0 0.0
    %1022 = vmatpush2.msra.mxu0 0.0
    %1023 = vmatprep.subr.mxu0 0.0
    %1024 = vmatpush2.msra.mxu0 0.0
    %1025 = vmatprep.subr.mxu0 0.0
    %1026 = vmatpush2.msra.mxu0 0.0
    %1027 = vmatprep.subr.mxu0 0.0
    %1028 = vmatpush2.msra.mxu0 0.0
    %1029 = vmatprep.subr.mxu0 0.0
    %1030 = vmatpush2.msra.mxu0 0.0
    %1031 = vmatprep.subr.mxu0 0.0
    %1032 = vmatpush2.msra.mxu0 0.0
    %1033 = vmatprep.subr.mxu0 0.0
    %1034 = vmatpush2.msra.mxu0 0.0
    %1035 = vmatprep.subr.mxu0 0.0
    %1036 = vmatpush2.msra.mxu0 0.0
    %1037 = vmatprep.subr.mxu0 0.0
    %1038 = vmatpush2.msra.mxu0 0.0
    %1039 = vmatprep.subr.mxu0 0.0
    %1040 = vmatpush2.msra.mxu0 0.0
    %1041 = vmatprep.subr.mxu0 0.0
    %1042 = vmatpush2.msra.mxu0 0.0
    %1043 = vmatprep.subr.mxu0 0.0
    %1044 = vmatpush2.msra.mxu0 0.0
    %1045 = vmatprep.subr.mxu0 0.0
    %1046 = vmatpush2.msra.mxu0 0.0
    %1047 = vmatprep.subr.mxu0 0.0
    %1048 = vmatpush2.msra.mxu0 0.0
    %1049 = vmatprep.mubr.f32.mxu0 0.0
    %1050 = vmatmul.mubr.f32.gmra.mxu0 %v841
    %v1051 = vpop.f32.mrf.mxu0
    %v1052 = vadd.f32 %v910, %v1051
    %v1053 = vpop.f32.mrf.mxu0
    %1054 = vdwg.mxu0
    %v1055 = vadd.f32 %v846, %v981
    %v1056 = vxor.u32 %v1055, 2147483648
    %v1057 = vmul.f32 %v1056, 1.442695
    %v1058 = vpow.pop %v1057
    %v1059 = vadd.f32 %v1058, 1.0
    %v1060 = vrcp.pop %v1059
    %v1061 = vmul.f32 1.0, %v1060
    %v1062 = vadd.f32 %v847, %v983
    %v1063 = vxor.u32 %v1062, 2147483648
    %v1064 = vmul.f32 %v1063, 1.442695
    %v1065 = vpow.pop %v1064
    %v1066 = vadd.f32 %v1065, 1.0
    %v1067 = vrcp.pop %v1066
    %v1068 = vmul.f32 1.0, %v1067
    %v1069 = vmul.f32 %v1061, %v1052
    %v1070 = vadd.f32 %v848, %v1069
    %v1071 = vtanh.pop %v1070
    %v1072 = vsub.f32 1.0, %v1068
    %v1073 = vmul.f32 %v1072, %v1071
    %v1074 = vmul.f32 %v1068, %v841
    %v1075 = vadd.f32 %v1073, %v1074
    %1076 = vst [vmem:[#allocation3] sm:$0xff] %v1075
    %s1077 = scalar_lea.vmem [#allocation4], 8
    %1078 = vst [vmem:[%s1077] sm:$0xff] %v1075
    %v1079 = vld [vmem:[#allocation3] sm:$0xff]
    %s1080 = scalar_lea.vmem [#allocation2], 48
    %v1081 = vld [vmem:[%s1080] sm:$0xff]
    %v1082 = vld [vmem:[%s1080 + $0x8] sm:$0xff]
    %v1083 = vld [vmem:[%s1080 + $0x10] sm:$0xff]
    %v1084 = vadd.f32 %v1081, %v530
    %v1085 = vadd.f32 %v1082, %v532
    %v1086 = vadd.f32 %v1083, %v601
    %v1087 = vld [vmem:[#allocation13] sm:$0xff]
    %v1088 = vld [vmem:[#allocation13 + $0x8] sm:$0xff]
    %v1089 = vld [vmem:[#allocation13 + $0x10] sm:$0xff]
    %v1090 = vld [vmem:[#allocation13 + $0x18] sm:$0xff]
    %v1091 = vld [vmem:[#allocation13 + $0x20] sm:$0xff]
    %v1092 = vld [vmem:[#allocation13 + $0x28] sm:$0xff]
    %v1093 = vld [vmem:[#allocation13 + $0x30] sm:$0xff]
    %v1094 = vld [vmem:[#allocation13 + $0x38] sm:$0xff]
    %v1095 = vld [vmem:[#allocation13 + $0x40] sm:$0xff]
    %v1096 = vld [vmem:[#allocation13 + $0x48] sm:$0xff]
    %v1097 = vld [vmem:[#allocation13 + $0x50] sm:$0xff]
    %v1098 = vld [vmem:[#allocation13 + $0x58] sm:$0xff]
    %v1099 = vld [vmem:[#allocation13 + $0x60] sm:$0xff]
    %v1100 = vld [vmem:[#allocation13 + $0x68] sm:$0xff]
    %v1101 = vld [vmem:[#allocation13 + $0x70] sm:$0xff]
    %v1102 = vld [vmem:[#allocation13 + $0x78] sm:$0xff]
    %v1103 = vld [vmem:[#allocation13 + $0x80] sm:$0xff]
    %v1104 = vld [vmem:[#allocation13 + $0x88] sm:$0xff]
    %v1105 = vld [vmem:[#allocation13 + $0x90] sm:$0xff]
    %v1106 = vld [vmem:[#allocation13 + $0x98] sm:$0xff]
    %v1107 = vld [vmem:[#allocation13 + $0xa0] sm:$0xff]
    %v1108 = vld [vmem:[#allocation13 + $0xa8] sm:$0xff]
    %v1109 = vld [vmem:[#allocation13 + $0xb0] sm:$0xff]
    %v1110 = vld [vmem:[#allocation13 + $0xb8] sm:$0xff]
    %v1111 = vld [vmem:[#allocation13 + $0xc0] sm:$0xff]
    %v1112 = vld [vmem:[#allocation13 + $0xc8] sm:$0xff]
    %v1113 = vld [vmem:[#allocation13 + $0xd0] sm:$0xff]
    %v1114 = vld [vmem:[#allocation13 + $0xd8] sm:$0xff]
    %v1115 = vld [vmem:[#allocation13 + $0xe0] sm:$0xff]
    %v1116 = vld [vmem:[#allocation13 + $0xe8] sm:$0xff]
    %v1117 = vld [vmem:[#allocation13 + $0xf0] sm:$0xff]
    %v1118 = vld [vmem:[#allocation13 + $0xf8] sm:$0xff]
    %v1119 = vld [vmem:[#allocation13 + $0x100] sm:$0xff]
    %v1120 = vld [vmem:[#allocation13 + $0x108] sm:$0xff]
    %v1121 = vld [vmem:[#allocation13 + $0x110] sm:$0xff]
    %v1122 = vld [vmem:[#allocation13 + $0x118] sm:$0xff]
    %v1123 = vld [vmem:[#allocation13 + $0x120] sm:$0xff]
    %v1124 = vld [vmem:[#allocation13 + $0x128] sm:$0xff]
    %v1125 = vld [vmem:[#allocation13 + $0x130] sm:$0xff]
    %v1126 = vld [vmem:[#allocation13 + $0x138] sm:$0xff]
    %v1127 = vld [vmem:[#allocation13 + $0x140] sm:$0xff]
    %v1128 = vld [vmem:[#allocation13 + $0x148] sm:$0xff]
    %v1129 = vld [vmem:[#allocation13 + $0x150] sm:$0xff]
    %v1130 = vld [vmem:[#allocation13 + $0x158] sm:$0xff]
    %v1131 = vld [vmem:[#allocation13 + $0x160] sm:$0xff]
    %v1132 = vld [vmem:[#allocation13 + $0x168] sm:$0xff]
    %v1133 = vld [vmem:[#allocation13 + $0x170] sm:$0xff]
    %v1134 = vld [vmem:[#allocation13 + $0x178] sm:$0xff]
    %v1135 = vld [vmem:[%s6] sm:$0x7]
    %v1137 = vlaneseq
    %v1138 = vshrl.u32 %v1137, 7
    %v1139 = vsub.s32 0, %v1138
    %v1140 = vrot.slane %v1135, %v1139
    %v1141 = vlaneseq
    %v1142 = vshrl.u32 %v1141, 7
    %v1143 = vsub.s32 1, %v1142
    %v1144 = vrot.slane %v1135, %v1143
    %v1145 = vlaneseq
    %v1146 = vshrl.u32 %v1145, 7
    %v1147 = vsub.s32 2, %v1146
    %v1148 = vrot.slane %v1135, %v1147
    %1152 = vmatprep.subr.mxu0 %v1133
    %1153 = vmatpush1.msra.mxu0 %v1132
    %1154 = vmatprep.subr.mxu0 %v1130
    %1155 = vmatpush1.msra.mxu0 %v1129
    %1156 = vmatprep.subr.mxu0 %v1127
    %1157 = vmatpush1.msra.mxu0 %v1126
    %1158 = vmatprep.subr.mxu0 %v1124
    %1159 = vmatpush1.msra.mxu0 %v1123
    %1160 = vmatprep.subr.mxu0 %v1121
    %1161 = vmatpush1.msra.mxu0 %v1120
    %1162 = vmatprep.subr.mxu0 %v1118
    %1163 = vmatpush1.msra.mxu0 %v1117
    %1164 = vmatprep.subr.mxu0 %v1115
    %1165 = vmatpush1.msra.mxu0 %v1114
    %1166 = vmatprep.subr.mxu0 %v1112
    %1167 = vmatpush1.msra.mxu0 %v1111
    %1168 = vmatprep.subr.mxu0 %v1109
    %1169 = vmatpush1.msra.mxu0 %v1108
    %1170 = vmatprep.subr.mxu0 %v1106
    %1171 = vmatpush1.msra.mxu0 %v1105
    %1172 = vmatprep.subr.mxu0 %v1103
    %1173 = vmatpush1.msra.mxu0 %v1102
    %1174 = vmatprep.subr.mxu0 %v1100
    %1175 = vmatpush1.msra.mxu0 %v1099
    %1176 = vmatprep.subr.mxu0 %v1097
    %1177 = vmatpush1.msra.mxu0 %v1096
    %1178 = vmatprep.subr.mxu0 %v1094
    %1179 = vmatpush1.msra.mxu0 %v1093
    %1180 = vmatprep.subr.mxu0 %v1091
    %1181 = vmatpush1.msra.mxu0 %v1090
    %1182 = vmatprep.subr.mxu0 %v1088
    %1183 = vmatpush1.msra.mxu0 %v1087
    %1184 = vmatprep.subr.mxu0 0.0
    %1185 = vmatpush2.msra.mxu0 0.0
    %1186 = vmatprep.subr.mxu0 0.0
    %1187 = vmatpush2.msra.mxu0 0.0
    %1188 = vmatprep.subr.mxu0 0.0
    %1189 = vmatpush2.msra.mxu0 0.0
    %1190 = vmatprep.subr.mxu0 0.0
    %1191 = vmatpush2.msra.mxu0 0.0
    %1192 = vmatprep.subr.mxu0 0.0
    %1193 = vmatpush2.msra.mxu0 0.0
    %1194 = vmatprep.subr.mxu0 0.0
    %1195 = vmatpush2.msra.mxu0 0.0
    %1196 = vmatprep.subr.mxu0 0.0
    %1197 = vmatpush2.msra.mxu0 0.0
    %1198 = vmatprep.subr.mxu0 0.0
    %1199 = vmatpush2.msra.mxu0 0.0
    %1200 = vmatprep.subr.mxu0 0.0
    %1201 = vmatpush2.msra.mxu0 0.0
    %1202 = vmatprep.subr.mxu0 0.0
    %1203 = vmatpush2.msra.mxu0 0.0
    %1204 = vmatprep.subr.mxu0 0.0
    %1205 = vmatpush2.msra.mxu0 0.0
    %1206 = vmatprep.subr.mxu0 0.0
    %1207 = vmatpush2.msra.mxu0 0.0
    %1208 = vmatprep.subr.mxu0 0.0
    %1209 = vmatpush2.msra.mxu0 0.0
    %1210 = vmatprep.subr.mxu0 0.0
    %1211 = vmatpush2.msra.mxu0 0.0
    %1212 = vmatprep.subr.mxu0 0.0
    %1213 = vmatpush2.msra.mxu0 0.0
    %1214 = vmatprep.subr.mxu0 0.0
    %1215 = vmatpush2.msra.mxu0 0.0
    %1216 = vmatprep.mubr.f32.mxu0 0.0
    %1217 = vmatmul.mubr.f32.gmra.mxu0 %v1079
    %v1218 = vpop.f32.mrf.mxu0
    %v1219 = vadd.f32 %v1140, %v1218
    %v1220 = vpop.f32.mrf.mxu0
    %v1221 = vadd.f32 %v1144, %v1220
    %1222 = vdwg.mxu0
    %1223 = vmatprep.subr.mxu0 0.0
    %1224 = vmatpush1.msra.mxu0 %v1134
    %1225 = vmatprep.subr.mxu0 0.0
    %1226 = vmatpush1.msra.mxu0 %v1131
    %1227 = vmatprep.subr.mxu0 0.0
    %1228 = vmatpush1.msra.mxu0 %v1128
    %1229 = vmatprep.subr.mxu0 0.0
    %1230 = vmatpush1.msra.mxu0 %v1125
    %1231 = vmatprep.subr.mxu0 0.0
    %1232 = vmatpush1.msra.mxu0 %v1122
    %1233 = vmatprep.subr.mxu0 0.0
    %1234 = vmatpush1.msra.mxu0 %v1119
    %1235 = vmatprep.subr.mxu0 0.0
    %1236 = vmatpush1.msra.mxu0 %v1116
    %1237 = vmatprep.subr.mxu0 0.0
    %1238 = vmatpush1.msra.mxu0 %v1113
    %1239 = vmatprep.subr.mxu0 0.0
    %1240 = vmatpush1.msra.mxu0 %v1110
    %1241 = vmatprep.subr.mxu0 0.0
    %1242 = vmatpush1.msra.mxu0 %v1107
    %1243 = vmatprep.subr.mxu0 0.0
    %1244 = vmatpush1.msra.mxu0 %v1104
    %1245 = vmatprep.subr.mxu0 0.0
    %1246 = vmatpush1.msra.mxu0 %v1101
    %1247 = vmatprep.subr.mxu0 0.0
    %1248 = vmatpush1.msra.mxu0 %v1098
    %1249 = vmatprep.subr.mxu0 0.0
    %1250 = vmatpush1.msra.mxu0 %v1095
    %1251 = vmatprep.subr.mxu0 0.0
    %1252 = vmatpush1.msra.mxu0 %v1092
    %1253 = vmatprep.subr.mxu0 0.0
    %1254 = vmatpush1.msra.mxu0 %v1089
    %1255 = vmatprep.subr.mxu0 0.0
    %1256 = vmatpush2.msra.mxu0 0.0
    %1257 = vmatprep.subr.mxu0 0.0
    %1258 = vmatpush2.msra.mxu0 0.0
    %1259 = vmatprep.subr.mxu0 0.0
    %1260 = vmatpush2.msra.mxu0 0.0
    %1261 = vmatprep.subr.mxu0 0.0
    %1262 = vmatpush2.msra.mxu0 0.0
    %1263 = vmatprep.subr.mxu0 0.0
    %1264 = vmatpush2.msra.mxu0 0.0
    %1265 = vmatprep.subr.mxu0 0.0
    %1266 = vmatpush2.msra.mxu0 0.0
    %1267 = vmatprep.subr.mxu0 0.0
    %1268 = vmatpush2.msra.mxu0 0.0
    %1269 = vmatprep.subr.mxu0 0.0
    %1270 = vmatpush2.msra.mxu0 0.0
    %1271 = vmatprep.subr.mxu0 0.0
    %1272 = vmatpush2.msra.mxu0 0.0
    %1273 = vmatprep.subr.mxu0 0.0
    %1274 = vmatpush2.msra.mxu0 0.0
    %1275 = vmatprep.subr.mxu0 0.0
    %1276 = vmatpush2.msra.mxu0 0.0
    %1277 = vmatprep.subr.mxu0 0.0
    %1278 = vmatpush2.msra.mxu0 0.0
    %1279 = vmatprep.subr.mxu0 0.0
    %1280 = vmatpush2.msra.mxu0 0.0
    %1281 = vmatprep.subr.mxu0 0.0
    %1282 = vmatpush2.msra.mxu0 0.0
    %1283 = vmatprep.subr.mxu0 0.0
    %1284 = vmatpush2.msra.mxu0 0.0
    %1285 = vmatprep.subr.mxu0 0.0
    %1286 = vmatpush2.msra.mxu0 0.0
    %1287 = vmatprep.mubr.f32.mxu0 0.0
    %1288 = vmatmul.mubr.f32.gmra.mxu0 %v1079
    %v1289 = vpop.f32.mrf.mxu0
    %v1290 = vadd.f32 %v1148, %v1289
    %v1291 = vpop.f32.mrf.mxu0
    %1292 = vdwg.mxu0
    %v1293 = vadd.f32 %v1084, %v1219
    %v1294 = vxor.u32 %v1293, 2147483648
    %v1295 = vmul.f32 %v1294, 1.442695
    %v1296 = vpow.pop %v1295
    %v1297 = vadd.f32 %v1296, 1.0
    %v1298 = vrcp.pop %v1297
    %v1299 = vmul.f32 1.0, %v1298
    %v1300 = vadd.f32 %v1085, %v1221
    %v1301 = vxor.u32 %v1300, 2147483648
    %v1302 = vmul.f32 %v1301, 1.442695
    %v1303 = vpow.pop %v1302
    %v1304 = vadd.f32 %v1303, 1.0
    %v1305 = vrcp.pop %v1304
    %v1306 = vmul.f32 1.0, %v1305
    %v1307 = vmul.f32 %v1299, %v1290
    %v1308 = vadd.f32 %v1086, %v1307
    %v1309 = vtanh.pop %v1308
    %v1310 = vsub.f32 1.0, %v1306
    %v1311 = vmul.f32 %v1310, %v1309
    %v1312 = vmul.f32 %v1306, %v1079
    %v1313 = vadd.f32 %v1311, %v1312
    %1314 = vst [vmem:[#allocation3] sm:$0xff] %v1313
    %s1315 = scalar_lea.vmem [#allocation4], 16
    %1316 = vst [vmem:[%s1315] sm:$0xff] %v1313
    %v1317 = vld [vmem:[#allocation3] sm:$0xff]
    %s1318 = scalar_lea.vmem [#allocation2], 72
    %v1319 = vld [vmem:[%s1318] sm:$0xff]
    %v1320 = vld [vmem:[%s1318 + $0x8] sm:$0xff]
    %v1321 = vld [vmem:[%s1318 + $0x10] sm:$0xff]
    %v1322 = vadd.f32 %v1319, %v530
    %v1323 = vadd.f32 %v1320, %v532
    %v1324 = vadd.f32 %v1321, %v601
    %v1325 = vld [vmem:[#allocation13] sm:$0xff]
    %v1326 = vld [vmem:[#allocation13 + $0x8] sm:$0xff]
    %v1327 = vld [vmem:[#allocation13 + $0x10] sm:$0xff]
    %v1328 = vld [vmem:[#allocation13 + $0x18] sm:$0xff]
    %v1329 = vld [vmem:[#allocation13 + $0x20] sm:$0xff]
    %v1330 = vld [vmem:[#allocation13 + $0x28] sm:$0xff]
    %v1331 = vld [vmem:[#allocation13 + $0x30] sm:$0xff]
    %v1332 = vld [vmem:[#allocation13 + $0x38] sm:$0xff]
    %v1333 = vld [vmem:[#allocation13 + $0x40] sm:$0xff]
    %v1334 = vld [vmem:[#allocation13 + $0x48] sm:$0xff]
    %v1335 = vld [vmem:[#allocation13 + $0x50] sm:$0xff]
    %v1336 = vld [vmem:[#allocation13 + $0x58] sm:$0xff]
    %v1337 = vld [vmem:[#allocation13 + $0x60] sm:$0xff]
    %v1338 = vld [vmem:[#allocation13 + $0x68] sm:$0xff]
    %v1339 = vld [vmem:[#allocation13 + $0x70] sm:$0xff]
    %v1340 = vld [vmem:[#allocation13 + $0x78] sm:$0xff]
    %v1341 = vld [vmem:[#allocation13 + $0x80] sm:$0xff]
    %v1342 = vld [vmem:[#allocation13 + $0x88] sm:$0xff]
    %v1343 = vld [vmem:[#allocation13 + $0x90] sm:$0xff]
    %v1344 = vld [vmem:[#allocation13 + $0x98] sm:$0xff]
    %v1345 = vld [vmem:[#allocation13 + $0xa0] sm:$0xff]
    %v1346 = vld [vmem:[#allocation13 + $0xa8] sm:$0xff]
    %v1347 = vld [vmem:[#allocation13 + $0xb0] sm:$0xff]
    %v1348 = vld [vmem:[#allocation13 + $0xb8] sm:$0xff]
    %v1349 = vld [vmem:[#allocation13 + $0xc0] sm:$0xff]
    %v1350 = vld [vmem:[#allocation13 + $0xc8] sm:$0xff]
    %v1351 = vld [vmem:[#allocation13 + $0xd0] sm:$0xff]
    %v1352 = vld [vmem:[#allocation13 + $0xd8] sm:$0xff]
    %v1353 = vld [vmem:[#allocation13 + $0xe0] sm:$0xff]
    %v1354 = vld [vmem:[#allocation13 + $0xe8] sm:$0xff]
    %v1355 = vld [vmem:[#allocation13 + $0xf0] sm:$0xff]
    %v1356 = vld [vmem:[#allocation13 + $0xf8] sm:$0xff]
    %v1357 = vld [vmem:[#allocation13 + $0x100] sm:$0xff]
    %v1358 = vld [vmem:[#allocation13 + $0x108] sm:$0xff]
    %v1359 = vld [vmem:[#allocation13 + $0x110] sm:$0xff]
    %v1360 = vld [vmem:[#allocation13 + $0x118] sm:$0xff]
    %v1361 = vld [vmem:[#allocation13 + $0x120] sm:$0xff]
    %v1362 = vld [vmem:[#allocation13 + $0x128] sm:$0xff]
    %v1363 = vld [vmem:[#allocation13 + $0x130] sm:$0xff]
    %v1364 = vld [vmem:[#allocation13 + $0x138] sm:$0xff]
    %v1365 = vld [vmem:[#allocation13 + $0x140] sm:$0xff]
    %v1366 = vld [vmem:[#allocation13 + $0x148] sm:$0xff]
    %v1367 = vld [vmem:[#allocation13 + $0x150] sm:$0xff]
    %v1368 = vld [vmem:[#allocation13 + $0x158] sm:$0xff]
    %v1369 = vld [vmem:[#allocation13 + $0x160] sm:$0xff]
    %v1370 = vld [vmem:[#allocation13 + $0x168] sm:$0xff]
    %v1371 = vld [vmem:[#allocation13 + $0x170] sm:$0xff]
    %v1372 = vld [vmem:[#allocation13 + $0x178] sm:$0xff]
    %v1373 = vld [vmem:[%s6] sm:$0x7]
    %v1375 = vlaneseq
    %v1376 = vshrl.u32 %v1375, 7
    %v1377 = vsub.s32 0, %v1376
    %v1378 = vrot.slane %v1373, %v1377
    %v1379 = vlaneseq
    %v1380 = vshrl.u32 %v1379, 7
    %v1381 = vsub.s32 1, %v1380
    %v1382 = vrot.slane %v1373, %v1381
    %v1383 = vlaneseq
    %v1384 = vshrl.u32 %v1383, 7
    %v1385 = vsub.s32 2, %v1384
    %v1386 = vrot.slane %v1373, %v1385
    %1390 = vmatprep.subr.mxu0 %v1371
    %1391 = vmatpush1.msra.mxu0 %v1370
    %1392 = vmatprep.subr.mxu0 %v1368
    %1393 = vmatpush1.msra.mxu0 %v1367
    %1394 = vmatprep.subr.mxu0 %v1365
    %1395 = vmatpush1.msra.mxu0 %v1364
    %1396 = vmatprep.subr.mxu0 %v1362
    %1397 = vmatpush1.msra.mxu0 %v1361
    %1398 = vmatprep.subr.mxu0 %v1359
    %1399 = vmatpush1.msra.mxu0 %v1358
    %1400 = vmatprep.subr.mxu0 %v1356
    %1401 = vmatpush1.msra.mxu0 %v1355
    %1402 = vmatprep.subr.mxu0 %v1353
    %1403 = vmatpush1.msra.mxu0 %v1352
    %1404 = vmatprep.subr.mxu0 %v1350
    %1405 = vmatpush1.msra.mxu0 %v1349
    %1406 = vmatprep.subr.mxu0 %v1347
    %1407 = vmatpush1.msra.mxu0 %v1346
    %1408 = vmatprep.subr.mxu0 %v1344
    %1409 = vmatpush1.msra.mxu0 %v1343
    %1410 = vmatprep.subr.mxu0 %v1341
    %1411 = vmatpush1.msra.mxu0 %v1340
    %1412 = vmatprep.subr.mxu0 %v1338
    %1413 = vmatpush1.msra.mxu0 %v1337
    %1414 = vmatprep.subr.mxu0 %v1335
    %1415 = vmatpush1.msra.mxu0 %v1334
    %1416 = vmatprep.subr.mxu0 %v1332
    %1417 = vmatpush1.msra.mxu0 %v1331
    %1418 = vmatprep.subr.mxu0 %v1329
    %1419 = vmatpush1.msra.mxu0 %v1328
    %1420 = vmatprep.subr.mxu0 %v1326
    %1421 = vmatpush1.msra.mxu0 %v1325
    %1422 = vmatprep.subr.mxu0 0.0
    %1423 = vmatpush2.msra.mxu0 0.0
    %1424 = vmatprep.subr.mxu0 0.0
    %1425 = vmatpush2.msra.mxu0 0.0
    %1426 = vmatprep.subr.mxu0 0.0
    %1427 = vmatpush2.msra.mxu0 0.0
    %1428 = vmatprep.subr.mxu0 0.0
    %1429 = vmatpush2.msra.mxu0 0.0
    %1430 = vmatprep.subr.mxu0 0.0
    %1431 = vmatpush2.msra.mxu0 0.0
    %1432 = vmatprep.subr.mxu0 0.0
    %1433 = vmatpush2.msra.mxu0 0.0
    %1434 = vmatprep.subr.mxu0 0.0
    %1435 = vmatpush2.msra.mxu0 0.0
    %1436 = vmatprep.subr.mxu0 0.0
    %1437 = vmatpush2.msra.mxu0 0.0
    %1438 = vmatprep.subr.mxu0 0.0
    %1439 = vmatpush2.msra.mxu0 0.0
    %1440 = vmatprep.subr.mxu0 0.0
    %1441 = vmatpush2.msra.mxu0 0.0
    %1442 = vmatprep.subr.mxu0 0.0
    %1443 = vmatpush2.msra.mxu0 0.0
    %1444 = vmatprep.subr.mxu0 0.0
    %1445 = vmatpush2.msra.mxu0 0.0
    %1446 = vmatprep.subr.mxu0 0.0
    %1447 = vmatpush2.msra.mxu0 0.0
    %1448 = vmatprep.subr.mxu0 0.0
    %1449 = vmatpush2.msra.mxu0 0.0
    %1450 = vmatprep.subr.mxu0 0.0
    %1451 = vmatpush2.msra.mxu0 0.0
    %1452 = vmatprep.subr.mxu0 0.0
    %1453 = vmatpush2.msra.mxu0 0.0
    %1454 = vmatprep.mubr.f32.mxu0 0.0
    %1455 = vmatmul.mubr.f32.gmra.mxu0 %v1317
    %v1456 = vpop.f32.mrf.mxu0
    %v1457 = vadd.f32 %v1378, %v1456
    %v1458 = vpop.f32.mrf.mxu0
    %v1459 = vadd.f32 %v1382, %v1458
    %1460 = vdwg.mxu0
    %1461 = vmatprep.subr.mxu0 0.0
    %1462 = vmatpush1.msra.mxu0 %v1372
    %1463 = vmatprep.subr.mxu0 0.0
    %1464 = vmatpush1.msra.mxu0 %v1369
    %1465 = vmatprep.subr.mxu0 0.0
    %1466 = vmatpush1.msra.mxu0 %v1366
    %1467 = vmatprep.subr.mxu0 0.0
    %1468 = vmatpush1.msra.mxu0 %v1363
    %1469 = vmatprep.subr.mxu0 0.0
    %1470 = vmatpush1.msra.mxu0 %v1360
    %1471 = vmatprep.subr.mxu0 0.0
    %1472 = vmatpush1.msra.mxu0 %v1357
    %1473 = vmatprep.subr.mxu0 0.0
    %1474 = vmatpush1.msra.mxu0 %v1354
    %1475 = vmatprep.subr.mxu0 0.0
    %1476 = vmatpush1.msra.mxu0 %v1351
    %1477 = vmatprep.subr.mxu0 0.0
    %1478 = vmatpush1.msra.mxu0 %v1348
    %1479 = vmatprep.subr.mxu0 0.0
    %1480 = vmatpush1.msra.mxu0 %v1345
    %1481 = vmatprep.subr.mxu0 0.0
    %1482 = vmatpush1.msra.mxu0 %v1342
    %1483 = vmatprep.subr.mxu0 0.0
    %1484 = vmatpush1.msra.mxu0 %v1339
    %1485 = vmatprep.subr.mxu0 0.0
    %1486 = vmatpush1.msra.mxu0 %v1336
    %1487 = vmatprep.subr.mxu0 0.0
    %1488 = vmatpush1.msra.mxu0 %v1333
    %1489 = vmatprep.subr.mxu0 0.0
    %1490 = vmatpush1.msra.mxu0 %v1330
    %1491 = vmatprep.subr.mxu0 0.0
    %1492 = vmatpush1.msra.mxu0 %v1327
    %1493 = vmatprep.subr.mxu0 0.0
    %1494 = vmatpush2.msra.mxu0 0.0
    %1495 = vmatprep.subr.mxu0 0.0
    %1496 = vmatpush2.msra.mxu0 0.0
    %1497 = vmatprep.subr.mxu0 0.0
    %1498 = vmatpush2.msra.mxu0 0.0
    %1499 = vmatprep.subr.mxu0 0.0
    %1500 = vmatpush2.msra.mxu0 0.0
    %1501 = vmatprep.subr.mxu0 0.0
    %1502 = vmatpush2.msra.mxu0 0.0
    %1503 = vmatprep.subr.mxu0 0.0
    %1504 = vmatpush2.msra.mxu0 0.0
    %1505 = vmatprep.subr.mxu0 0.0
    %1506 = vmatpush2.msra.mxu0 0.0
    %1507 = vmatprep.subr.mxu0 0.0
    %1508 = vmatpush2.msra.mxu0 0.0
    %1509 = vmatprep.subr.mxu0 0.0
    %1510 = vmatpush2.msra.mxu0 0.0
    %1511 = vmatprep.subr.mxu0 0.0
    %1512 = vmatpush2.msra.mxu0 0.0
    %1513 = vmatprep.subr.mxu0 0.0
    %1514 = vmatpush2.msra.mxu0 0.0
    %1515 = vmatprep.subr.mxu0 0.0
    %1516 = vmatpush2.msra.mxu0 0.0
    %1517 = vmatprep.subr.mxu0 0.0
    %1518 = vmatpush2.msra.mxu0 0.0
    %1519 = vmatprep.subr.mxu0 0.0
    %1520 = vmatpush2.msra.mxu0 0.0
    %1521 = vmatprep.subr.mxu0 0.0
    %1522 = vmatpush2.msra.mxu0 0.0
    %1523 = vmatprep.subr.mxu0 0.0
    %1524 = vmatpush2.msra.mxu0 0.0
    %1525 = vmatprep.mubr.f32.mxu0 0.0
    %1526 = vmatmul.mubr.f32.gmra.mxu0 %v1317
    %v1527 = vpop.f32.mrf.mxu0
    %v1528 = vadd.f32 %v1386, %v1527
    %v1529 = vpop.f32.mrf.mxu0
    %1530 = vdwg.mxu0
    %v1531 = vadd.f32 %v1322, %v1457
    %v1532 = vxor.u32 %v1531, 2147483648
    %v1533 = vmul.f32 %v1532, 1.442695
    %v1534 = vpow.pop %v1533
    %v1535 = vadd.f32 %v1534, 1.0
    %v1536 = vrcp.pop %v1535
    %v1537 = vmul.f32 1.0, %v1536
    %v1538 = vadd.f32 %v1323, %v1459
    %v1539 = vxor.u32 %v1538, 2147483648
    %v1540 = vmul.f32 %v1539, 1.442695
    %v1541 = vpow.pop %v1540
    %v1542 = vadd.f32 %v1541, 1.0
    %v1543 = vrcp.pop %v1542
    %v1544 = vmul.f32 1.0, %v1543
    %v1545 = vmul.f32 %v1537, %v1528
    %v1546 = vadd.f32 %v1324, %v1545
    %v1547 = vtanh.pop %v1546
    %v1548 = vsub.f32 1.0, %v1544
    %v1549 = vmul.f32 %v1548, %v1547
    %v1550 = vmul.f32 %v1544, %v1317
    %v1551 = vadd.f32 %v1549, %v1550
    %1552 = vst [vmem:[#allocation3] sm:$0xff] %v1551
    %s1553 = scalar_lea.vmem [#allocation4], 24
    %1554 = vst [vmem:[%s1553] sm:$0xff] %v1551
    %v1555 = vld [vmem:[#allocation3] sm:$0xff]
    %s1556 = scalar_lea.vmem [#allocation2], 96
    %v1557 = vld [vmem:[%s1556] sm:$0xff]
    %v1558 = vld [vmem:[%s1556 + $0x8] sm:$0xff]
    %v1559 = vld [vmem:[%s1556 + $0x10] sm:$0xff]
    %v1560 = vadd.f32 %v1557, %v530
    %v1561 = vadd.f32 %v1558, %v532
    %v1562 = vadd.f32 %v1559, %v601
    %v1563 = vld [vmem:[#allocation13] sm:$0xff]
    %v1564 = vld [vmem:[#allocation13 + $0x8] sm:$0xff]
    %v1565 = vld [vmem:[#allocation13 + $0x10] sm:$0xff]
    %v1566 = vld [vmem:[#allocation13 + $0x18] sm:$0xff]
    %v1567 = vld [vmem:[#allocation13 + $0x20] sm:$0xff]
    %v1568 = vld [vmem:[#allocation13 + $0x28] sm:$0xff]
    %v1569 = vld [vmem:[#allocation13 + $0x30] sm:$0xff]
    %v1570 = vld [vmem:[#allocation13 + $0x38] sm:$0xff]
    %v1571 = vld [vmem:[#allocation13 + $0x40] sm:$0xff]
    %v1572 = vld [vmem:[#allocation13 + $0x48] sm:$0xff]
    %v1573 = vld [vmem:[#allocation13 + $0x50] sm:$0xff]
    %v1574 = vld [vmem:[#allocation13 + $0x58] sm:$0xff]
    %v1575 = vld [vmem:[#allocation13 + $0x60] sm:$0xff]
    %v1576 = vld [vmem:[#allocation13 + $0x68] sm:$0xff]
    %v1577 = vld [vmem:[#allocation13 + $0x70] sm:$0xff]
    %v1578 = vld [vmem:[#allocation13 + $0x78] sm:$0xff]
    %v1579 = vld [vmem:[#allocation13 + $0x80] sm:$0xff]
    %v1580 = vld [vmem:[#allocation13 + $0x88] sm:$0xff]
    %v1581 = vld [vmem:[#allocation13 + $0x90] sm:$0xff]
    %v1582 = vld [vmem:[#allocation13 + $0x98] sm:$0xff]
    %v1583 = vld [vmem:[#allocation13 + $0xa0] sm:$0xff]
    %v1584 = vld [vmem:[#allocation13 + $0xa8] sm:$0xff]
    %v1585 = vld [vmem:[#allocation13 + $0xb0] sm:$0xff]
    %v1586 = vld [vmem:[#allocation13 + $0xb8] sm:$0xff]
    %v1587 = vld [vmem:[#allocation13 + $0xc0] sm:$0xff]
    %v1588 = vld [vmem:[#allocation13 + $0xc8] sm:$0xff]
    %v1589 = vld [vmem:[#allocation13 + $0xd0] sm:$0xff]
    %v1590 = vld [vmem:[#allocation13 + $0xd8] sm:$0xff]
    %v1591 = vld [vmem:[#allocation13 + $0xe0] sm:$0xff]
    %v1592 = vld [vmem:[#allocation13 + $0xe8] sm:$0xff]
    %v1593 = vld [vmem:[#allocation13 + $0xf0] sm:$0xff]
    %v1594 = vld [vmem:[#allocation13 + $0xf8] sm:$0xff]
    %v1595 = vld [vmem:[#allocation13 + $0x100] sm:$0xff]
    %v1596 = vld [vmem:[#allocation13 + $0x108] sm:$0xff]
    %v1597 = vld [vmem:[#allocation13 + $0x110] sm:$0xff]
    %v1598 = vld [vmem:[#allocation13 + $0x118] sm:$0xff]
    %v1599 = vld [vmem:[#allocation13 + $0x120] sm:$0xff]
    %v1600 = vld [vmem:[#allocation13 + $0x128] sm:$0xff]
    %v1601 = vld [vmem:[#allocation13 + $0x130] sm:$0xff]
    %v1602 = vld [vmem:[#allocation13 + $0x138] sm:$0xff]
    %v1603 = vld [vmem:[#allocation13 + $0x140] sm:$0xff]
    %v1604 = vld [vmem:[#allocation13 + $0x148] sm:$0xff]
    %v1605 = vld [vmem:[#allocation13 + $0x150] sm:$0xff]
    %v1606 = vld [vmem:[#allocation13 + $0x158] sm:$0xff]
    %v1607 = vld [vmem:[#allocation13 + $0x160] sm:$0xff]
    %v1608 = vld [vmem:[#allocation13 + $0x168] sm:$0xff]
    %v1609 = vld [vmem:[#allocation13 + $0x170] sm:$0xff]
    %v1610 = vld [vmem:[#allocation13 + $0x178] sm:$0xff]
    %v1611 = vld [vmem:[%s6] sm:$0x7]
    %v1613 = vlaneseq
    %v1614 = vshrl.u32 %v1613, 7
    %v1615 = vsub.s32 0, %v1614
    %v1616 = vrot.slane %v1611, %v1615
    %v1617 = vlaneseq
    %v1618 = vshrl.u32 %v1617, 7
    %v1619 = vsub.s32 1, %v1618
    %v1620 = vrot.slane %v1611, %v1619
    %v1621 = vlaneseq
    %v1622 = vshrl.u32 %v1621, 7
    %v1623 = vsub.s32 2, %v1622
    %v1624 = vrot.slane %v1611, %v1623
    %1628 = vmatprep.subr.mxu0 %v1609
    %1629 = vmatpush1.msra.mxu0 %v1608
    %1630 = vmatprep.subr.mxu0 %v1606
    %1631 = vmatpush1.msra.mxu0 %v1605
    %1632 = vmatprep.subr.mxu0 %v1603
    %1633 = vmatpush1.msra.mxu0 %v1602
    %1634 = vmatprep.subr.mxu0 %v1600
    %1635 = vmatpush1.msra.mxu0 %v1599
    %1636 = vmatprep.subr.mxu0 %v1597
    %1637 = vmatpush1.msra.mxu0 %v1596
    %1638 = vmatprep.subr.mxu0 %v1594
    %1639 = vmatpush1.msra.mxu0 %v1593
    %1640 = vmatprep.subr.mxu0 %v1591
    %1641 = vmatpush1.msra.mxu0 %v1590
    %1642 = vmatprep.subr.mxu0 %v1588
    %1643 = vmatpush1.msra.mxu0 %v1587
    %1644 = vmatprep.subr.mxu0 %v1585
    %1645 = vmatpush1.msra.mxu0 %v1584
    %1646 = vmatprep.subr.mxu0 %v1582
    %1647 = vmatpush1.msra.mxu0 %v1581
    %1648 = vmatprep.subr.mxu0 %v1579
    %1649 = vmatpush1.msra.mxu0 %v1578
    %1650 = vmatprep.subr.mxu0 %v1576
    %1651 = vmatpush1.msra.mxu0 %v1575
    %1652 = vmatprep.subr.mxu0 %v1573
    %1653 = vmatpush1.msra.mxu0 %v1572
    %1654 = vmatprep.subr.mxu0 %v1570
    %1655 = vmatpush1.msra.mxu0 %v1569
    %1656 = vmatprep.subr.mxu0 %v1567
    %1657 = vmatpush1.msra.mxu0 %v1566
    %1658 = vmatprep.subr.mxu0 %v1564
    %1659 = vmatpush1.msra.mxu0 %v1563
    %1660 = vmatprep.subr.mxu0 0.0
    %1661 = vmatpush2.msra.mxu0 0.0
    %1662 = vmatprep.subr.mxu0 0.0
    %1663 = vmatpush2.msra.mxu0 0.0
    %1664 = vmatprep.subr.mxu0 0.0
    %1665 = vmatpush2.msra.mxu0 0.0
    %1666 = vmatprep.subr.mxu0 0.0
    %1667 = vmatpush2.msra.mxu0 0.0
    %1668 = vmatprep.subr.mxu0 0.0
    %1669 = vmatpush2.msra.mxu0 0.0
    %1670 = vmatprep.subr.mxu0 0.0
    %1671 = vmatpush2.msra.mxu0 0.0
    %1672 = vmatprep.subr.mxu0 0.0
    %1673 = vmatpush2.msra.mxu0 0.0
    %1674 = vmatprep.subr.mxu0 0.0
    %1675 = vmatpush2.msra.mxu0 0.0
    %1676 = vmatprep.subr.mxu0 0.0
    %1677 = vmatpush2.msra.mxu0 0.0
    %1678 = vmatprep.subr.mxu0 0.0
    %1679 = vmatpush2.msra.mxu0 0.0
    %1680 = vmatprep.subr.mxu0 0.0
    %1681 = vmatpush2.msra.mxu0 0.0
    %1682 = vmatprep.subr.mxu0 0.0
    %1683 = vmatpush2.msra.mxu0 0.0
    %1684 = vmatprep.subr.mxu0 0.0
    %1685 = vmatpush2.msra.mxu0 0.0
    %1686 = vmatprep.subr.mxu0 0.0
    %1687 = vmatpush2.msra.mxu0 0.0
    %1688 = vmatprep.subr.mxu0 0.0
    %1689 = vmatpush2.msra.mxu0 0.0
    %1690 = vmatprep.subr.mxu0 0.0
    %1691 = vmatpush2.msra.mxu0 0.0
    %1692 = vmatprep.mubr.f32.mxu0 0.0
    %1693 = vmatmul.mubr.f32.gmra.mxu0 %v1555
    %v1694 = vpop.f32.mrf.mxu0
    %v1695 = vadd.f32 %v1616, %v1694
    %v1696 = vpop.f32.mrf.mxu0
    %v1697 = vadd.f32 %v1620, %v1696
    %1698 = vdwg.mxu0
    %1699 = vmatprep.subr.mxu0 0.0
    %1700 = vmatpush1.msra.mxu0 %v1610
    %1701 = vmatprep.subr.mxu0 0.0
    %1702 = vmatpush1.msra.mxu0 %v1607
    %1703 = vmatprep.subr.mxu0 0.0
    %1704 = vmatpush1.msra.mxu0 %v1604
    %1705 = vmatprep.subr.mxu0 0.0
    %1706 = vmatpush1.msra.mxu0 %v1601
    %1707 = vmatprep.subr.mxu0 0.0
    %1708 = vmatpush1.msra.mxu0 %v1598
    %1709 = vmatprep.subr.mxu0 0.0
    %1710 = vmatpush1.msra.mxu0 %v1595
    %1711 = vmatprep.subr.mxu0 0.0
    %1712 = vmatpush1.msra.mxu0 %v1592
    %1713 = vmatprep.subr.mxu0 0.0
    %1714 = vmatpush1.msra.mxu0 %v1589
    %1715 = vmatprep.subr.mxu0 0.0
    %1716 = vmatpush1.msra.mxu0 %v1586
    %1717 = vmatprep.subr.mxu0 0.0
    %1718 = vmatpush1.msra.mxu0 %v1583
    %1719 = vmatprep.subr.mxu0 0.0
    %1720 = vmatpush1.msra.mxu0 %v1580
    %1721 = vmatprep.subr.mxu0 0.0
    %1722 = vmatpush1.msra.mxu0 %v1577
    %1723 = vmatprep.subr.mxu0 0.0
    %1724 = vmatpush1.msra.mxu0 %v1574
    %1725 = vmatprep.subr.mxu0 0.0
    %1726 = vmatpush1.msra.mxu0 %v1571
    %1727 = vmatprep.subr.mxu0 0.0
    %1728 = vmatpush1.msra.mxu0 %v1568
    %1729 = vmatprep.subr.mxu0 0.0
    %1730 = vmatpush1.msra.mxu0 %v1565
    %1731 = vmatprep.subr.mxu0 0.0
    %1732 = vmatpush2.msra.mxu0 0.0
    %1733 = vmatprep.subr.mxu0 0.0
    %1734 = vmatpush2.msra.mxu0 0.0
    %1735 = vmatprep.subr.mxu0 0.0
    %1736 = vmatpush2.msra.mxu0 0.0
    %1737 = vmatprep.subr.mxu0 0.0
    %1738 = vmatpush2.msra.mxu0 0.0
    %1739 = vmatprep.subr.mxu0 0.0
    %1740 = vmatpush2.msra.mxu0 0.0
    %1741 = vmatprep.subr.mxu0 0.0
    %1742 = vmatpush2.msra.mxu0 0.0
    %1743 = vmatprep.subr.mxu0 0.0
    %1744 = vmatpush2.msra.mxu0 0.0
    %1745 = vmatprep.subr.mxu0 0.0
    %1746 = vmatpush2.msra.mxu0 0.0
    %1747 = vmatprep.subr.mxu0 0.0
    %1748 = vmatpush2.msra.mxu0 0.0
    %1749 = vmatprep.subr.mxu0 0.0
    %1750 = vmatpush2.msra.mxu0 0.0
    %1751 = vmatprep.subr.mxu0 0.0
    %1752 = vmatpush2.msra.mxu0 0.0
    %1753 = vmatprep.subr.mxu0 0.0
    %1754 = vmatpush2.msra.mxu0 0.0
    %1755 = vmatprep.subr.mxu0 0.0
    %1756 = vmatpush2.msra.mxu0 0.0
    %1757 = vmatprep.subr.mxu0 0.0
    %1758 = vmatpush2.msra.mxu0 0.0
    %1759 = vmatprep.subr.mxu0 0.0
    %1760 = vmatpush2.msra.mxu0 0.0
    %1761 = vmatprep.subr.mxu0 0.0
    %1762 = vmatpush2.msra.mxu0 0.0
    %1763 = vmatprep.mubr.f32.mxu0 0.0
    %1764 = vmatmul.mubr.f32.gmra.mxu0 %v1555
    %v1765 = vpop.f32.mrf.mxu0
    %v1766 = vadd.f32 %v1624, %v1765
    %v1767 = vpop.f32.mrf.mxu0
    %1768 = vdwg.mxu0
    %v1769 = vadd.f32 %v1560, %v1695
    %v1770 = vxor.u32 %v1769, 2147483648
    %v1771 = vmul.f32 %v1770, 1.442695
    %v1772 = vpow.pop %v1771
    %v1773 = vadd.f32 %v1772, 1.0
    %v1774 = vrcp.pop %v1773
    %v1775 = vmul.f32 1.0, %v1774
    %v1776 = vadd.f32 %v1561, %v1697
    %v1777 = vxor.u32 %v1776, 2147483648
    %v1778 = vmul.f32 %v1777, 1.442695
    %v1779 = vpow.pop %v1778
    %v1780 = vadd.f32 %v1779, 1.0
    %v1781 = vrcp.pop %v1780
    %v1782 = vmul.f32 1.0, %v1781
    %v1783 = vmul.f32 %v1775, %v1766
    %v1784 = vadd.f32 %v1562, %v1783
    %v1785 = vtanh.pop %v1784
    %v1786 = vsub.f32 1.0, %v1782
    %v1787 = vmul.f32 %v1786, %v1785
    %v1788 = vmul.f32 %v1782, %v1555
    %v1789 = vadd.f32 %v1787, %v1788
    %1790 = vst [vmem:[#allocation3] sm:$0xff] %v1789
    %s1791 = scalar_lea.vmem [#allocation4], 32
    %1792 = vst [vmem:[%s1791] sm:$0xff] %v1789
    %v1793 = vld [vmem:[#allocation3] sm:$0xff]
    %s1794 = scalar_lea.vmem [#allocation2], 120
    %v1795 = vld [vmem:[%s1794] sm:$0xff]
    %v1796 = vld [vmem:[%s1794 + $0x8] sm:$0xff]
    %v1797 = vld [vmem:[%s1794 + $0x10] sm:$0xff]
    %v1798 = vadd.f32 %v1795, %v530
    %v1799 = vadd.f32 %v1796, %v532
    %v1800 = vadd.f32 %v1797, %v601
    %v1801 = vld [vmem:[#allocation13] sm:$0xff]
    %v1802 = vld [vmem:[#allocation13 + $0x8] sm:$0xff]
    %v1803 = vld [vmem:[#allocation13 + $0x10] sm:$0xff]
    %v1804 = vld [vmem:[#allocation13 + $0x18] sm:$0xff]
    %v1805 = vld [vmem:[#allocation13 + $0x20] sm:$0xff]
    %v1806 = vld [vmem:[#allocation13 + $0x28] sm:$0xff]
    %v1807 = vld [vmem:[#allocation13 + $0x30] sm:$0xff]
    %v1808 = vld [vmem:[#allocation13 + $0x38] sm:$0xff]
    %v1809 = vld [vmem:[#allocation13 + $0x40] sm:$0xff]
    %v1810 = vld [vmem:[#allocation13 + $0x48] sm:$0xff]
    %v1811 = vld [vmem:[#allocation13 + $0x50] sm:$0xff]
    %v1812 = vld [vmem:[#allocation13 + $0x58] sm:$0xff]
    %v1813 = vld [vmem:[#allocation13 + $0x60] sm:$0xff]
    %v1814 = vld [vmem:[#allocation13 + $0x68] sm:$0xff]
    %v1815 = vld [vmem:[#allocation13 + $0x70] sm:$0xff]
    %v1816 = vld [vmem:[#allocation13 + $0x78] sm:$0xff]
    %v1817 = vld [vmem:[#allocation13 + $0x80] sm:$0xff]
    %v1818 = vld [vmem:[#allocation13 + $0x88] sm:$0xff]
    %v1819 = vld [vmem:[#allocation13 + $0x90] sm:$0xff]
    %v1820 = vld [vmem:[#allocation13 + $0x98] sm:$0xff]
    %v1821 = vld [vmem:[#allocation13 + $0xa0] sm:$0xff]
    %v1822 = vld [vmem:[#allocation13 + $0xa8] sm:$0xff]
    %v1823 = vld [vmem:[#allocation13 + $0xb0] sm:$0xff]
    %v1824 = vld [vmem:[#allocation13 + $0xb8] sm:$0xff]
    %v1825 = vld [vmem:[#allocation13 + $0xc0] sm:$0xff]
    %v1826 = vld [vmem:[#allocation13 + $0xc8] sm:$0xff]
    %v1827 = vld [vmem:[#allocation13 + $0xd0] sm:$0xff]
    %v1828 = vld [vmem:[#allocation13 + $0xd8] sm:$0xff]
    %v1829 = vld [vmem:[#allocation13 + $0xe0] sm:$0xff]
    %v1830 = vld [vmem:[#allocation13 + $0xe8] sm:$0xff]
    %v1831 = vld [vmem:[#allocation13 + $0xf0] sm:$0xff]
    %v1832 = vld [vmem:[#allocation13 + $0xf8] sm:$0xff]
    %v1833 = vld [vmem:[#allocation13 + $0x100] sm:$0xff]
    %v1834 = vld [vmem:[#allocation13 + $0x108] sm:$0xff]
    %v1835 = vld [vmem:[#allocation13 + $0x110] sm:$0xff]
    %v1836 = vld [vmem:[#allocation13 + $0x118] sm:$0xff]
    %v1837 = vld [vmem:[#allocation13 + $0x120] sm:$0xff]
    %v1838 = vld [vmem:[#allocation13 + $0x128] sm:$0xff]
    %v1839 = vld [vmem:[#allocation13 + $0x130] sm:$0xff]
    %v1840 = vld [vmem:[#allocation13 + $0x138] sm:$0xff]
    %v1841 = vld [vmem:[#allocation13 + $0x140] sm:$0xff]
    %v1842 = vld [vmem:[#allocation13 + $0x148] sm:$0xff]
    %v1843 = vld [vmem:[#allocation13 + $0x150] sm:$0xff]
    %v1844 = vld [vmem:[#allocation13 + $0x158] sm:$0xff]
    %v1845 = vld [vmem:[#allocation13 + $0x160] sm:$0xff]
    %v1846 = vld [vmem:[#allocation13 + $0x168] sm:$0xff]
    %v1847 = vld [vmem:[#allocation13 + $0x170] sm:$0xff]
    %v1848 = vld [vmem:[#allocation13 + $0x178] sm:$0xff]
    %v1849 = vld [vmem:[%s6] sm:$0x7]
    %v1851 = vlaneseq
    %v1852 = vshrl.u32 %v1851, 7
    %v1853 = vsub.s32 0, %v1852
    %v1854 = vrot.slane %v1849, %v1853
    %v1855 = vlaneseq
    %v1856 = vshrl.u32 %v1855, 7
    %v1857 = vsub.s32 1, %v1856
    %v1858 = vrot.slane %v1849, %v1857
    %v1859 = vlaneseq
    %v1860 = vshrl.u32 %v1859, 7
    %v1861 = vsub.s32 2, %v1860
    %v1862 = vrot.slane %v1849, %v1861
    %1866 = vmatprep.subr.mxu0 %v1847
    %1867 = vmatpush1.msra.mxu0 %v1846
    %1868 = vmatprep.subr.mxu0 %v1844
    %1869 = vmatpush1.msra.mxu0 %v1843
    %1870 = vmatprep.subr.mxu0 %v1841
    %1871 = vmatpush1.msra.mxu0 %v1840
    %1872 = vmatprep.subr.mxu0 %v1838
    %1873 = vmatpush1.msra.mxu0 %v1837
    %1874 = vmatprep.subr.mxu0 %v1835
    %1875 = vmatpush1.msra.mxu0 %v1834
    %1876 = vmatprep.subr.mxu0 %v1832
    %1877 = vmatpush1.msra.mxu0 %v1831
    %1878 = vmatprep.subr.mxu0 %v1829
    %1879 = vmatpush1.msra.mxu0 %v1828
    %1880 = vmatprep.subr.mxu0 %v1826
    %1881 = vmatpush1.msra.mxu0 %v1825
    %1882 = vmatprep.subr.mxu0 %v1823
    %1883 = vmatpush1.msra.mxu0 %v1822
    %1884 = vmatprep.subr.mxu0 %v1820
    %1885 = vmatpush1.msra.mxu0 %v1819
    %1886 = vmatprep.subr.mxu0 %v1817
    %1887 = vmatpush1.msra.mxu0 %v1816
    %1888 = vmatprep.subr.mxu0 %v1814
    %1889 = vmatpush1.msra.mxu0 %v1813
    %1890 = vmatprep.subr.mxu0 %v1811
    %1891 = vmatpush1.msra.mxu0 %v1810
    %1892 = vmatprep.subr.mxu0 %v1808
    %1893 = vmatpush1.msra.mxu0 %v1807
    %1894 = vmatprep.subr.mxu0 %v1805
    %1895 = vmatpush1.msra.mxu0 %v1804
    %1896 = vmatprep.subr.mxu0 %v1802
    %1897 = vmatpush1.msra.mxu0 %v1801
    %1898 = vmatprep.subr.mxu0 0.0
    %1899 = vmatpush2.msra.mxu0 0.0
    %1900 = vmatprep.subr.mxu0 0.0
    %1901 = vmatpush2.msra.mxu0 0.0
    %1902 = vmatprep.subr.mxu0 0.0
    %1903 = vmatpush2.msra.mxu0 0.0
    %1904 = vmatprep.subr.mxu0 0.0
    %1905 = vmatpush2.msra.mxu0 0.0
    %1906 = vmatprep.subr.mxu0 0.0
    %1907 = vmatpush2.msra.mxu0 0.0
    %1908 = vmatprep.subr.mxu0 0.0
    %1909 = vmatpush2.msra.mxu0 0.0
    %1910 = vmatprep.subr.mxu0 0.0
    %1911 = vmatpush2.msra.mxu0 0.0
    %1912 = vmatprep.subr.mxu0 0.0
    %1913 = vmatpush2.msra.mxu0 0.0
    %1914 = vmatprep.subr.mxu0 0.0
    %1915 = vmatpush2.msra.mxu0 0.0
    %1916 = vmatprep.subr.mxu0 0.0
    %1917 = vmatpush2.msra.mxu0 0.0
    %1918 = vmatprep.subr.mxu0 0.0
    %1919 = vmatpush2.msra.mxu0 0.0
    %1920 = vmatprep.subr.mxu0 0.0
    %1921 = vmatpush2.msra.mxu0 0.0
    %1922 = vmatprep.subr.mxu0 0.0
    %1923 = vmatpush2.msra.mxu0 0.0
    %1924 = vmatprep.subr.mxu0 0.0
    %1925 = vmatpush2.msra.mxu0 0.0
    %1926 = vmatprep.subr.mxu0 0.0
    %1927 = vmatpush2.msra.mxu0 0.0
    %1928 = vmatprep.subr.mxu0 0.0
    %1929 = vmatpush2.msra.mxu0 0.0
    %1930 = vmatprep.mubr.f32.mxu0 0.0
    %1931 = vmatmul.mubr.f32.gmra.mxu0 %v1793
    %v1932 = vpop.f32.mrf.mxu0
    %v1933 = vadd.f32 %v1854, %v1932
    %v1934 = vpop.f32.mrf.mxu0
    %v1935 = vadd.f32 %v1858, %v1934
    %1936 = vdwg.mxu0
    %1937 = vmatprep.subr.mxu0 0.0
    %1938 = vmatpush1.msra.mxu0 %v1848
    %1939 = vmatprep.subr.mxu0 0.0
    %1940 = vmatpush1.msra.mxu0 %v1845
    %1941 = vmatprep.subr.mxu0 0.0
    %1942 = vmatpush1.msra.mxu0 %v1842
    %1943 = vmatprep.subr.mxu0 0.0
    %1944 = vmatpush1.msra.mxu0 %v1839
    %1945 = vmatprep.subr.mxu0 0.0
    %1946 = vmatpush1.msra.mxu0 %v1836
    %1947 = vmatprep.subr.mxu0 0.0
    %1948 = vmatpush1.msra.mxu0 %v1833
    %1949 = vmatprep.subr.mxu0 0.0
    %1950 = vmatpush1.msra.mxu0 %v1830
    %1951 = vmatprep.subr.mxu0 0.0
    %1952 = vmatpush1.msra.mxu0 %v1827
    %1953 = vmatprep.subr.mxu0 0.0
    %1954 = vmatpush1.msra.mxu0 %v1824
    %1955 = vmatprep.subr.mxu0 0.0
    %1956 = vmatpush1.msra.mxu0 %v1821
    %1957 = vmatprep.subr.mxu0 0.0
    %1958 = vmatpush1.msra.mxu0 %v1818
    %1959 = vmatprep.subr.mxu0 0.0
    %1960 = vmatpush1.msra.mxu0 %v1815
    %1961 = vmatprep.subr.mxu0 0.0
    %1962 = vmatpush1.msra.mxu0 %v1812
    %1963 = vmatprep.subr.mxu0 0.0
    %1964 = vmatpush1.msra.mxu0 %v1809
    %1965 = vmatprep.subr.mxu0 0.0
    %1966 = vmatpush1.msra.mxu0 %v1806
    %1967 = vmatprep.subr.mxu0 0.0
    %1968 = vmatpush1.msra.mxu0 %v1803
    %1969 = vmatprep.subr.mxu0 0.0
    %1970 = vmatpush2.msra.mxu0 0.0
    %1971 = vmatprep.subr.mxu0 0.0
    %1972 = vmatpush2.msra.mxu0 0.0
    %1973 = vmatprep.subr.mxu0 0.0
    %1974 = vmatpush2.msra.mxu0 0.0
    %1975 = vmatprep.subr.mxu0 0.0
    %1976 = vmatpush2.msra.mxu0 0.0
    %1977 = vmatprep.subr.mxu0 0.0
    %1978 = vmatpush2.msra.mxu0 0.0
    %1979 = vmatprep.subr.mxu0 0.0
    %1980 = vmatpush2.msra.mxu0 0.0
    %1981 = vmatprep.subr.mxu0 0.0
    %1982 = vmatpush2.msra.mxu0 0.0
    %1983 = vmatprep.subr.mxu0 0.0
    %1984 = vmatpush2.msra.mxu0 0.0
    %1985 = vmatprep.subr.mxu0 0.0
    %1986 = vmatpush2.msra.mxu0 0.0
    %1987 = vmatprep.subr.mxu0 0.0
    %1988 = vmatpush2.msra.mxu0 0.0
    %1989 = vmatprep.subr.mxu0 0.0
    %1990 = vmatpush2.msra.mxu0 0.0
    %1991 = vmatprep.subr.mxu0 0.0
    %1992 = vmatpush2.msra.mxu0 0.0
    %1993 = vmatprep.subr.mxu0 0.0
    %1994 = vmatpush2.msra.mxu0 0.0
    %1995 = vmatprep.subr.mxu0 0.0
    %1996 = vmatpush2.msra.mxu0 0.0
    %1997 = vmatprep.subr.mxu0 0.0
    %1998 = vmatpush2.msra.mxu0 0.0
    %1999 = vmatprep.subr.mxu0 0.0
    %2000 = vmatpush2.msra.mxu0 0.0
    %2001 = vmatprep.mubr.f32.mxu0 0.0
    %2002 = vmatmul.mubr.f32.gmra.mxu0 %v1793
    %v2003 = vpop.f32.mrf.mxu0
    %v2004 = vadd.f32 %v1862, %v2003
    %v2005 = vpop.f32.mrf.mxu0
    %2006 = vdwg.mxu0
    %v2007 = vadd.f32 %v1798, %v1933
    %v2008 = vxor.u32 %v2007, 2147483648
    %v2009 = vmul.f32 %v2008, 1.442695
    %v2010 = vpow.pop %v2009
    %v2011 = vadd.f32 %v2010, 1.0
    %v2012 = vrcp.pop %v2011
    %v2013 = vmul.f32 1.0, %v2012
    %v2014 = vadd.f32 %v1799, %v1935
    %v2015 = vxor.u32 %v2014, 2147483648
    %v2016 = vmul.f32 %v2015, 1.442695
    %v2017 = vpow.pop %v2016
    %v2018 = vadd.f32 %v2017, 1.0
    %v2019 = vrcp.pop %v2018
    %v2020 = vmul.f32 1.0, %v2019
    %v2021 = vmul.f32 %v2013, %v2004
    %v2022 = vadd.f32 %v1800, %v2021
    %v2023 = vtanh.pop %v2022
    %v2024 = vsub.f32 1.0, %v2020
    %v2025 = vmul.f32 %v2024, %v2023
    %v2026 = vmul.f32 %v2020, %v1793
    %v2027 = vadd.f32 %v2025, %v2026
    %2028 = vst [vmem:[#allocation3] sm:$0xff] %v2027
    %s2029 = scalar_lea.vmem [#allocation4], 40
    %2030 = vst [vmem:[%s2029] sm:$0xff] %v2027
    %v2031 = vld [vmem:[#allocation3] sm:$0xff]
    %s2032 = scalar_lea.vmem [#allocation2], 144
    %v2033 = vld [vmem:[%s2032] sm:$0xff]
    %v2034 = vld [vmem:[%s2032 + $0x8] sm:$0xff]
    %v2035 = vld [vmem:[%s2032 + $0x10] sm:$0xff]
    %v2036 = vadd.f32 %v2033, %v530
    %v2037 = vadd.f32 %v2034, %v532
    %v2038 = vadd.f32 %v2035, %v601
    %v2039 = vld [vmem:[#allocation13] sm:$0xff]
    %v2040 = vld [vmem:[#allocation13 + $0x8] sm:$0xff]
    %v2041 = vld [vmem:[#allocation13 + $0x10] sm:$0xff]
    %v2042 = vld [vmem:[#allocation13 + $0x18] sm:$0xff]
    %v2043 = vld [vmem:[#allocation13 + $0x20] sm:$0xff]
    %v2044 = vld [vmem:[#allocation13 + $0x28] sm:$0xff]
    %v2045 = vld [vmem:[#allocation13 + $0x30] sm:$0xff]
    %v2046 = vld [vmem:[#allocation13 + $0x38] sm:$0xff]
    %v2047 = vld [vmem:[#allocation13 + $0x40] sm:$0xff]
    %v2048 = vld [vmem:[#allocation13 + $0x48] sm:$0xff]
    %v2049 = vld [vmem:[#allocation13 + $0x50] sm:$0xff]
    %v2050 = vld [vmem:[#allocation13 + $0x58] sm:$0xff]
    %v2051 = vld [vmem:[#allocation13 + $0x60] sm:$0xff]
    %v2052 = vld [vmem:[#allocation13 + $0x68] sm:$0xff]
    %v2053 = vld [vmem:[#allocation13 + $0x70] sm:$0xff]
    %v2054 = vld [vmem:[#allocation13 + $0x78] sm:$0xff]
    %v2055 = vld [vmem:[#allocation13 + $0x80] sm:$0xff]
    %v2056 = vld [vmem:[#allocation13 + $0x88] sm:$0xff]
    %v2057 = vld [vmem:[#allocation13 + $0x90] sm:$0xff]
    %v2058 = vld [vmem:[#allocation13 + $0x98] sm:$0xff]
    %v2059 = vld [vmem:[#allocation13 + $0xa0] sm:$0xff]
    %v2060 = vld [vmem:[#allocation13 + $0xa8] sm:$0xff]
    %v2061 = vld [vmem:[#allocation13 + $0xb0] sm:$0xff]
    %v2062 = vld [vmem:[#allocation13 + $0xb8] sm:$0xff]
    %v2063 = vld [vmem:[#allocation13 + $0xc0] sm:$0xff]
    %v2064 = vld [vmem:[#allocation13 + $0xc8] sm:$0xff]
    %v2065 = vld [vmem:[#allocation13 + $0xd0] sm:$0xff]
    %v2066 = vld [vmem:[#allocation13 + $0xd8] sm:$0xff]
    %v2067 = vld [vmem:[#allocation13 + $0xe0] sm:$0xff]
    %v2068 = vld [vmem:[#allocation13 + $0xe8] sm:$0xff]
    %v2069 = vld [vmem:[#allocation13 + $0xf0] sm:$0xff]
    %v2070 = vld [vmem:[#allocation13 + $0xf8] sm:$0xff]
    %v2071 = vld [vmem:[#allocation13 + $0x100] sm:$0xff]
    %v2072 = vld [vmem:[#allocation13 + $0x108] sm:$0xff]
    %v2073 = vld [vmem:[#allocation13 + $0x110] sm:$0xff]
    %v2074 = vld [vmem:[#allocation13 + $0x118] sm:$0xff]
    %v2075 = vld [vmem:[#allocation13 + $0x120] sm:$0xff]
    %v2076 = vld [vmem:[#allocation13 + $0x128] sm:$0xff]
    %v2077 = vld [vmem:[#allocation13 + $0x130] sm:$0xff]
    %v2078 = vld [vmem:[#allocation13 + $0x138] sm:$0xff]
    %v2079 = vld [vmem:[#allocation13 + $0x140] sm:$0xff]
    %v2080 = vld [vmem:[#allocation13 + $0x148] sm:$0xff]
    %v2081 = vld [vmem:[#allocation13 + $0x150] sm:$0xff]
    %v2082 = vld [vmem:[#allocation13 + $0x158] sm:$0xff]
    %v2083 = vld [vmem:[#allocation13 + $0x160] sm:$0xff]
    %v2084 = vld [vmem:[#allocation13 + $0x168] sm:$0xff]
    %v2085 = vld [vmem:[#allocation13 + $0x170] sm:$0xff]
    %v2086 = vld [vmem:[#allocation13 + $0x178] sm:$0xff]
    %v2087 = vld [vmem:[%s6] sm:$0x7]
    %v2089 = vlaneseq
    %v2090 = vshrl.u32 %v2089, 7
    %v2091 = vsub.s32 0, %v2090
    %v2092 = vrot.slane %v2087, %v2091
    %v2093 = vlaneseq
    %v2094 = vshrl.u32 %v2093, 7
    %v2095 = vsub.s32 1, %v2094
    %v2096 = vrot.slane %v2087, %v2095
    %v2097 = vlaneseq
    %v2098 = vshrl.u32 %v2097, 7
    %v2099 = vsub.s32 2, %v2098
    %v2100 = vrot.slane %v2087, %v2099
    %2104 = vmatprep.subr.mxu0 %v2085
    %2105 = vmatpush1.msra.mxu0 %v2084
    %2106 = vmatprep.subr.mxu0 %v2082
    %2107 = vmatpush1.msra.mxu0 %v2081
    %2108 = vmatprep.subr.mxu0 %v2079
    %2109 = vmatpush1.msra.mxu0 %v2078
    %2110 = vmatprep.subr.mxu0 %v2076
    %2111 = vmatpush1.msra.mxu0 %v2075
    %2112 = vmatprep.subr.mxu0 %v2073
    %2113 = vmatpush1.msra.mxu0 %v2072
    %2114 = vmatprep.subr.mxu0 %v2070
    %2115 = vmatpush1.msra.mxu0 %v2069
    %2116 = vmatprep.subr.mxu0 %v2067
    %2117 = vmatpush1.msra.mxu0 %v2066
    %2118 = vmatprep.subr.mxu0 %v2064
    %2119 = vmatpush1.msra.mxu0 %v2063
    %2120 = vmatprep.subr.mxu0 %v2061
    %2121 = vmatpush1.msra.mxu0 %v2060
    %2122 = vmatprep.subr.mxu0 %v2058
    %2123 = vmatpush1.msra.mxu0 %v2057
    %2124 = vmatprep.subr.mxu0 %v2055
    %2125 = vmatpush1.msra.mxu0 %v2054
    %2126 = vmatprep.subr.mxu0 %v2052
    %2127 = vmatpush1.msra.mxu0 %v2051
    %2128 = vmatprep.subr.mxu0 %v2049
    %2129 = vmatpush1.msra.mxu0 %v2048
    %2130 = vmatprep.subr.mxu0 %v2046
    %2131 = vmatpush1.msra.mxu0 %v2045
    %2132 = vmatprep.subr.mxu0 %v2043
    %2133 = vmatpush1.msra.mxu0 %v2042
    %2134 = vmatprep.subr.mxu0 %v2040
    %2135 = vmatpush1.msra.mxu0 %v2039
    %2136 = vmatprep.subr.mxu0 0.0
    %2137 = vmatpush2.msra.mxu0 0.0
    %2138 = vmatprep.subr.mxu0 0.0
    %2139 = vmatpush2.msra.mxu0 0.0
    %2140 = vmatprep.subr.mxu0 0.0
    %2141 = vmatpush2.msra.mxu0 0.0
    %2142 = vmatprep.subr.mxu0 0.0
    %2143 = vmatpush2.msra.mxu0 0.0
    %2144 = vmatprep.subr.mxu0 0.0
    %2145 = vmatpush2.msra.mxu0 0.0
    %2146 = vmatprep.subr.mxu0 0.0
    %2147 = vmatpush2.msra.mxu0 0.0
    %2148 = vmatprep.subr.mxu0 0.0
    %2149 = vmatpush2.msra.mxu0 0.0
    %2150 = vmatprep.subr.mxu0 0.0
    %2151 = vmatpush2.msra.mxu0 0.0
    %2152 = vmatprep.subr.mxu0 0.0
    %2153 = vmatpush2.msra.mxu0 0.0
    %2154 = vmatprep.subr.mxu0 0.0
    %2155 = vmatpush2.msra.mxu0 0.0
    %2156 = vmatprep.subr.mxu0 0.0
    %2157 = vmatpush2.msra.mxu0 0.0
    %2158 = vmatprep.subr.mxu0 0.0
    %2159 = vmatpush2.msra.mxu0 0.0
    %2160 = vmatprep.subr.mxu0 0.0
    %2161 = vmatpush2.msra.mxu0 0.0
    %2162 = vmatprep.subr.mxu0 0.0
    %2163 = vmatpush2.msra.mxu0 0.0
    %2164 = vmatprep.subr.mxu0 0.0
    %2165 = vmatpush2.msra.mxu0 0.0
    %2166 = vmatprep.subr.mxu0 0.0
    %2167 = vmatpush2.msra.mxu0 0.0
    %2168 = vmatprep.mubr.f32.mxu0 0.0
    %2169 = vmatmul.mubr.f32.gmra.mxu0 %v2031
    %v2170 = vpop.f32.mrf.mxu0
    %v2171 = vadd.f32 %v2092, %v2170
    %v2172 = vpop.f32.mrf.mxu0
    %v2173 = vadd.f32 %v2096, %v2172
    %2174 = vdwg.mxu0
    %2175 = vmatprep.subr.mxu0 0.0
    %2176 = vmatpush1.msra.mxu0 %v2086
    %2177 = vmatprep.subr.mxu0 0.0
    %2178 = vmatpush1.msra.mxu0 %v2083
    %2179 = vmatprep.subr.mxu0 0.0
    %2180 = vmatpush1.msra.mxu0 %v2080
    %2181 = vmatprep.subr.mxu0 0.0
    %2182 = vmatpush1.msra.mxu0 %v2077
    %2183 = vmatprep.subr.mxu0 0.0
    %2184 = vmatpush1.msra.mxu0 %v2074
    %2185 = vmatprep.subr.mxu0 0.0
    %2186 = vmatpush1.msra.mxu0 %v2071
    %2187 = vmatprep.subr.mxu0 0.0
    %2188 = vmatpush1.msra.mxu0 %v2068
    %2189 = vmatprep.subr.mxu0 0.0
    %2190 = vmatpush1.msra.mxu0 %v2065
    %2191 = vmatprep.subr.mxu0 0.0
    %2192 = vmatpush1.msra.mxu0 %v2062
    %2193 = vmatprep.subr.mxu0 0.0
    %2194 = vmatpush1.msra.mxu0 %v2059
    %2195 = vmatprep.subr.mxu0 0.0
    %2196 = vmatpush1.msra.mxu0 %v2056
    %2197 = vmatprep.subr.mxu0 0.0
    %2198 = vmatpush1.msra.mxu0 %v2053
    %2199 = vmatprep.subr.mxu0 0.0
    %2200 = vmatpush1.msra.mxu0 %v2050
    %2201 = vmatprep.subr.mxu0 0.0
    %2202 = vmatpush1.msra.mxu0 %v2047
    %2203 = vmatprep.subr.mxu0 0.0
    %2204 = vmatpush1.msra.mxu0 %v2044
    %2205 = vmatprep.subr.mxu0 0.0
    %2206 = vmatpush1.msra.mxu0 %v2041
    %2207 = vmatprep.subr.mxu0 0.0
    %2208 = vmatpush2.msra.mxu0 0.0
    %2209 = vmatprep.subr.mxu0 0.0
    %2210 = vmatpush2.msra.mxu0 0.0
    %2211 = vmatprep.subr.mxu0 0.0
    %2212 = vmatpush2.msra.mxu0 0.0
    %2213 = vmatprep.subr.mxu0 0.0
    %2214 = vmatpush2.msra.mxu0 0.0
    %2215 = vmatprep.subr.mxu0 0.0
    %2216 = vmatpush2.msra.mxu0 0.0
    %2217 = vmatprep.subr.mxu0 0.0
    %2218 = vmatpush2.msra.mxu0 0.0
    %2219 = vmatprep.subr.mxu0 0.0
    %2220 = vmatpush2.msra.mxu0 0.0
    %2221 = vmatprep.subr.mxu0 0.0
    %2222 = vmatpush2.msra.mxu0 0.0
    %2223 = vmatprep.subr.mxu0 0.0
    %2224 = vmatpush2.msra.mxu0 0.0
    %2225 = vmatprep.subr.mxu0 0.0
    %2226 = vmatpush2.msra.mxu0 0.0
    %2227 = vmatprep.subr.mxu0 0.0
    %2228 = vmatpush2.msra.mxu0 0.0
    %2229 = vmatprep.subr.mxu0 0.0
    %2230 = vmatpush2.msra.mxu0 0.0
    %2231 = vmatprep.subr.mxu0 0.0
    %2232 = vmatpush2.msra.mxu0 0.0
    %2233 = vmatprep.subr.mxu0 0.0
    %2234 = vmatpush2.msra.mxu0 0.0
    %2235 = vmatprep.subr.mxu0 0.0
    %2236 = vmatpush2.msra.mxu0 0.0
    %2237 = vmatprep.subr.mxu0 0.0
    %2238 = vmatpush2.msra.mxu0 0.0
    %2239 = vmatprep.mubr.f32.mxu0 0.0
    %2240 = vmatmul.mubr.f32.gmra.mxu0 %v2031
    %v2241 = vpop.f32.mrf.mxu0
    %v2242 = vadd.f32 %v2100, %v2241
    %v2243 = vpop.f32.mrf.mxu0
    %2244 = vdwg.mxu0
    %v2245 = vadd.f32 %v2036, %v2171
    %v2246 = vxor.u32 %v2245, 2147483648
    %v2247 = vmul.f32 %v2246, 1.442695
    %v2248 = vpow.pop %v2247
    %v2249 = vadd.f32 %v2248, 1.0
    %v2250 = vrcp.pop %v2249
    %v2251 = vmul.f32 1.0, %v2250
    %v2252 = vadd.f32 %v2037, %v2173
    %v2253 = vxor.u32 %v2252, 2147483648
    %v2254 = vmul.f32 %v2253, 1.442695
    %v2255 = vpow.pop %v2254
    %v2256 = vadd.f32 %v2255, 1.0
    %v2257 = vrcp.pop %v2256
    %v2258 = vmul.f32 1.0, %v2257
    %v2259 = vmul.f32 %v2251, %v2242
    %v2260 = vadd.f32 %v2038, %v2259
    %v2261 = vtanh.pop %v2260
    %v2262 = vsub.f32 1.0, %v2258
    %v2263 = vmul.f32 %v2262, %v2261
    %v2264 = vmul.f32 %v2258, %v2031
    %v2265 = vadd.f32 %v2263, %v2264
    %2266 = vst [vmem:[#allocation3] sm:$0xff] %v2265
    %s2267 = scalar_lea.vmem [#allocation4], 48
    %2268 = vst [vmem:[%s2267] sm:$0xff] %v2265
    %v2269 = vld [vmem:[#allocation3] sm:$0xff]
    %s2270 = scalar_lea.vmem [#allocation2], 168
    %v2271 = vld [vmem:[%s2270] sm:$0xff]
    %v2272 = vld [vmem:[%s2270 + $0x8] sm:$0xff]
    %v2273 = vld [vmem:[%s2270 + $0x10] sm:$0xff]
    %v2274 = vadd.f32 %v2271, %v530
    %v2275 = vadd.f32 %v2272, %v532
    %v2276 = vadd.f32 %v2273, %v601
    %v2277 = vld [vmem:[#allocation13] sm:$0xff]
    %v2278 = vld [vmem:[#allocation13 + $0x8] sm:$0xff]
    %v2279 = vld [vmem:[#allocation13 + $0x10] sm:$0xff]
    %v2280 = vld [vmem:[#allocation13 + $0x18] sm:$0xff]
    %v2281 = vld [vmem:[#allocation13 + $0x20] sm:$0xff]
    %v2282 = vld [vmem:[#allocation13 + $0x28] sm:$0xff]
    %v2283 = vld [vmem:[#allocation13 + $0x30] sm:$0xff]
    %v2284 = vld [vmem:[#allocation13 + $0x38] sm:$0xff]
    %v2285 = vld [vmem:[#allocation13 + $0x40] sm:$0xff]
    %v2286 = vld [vmem:[#allocation13 + $0x48] sm:$0xff]
    %v2287 = vld [vmem:[#allocation13 + $0x50] sm:$0xff]
    %v2288 = vld [vmem:[#allocation13 + $0x58] sm:$0xff]
    %v2289 = vld [vmem:[#allocation13 + $0x60] sm:$0xff]
    %v2290 = vld [vmem:[#allocation13 + $0x68] sm:$0xff]
    %v2291 = vld [vmem:[#allocation13 + $0x70] sm:$0xff]
    %v2292 = vld [vmem:[#allocation13 + $0x78] sm:$0xff]
    %v2293 = vld [vmem:[#allocation13 + $0x80] sm:$0xff]
    %v2294 = vld [vmem:[#allocation13 + $0x88] sm:$0xff]
    %v2295 = vld [vmem:[#allocation13 + $0x90] sm:$0xff]
    %v2296 = vld [vmem:[#allocation13 + $0x98] sm:$0xff]
    %v2297 = vld [vmem:[#allocation13 + $0xa0] sm:$0xff]
    %v2298 = vld [vmem:[#allocation13 + $0xa8] sm:$0xff]
    %v2299 = vld [vmem:[#allocation13 + $0xb0] sm:$0xff]
    %v2300 = vld [vmem:[#allocation13 + $0xb8] sm:$0xff]
    %v2301 = vld [vmem:[#allocation13 + $0xc0] sm:$0xff]
    %v2302 = vld [vmem:[#allocation13 + $0xc8] sm:$0xff]
    %v2303 = vld [vmem:[#allocation13 + $0xd0] sm:$0xff]
    %v2304 = vld [vmem:[#allocation13 + $0xd8] sm:$0xff]
    %v2305 = vld [vmem:[#allocation13 + $0xe0] sm:$0xff]
    %v2306 = vld [vmem:[#allocation13 + $0xe8] sm:$0xff]
    %v2307 = vld [vmem:[#allocation13 + $0xf0] sm:$0xff]
    %v2308 = vld [vmem:[#allocation13 + $0xf8] sm:$0xff]
    %v2309 = vld [vmem:[#allocation13 + $0x100] sm:$0xff]
    %v2310 = vld [vmem:[#allocation13 + $0x108] sm:$0xff]
    %v2311 = vld [vmem:[#allocation13 + $0x110] sm:$0xff]
    %v2312 = vld [vmem:[#allocation13 + $0x118] sm:$0xff]
    %v2313 = vld [vmem:[#allocation13 + $0x120] sm:$0xff]
    %v2314 = vld [vmem:[#allocation13 + $0x128] sm:$0xff]
    %v2315 = vld [vmem:[#allocation13 + $0x130] sm:$0xff]
    %v2316 = vld [vmem:[#allocation13 + $0x138] sm:$0xff]
    %v2317 = vld [vmem:[#allocation13 + $0x140] sm:$0xff]
    %v2318 = vld [vmem:[#allocation13 + $0x148] sm:$0xff]
    %v2319 = vld [vmem:[#allocation13 + $0x150] sm:$0xff]
    %v2320 = vld [vmem:[#allocation13 + $0x158] sm:$0xff]
    %v2321 = vld [vmem:[#allocation13 + $0x160] sm:$0xff]
    %v2322 = vld [vmem:[#allocation13 + $0x168] sm:$0xff]
    %v2323 = vld [vmem:[#allocation13 + $0x170] sm:$0xff]
    %v2324 = vld [vmem:[#allocation13 + $0x178] sm:$0xff]
    %v2325 = vld [vmem:[%s6] sm:$0x7]
    %v2327 = vlaneseq
    %v2328 = vshrl.u32 %v2327, 7
    %v2329 = vsub.s32 0, %v2328
    %v2330 = vrot.slane %v2325, %v2329
    %v2331 = vlaneseq
    %v2332 = vshrl.u32 %v2331, 7
    %v2333 = vsub.s32 1, %v2332
    %v2334 = vrot.slane %v2325, %v2333
    %v2335 = vlaneseq
    %v2336 = vshrl.u32 %v2335, 7
    %v2337 = vsub.s32 2, %v2336
    %v2338 = vrot.slane %v2325, %v2337
    %2342 = vmatprep.subr.mxu0 %v2323
    %2343 = vmatpush1.msra.mxu0 %v2322
    %2344 = vmatprep.subr.mxu0 %v2320
    %2345 = vmatpush1.msra.mxu0 %v2319
    %2346 = vmatprep.subr.mxu0 %v2317
    %2347 = vmatpush1.msra.mxu0 %v2316
    %2348 = vmatprep.subr.mxu0 %v2314
    %2349 = vmatpush1.msra.mxu0 %v2313
    %2350 = vmatprep.subr.mxu0 %v2311
    %2351 = vmatpush1.msra.mxu0 %v2310
    %2352 = vmatprep.subr.mxu0 %v2308
    %2353 = vmatpush1.msra.mxu0 %v2307
    %2354 = vmatprep.subr.mxu0 %v2305
    %2355 = vmatpush1.msra.mxu0 %v2304
    %2356 = vmatprep.subr.mxu0 %v2302
    %2357 = vmatpush1.msra.mxu0 %v2301
    %2358 = vmatprep.subr.mxu0 %v2299
    %2359 = vmatpush1.msra.mxu0 %v2298
    %2360 = vmatprep.subr.mxu0 %v2296
    %2361 = vmatpush1.msra.mxu0 %v2295
    %2362 = vmatprep.subr.mxu0 %v2293
    %2363 = vmatpush1.msra.mxu0 %v2292
    %2364 = vmatprep.subr.mxu0 %v2290
    %2365 = vmatpush1.msra.mxu0 %v2289
    %2366 = vmatprep.subr.mxu0 %v2287
    %2367 = vmatpush1.msra.mxu0 %v2286
    %2368 = vmatprep.subr.mxu0 %v2284
    %2369 = vmatpush1.msra.mxu0 %v2283
    %2370 = vmatprep.subr.mxu0 %v2281
    %2371 = vmatpush1.msra.mxu0 %v2280
    %2372 = vmatprep.subr.mxu0 %v2278
    %2373 = vmatpush1.msra.mxu0 %v2277
    %2374 = vmatprep.subr.mxu0 0.0
    %2375 = vmatpush2.msra.mxu0 0.0
    %2376 = vmatprep.subr.mxu0 0.0
    %2377 = vmatpush2.msra.mxu0 0.0
    %2378 = vmatprep.subr.mxu0 0.0
    %2379 = vmatpush2.msra.mxu0 0.0
    %2380 = vmatprep.subr.mxu0 0.0
    %2381 = vmatpush2.msra.mxu0 0.0
    %2382 = vmatprep.subr.mxu0 0.0
    %2383 = vmatpush2.msra.mxu0 0.0
    %2384 = vmatprep.subr.mxu0 0.0
    %2385 = vmatpush2.msra.mxu0 0.0
    %2386 = vmatprep.subr.mxu0 0.0
    %2387 = vmatpush2.msra.mxu0 0.0
    %2388 = vmatprep.subr.mxu0 0.0
    %2389 = vmatpush2.msra.mxu0 0.0
    %2390 = vmatprep.subr.mxu0 0.0
    %2391 = vmatpush2.msra.mxu0 0.0
    %2392 = vmatprep.subr.mxu0 0.0
    %2393 = vmatpush2.msra.mxu0 0.0
    %2394 = vmatprep.subr.mxu0 0.0
    %2395 = vmatpush2.msra.mxu0 0.0
    %2396 = vmatprep.subr.mxu0 0.0
    %2397 = vmatpush2.msra.mxu0 0.0
    %2398 = vmatprep.subr.mxu0 0.0
    %2399 = vmatpush2.msra.mxu0 0.0
    %2400 = vmatprep.subr.mxu0 0.0
    %2401 = vmatpush2.msra.mxu0 0.0
    %2402 = vmatprep.subr.mxu0 0.0
    %2403 = vmatpush2.msra.mxu0 0.0
    %2404 = vmatprep.subr.mxu0 0.0
    %2405 = vmatpush2.msra.mxu0 0.0
    %2406 = vmatprep.mubr.f32.mxu0 0.0
    %2407 = vmatmul.mubr.f32.gmra.mxu0 %v2269
    %v2408 = vpop.f32.mrf.mxu0
    %v2409 = vadd.f32 %v2330, %v2408
    %v2410 = vpop.f32.mrf.mxu0
    %v2411 = vadd.f32 %v2334, %v2410
    %2412 = vdwg.mxu0
    %2413 = vmatprep.subr.mxu0 0.0
    %2414 = vmatpush1.msra.mxu0 %v2324
    %2415 = vmatprep.subr.mxu0 0.0
    %2416 = vmatpush1.msra.mxu0 %v2321
    %2417 = vmatprep.subr.mxu0 0.0
    %2418 = vmatpush1.msra.mxu0 %v2318
    %2419 = vmatprep.subr.mxu0 0.0
    %2420 = vmatpush1.msra.mxu0 %v2315
    %2421 = vmatprep.subr.mxu0 0.0
    %2422 = vmatpush1.msra.mxu0 %v2312
    %2423 = vmatprep.subr.mxu0 0.0
    %2424 = vmatpush1.msra.mxu0 %v2309
    %2425 = vmatprep.subr.mxu0 0.0
    %2426 = vmatpush1.msra.mxu0 %v2306
    %2427 = vmatprep.subr.mxu0 0.0
    %2428 = vmatpush1.msra.mxu0 %v2303
    %2429 = vmatprep.subr.mxu0 0.0
    %2430 = vmatpush1.msra.mxu0 %v2300
    %2431 = vmatprep.subr.mxu0 0.0
    %2432 = vmatpush1.msra.mxu0 %v2297
    %2433 = vmatprep.subr.mxu0 0.0
    %2434 = vmatpush1.msra.mxu0 %v2294
    %2435 = vmatprep.subr.mxu0 0.0
    %2436 = vmatpush1.msra.mxu0 %v2291
    %2437 = vmatprep.subr.mxu0 0.0
    %2438 = vmatpush1.msra.mxu0 %v2288
    %2439 = vmatprep.subr.mxu0 0.0
    %2440 = vmatpush1.msra.mxu0 %v2285
    %2441 = vmatprep.subr.mxu0 0.0
    %2442 = vmatpush1.msra.mxu0 %v2282
    %2443 = vmatprep.subr.mxu0 0.0
    %2444 = vmatpush1.msra.mxu0 %v2279
    %2445 = vmatprep.subr.mxu0 0.0
    %2446 = vmatpush2.msra.mxu0 0.0
    %2447 = vmatprep.subr.mxu0 0.0
    %2448 = vmatpush2.msra.mxu0 0.0
    %2449 = vmatprep.subr.mxu0 0.0
    %2450 = vmatpush2.msra.mxu0 0.0
    %2451 = vmatprep.subr.mxu0 0.0
    %2452 = vmatpush2.msra.mxu0 0.0
    %2453 = vmatprep.subr.mxu0 0.0
    %2454 = vmatpush2.msra.mxu0 0.0
    %2455 = vmatprep.subr.mxu0 0.0
    %2456 = vmatpush2.msra.mxu0 0.0
    %2457 = vmatprep.subr.mxu0 0.0
    %2458 = vmatpush2.msra.mxu0 0.0
    %2459 = vmatprep.subr.mxu0 0.0
    %2460 = vmatpush2.msra.mxu0 0.0
    %2461 = vmatprep.subr.mxu0 0.0
    %2462 = vmatpush2.msra.mxu0 0.0
    %2463 = vmatprep.subr.mxu0 0.0
    %2464 = vmatpush2.msra.mxu0 0.0
    %2465 = vmatprep.subr.mxu0 0.0
    %2466 = vmatpush2.msra.mxu0 0.0
    %2467 = vmatprep.subr.mxu0 0.0
    %2468 = vmatpush2.msra.mxu0 0.0
    %2469 = vmatprep.subr.mxu0 0.0
    %2470 = vmatpush2.msra.mxu0 0.0
    %2471 = vmatprep.subr.mxu0 0.0
    %2472 = vmatpush2.msra.mxu0 0.0
    %2473 = vmatprep.subr.mxu0 0.0
    %2474 = vmatpush2.msra.mxu0 0.0
    %2475 = vmatprep.subr.mxu0 0.0
    %2476 = vmatpush2.msra.mxu0 0.0
    %2477 = vmatprep.mubr.f32.mxu0 0.0
    %2478 = vmatmul.mubr.f32.gmra.mxu0 %v2269
    %v2479 = vpop.f32.mrf.mxu0
    %v2480 = vadd.f32 %v2338, %v2479
    %v2481 = vpop.f32.mrf.mxu0
    %2482 = vdwg.mxu0
    %v2483 = vadd.f32 %v2274, %v2409
    %v2484 = vxor.u32 %v2483, 2147483648
    %v2485 = vmul.f32 %v2484, 1.442695
    %v2486 = vpow.pop %v2485
    %v2487 = vadd.f32 %v2486, 1.0
    %v2488 = vrcp.pop %v2487
    %v2489 = vmul.f32 1.0, %v2488
    %v2490 = vadd.f32 %v2275, %v2411
    %v2491 = vxor.u32 %v2490, 2147483648
    %v2492 = vmul.f32 %v2491, 1.442695
    %v2493 = vpow.pop %v2492
    %v2494 = vadd.f32 %v2493, 1.0
    %v2495 = vrcp.pop %v2494
    %v2496 = vmul.f32 1.0, %v2495
    %v2497 = vmul.f32 %v2489, %v2480
    %v2498 = vadd.f32 %v2276, %v2497
    %v2499 = vtanh.pop %v2498
    %v2500 = vsub.f32 1.0, %v2496
    %v2501 = vmul.f32 %v2500, %v2499
    %v2502 = vmul.f32 %v2496, %v2269
    %v2503 = vadd.f32 %v2501, %v2502
    %2504 = vst [vmem:[#allocation3] sm:$0xff] %v2503
    %s2505 = scalar_lea.vmem [#allocation4], 56
    %2506 = vst [vmem:[%s2505] sm:$0xff] %v2503
    %v2507 = vld [vmem:[#allocation4] sm:$0xff]
    %v2508 = vld [vmem:[#allocation4 + $0x8] sm:$0xff]
    %v2509 = vld [vmem:[#allocation4 + $0x10] sm:$0xff]
    %v2510 = vld [vmem:[#allocation4 + $0x18] sm:$0xff]
    %v2511 = vld [vmem:[#allocation4 + $0x20] sm:$0xff]
    %v2512 = vld [vmem:[#allocation4 + $0x28] sm:$0xff]
    %v2513 = vld [vmem:[#allocation4 + $0x30] sm:$0xff]
    %v2514 = vld [vmem:[#allocation4 + $0x38] sm:$0xff]
    %v2515 = vld [vmem:[#allocation14] sm:$0xff]
    %v2516 = vld [vmem:[#allocation14 + $0x8] sm:$0xff]
    %v2517 = vld [vmem:[#allocation14 + $0x10] sm:$0xff]
    %v2518 = vld [vmem:[#allocation14 + $0x18] sm:$0xff]
    %v2519 = vld [vmem:[#allocation14 + $0x20] sm:$0xff]
    %v2520 = vld [vmem:[#allocation14 + $0x28] sm:$0xff]
    %v2521 = vld [vmem:[#allocation14 + $0x30] sm:$0xff]
    %v2522 = vld [vmem:[#allocation14 + $0x38] sm:$0xff]
    %v2523 = vld [vmem:[#allocation14 + $0x40] sm:$0xff]
    %v2524 = vld [vmem:[#allocation14 + $0x48] sm:$0xff]
    %v2525 = vld [vmem:[#allocation14 + $0x50] sm:$0xff]
    %v2526 = vld [vmem:[#allocation14 + $0x58] sm:$0xff]
    %v2527 = vld [vmem:[#allocation14 + $0x60] sm:$0xff]
    %v2528 = vld [vmem:[#allocation14 + $0x68] sm:$0xff]
    %v2529 = vld [vmem:[#allocation14 + $0x70] sm:$0xff]
    %v2530 = vld [vmem:[#allocation14 + $0x78] sm:$0xff]
    %v2531 = vld [vmem:[%s8] sm:$0x1]
    %v2533 = vlaneseq
    %v2534 = vshrl.u32 %v2533, 7
    %v2535 = vsub.s32 0, %v2534
    %v2536 = vrot.slane %v2531, %v2535
    %2538 = vmatprep.subr.mxu0 0.0
    %2539 = vmatpush1.msra.mxu0 %v2530
    %2540 = vmatprep.subr.mxu0 0.0
    %2541 = vmatpush1.msra.mxu0 %v2529
    %2542 = vmatprep.subr.mxu0 0.0
    %2543 = vmatpush1.msra.mxu0 %v2528
    %2544 = vmatprep.subr.mxu0 0.0
    %2545 = vmatpush1.msra.mxu0 %v2527
    %2546 = vmatprep.subr.mxu0 0.0
    %2547 = vmatpush1.msra.mxu0 %v2526
    %2548 = vmatprep.subr.mxu0 0.0
    %2549 = vmatpush1.msra.mxu0 %v2525
    %2550 = vmatprep.subr.mxu0 0.0
    %2551 = vmatpush1.msra.mxu0 %v2524
    %2552 = vmatprep.subr.mxu0 0.0
    %2553 = vmatpush1.msra.mxu0 %v2523
    %2554 = vmatprep.subr.mxu0 0.0
    %2555 = vmatpush1.msra.mxu0 %v2522
    %2556 = vmatprep.subr.mxu0 0.0
    %2557 = vmatpush1.msra.mxu0 %v2521
    %2558 = vmatprep.subr.mxu0 0.0
    %2559 = vmatpush1.msra.mxu0 %v2520
    %2560 = vmatprep.subr.mxu0 0.0
    %2561 = vmatpush1.msra.mxu0 %v2519
    %2562 = vmatprep.subr.mxu0 0.0
    %2563 = vmatpush1.msra.mxu0 %v2518
    %2564 = vmatprep.subr.mxu0 0.0
    %2565 = vmatpush1.msra.mxu0 %v2517
    %2566 = vmatprep.subr.mxu0 0.0
    %2567 = vmatpush1.msra.mxu0 %v2516
    %2568 = vmatprep.subr.mxu0 0.0
    %2569 = vmatpush1.msra.mxu0 %v2515
    %2570 = vmatprep.subr.mxu0 0.0
    %2571 = vmatpush2.msra.mxu0 0.0
    %2572 = vmatprep.subr.mxu0 0.0
    %2573 = vmatpush2.msra.mxu0 0.0
    %2574 = vmatprep.subr.mxu0 0.0
    %2575 = vmatpush2.msra.mxu0 0.0
    %2576 = vmatprep.subr.mxu0 0.0
    %2577 = vmatpush2.msra.mxu0 0.0
    %2578 = vmatprep.subr.mxu0 0.0
    %2579 = vmatpush2.msra.mxu0 0.0
    %2580 = vmatprep.subr.mxu0 0.0
    %2581 = vmatpush2.msra.mxu0 0.0
    %2582 = vmatprep.subr.mxu0 0.0
    %2583 = vmatpush2.msra.mxu0 0.0
    %2584 = vmatprep.subr.mxu0 0.0
    %2585 = vmatpush2.msra.mxu0 0.0
    %2586 = vmatprep.subr.mxu0 0.0
    %2587 = vmatpush2.msra.mxu0 0.0
    %2588 = vmatprep.subr.mxu0 0.0
    %2589 = vmatpush2.msra.mxu0 0.0
    %2590 = vmatprep.subr.mxu0 0.0
    %2591 = vmatpush2.msra.mxu0 0.0
    %2592 = vmatprep.subr.mxu0 0.0
    %2593 = vmatpush2.msra.mxu0 0.0
    %2594 = vmatprep.subr.mxu0 0.0
    %2595 = vmatpush2.msra.mxu0 0.0
    %2596 = vmatprep.subr.mxu0 0.0
    %2597 = vmatpush2.msra.mxu0 0.0
    %2598 = vmatprep.subr.mxu0 0.0
    %2599 = vmatpush2.msra.mxu0 0.0
    %2600 = vmatprep.subr.mxu0 0.0
    %2601 = vmatpush2.msra.mxu0 0.0
    %2602 = vmatprep.mubr.f32.mxu0 0.0
    %2603 = vmatmul.mubr.f32.gmra.mxu0 %v2507
    %v2604 = vpop.f32.mrf.mxu0
    %v2605 = vadd.f32 %v2536, %v2604
    %v2606 = vpop.f32.mrf.mxu0
    %2607 = vmatprep.mubr.f32.mxu0 0.0
    %2608 = vmatmul.mubr.f32.gmra.mxu0 %v2508
    %v2609 = vpop.f32.mrf.mxu0
    %v2610 = vadd.f32 %v2536, %v2609
    %v2611 = vpop.f32.mrf.mxu0
    %2612 = vmatprep.mubr.f32.mxu0 0.0
    %2613 = vmatmul.mubr.f32.gmra.mxu0 %v2509
    %v2614 = vpop.f32.mrf.mxu0
    %v2615 = vadd.f32 %v2536, %v2614
    %v2616 = vpop.f32.mrf.mxu0
    %2617 = vmatprep.mubr.f32.mxu0 0.0
    %2618 = vmatmul.mubr.f32.gmra.mxu0 %v2510
    %v2619 = vpop.f32.mrf.mxu0
    %v2620 = vadd.f32 %v2536, %v2619
    %v2621 = vpop.f32.mrf.mxu0
    %2622 = vmatprep.mubr.f32.mxu0 0.0
    %2623 = vmatmul.mubr.f32.gmra.mxu0 %v2511
    %v2624 = vpop.f32.mrf.mxu0
    %v2625 = vadd.f32 %v2536, %v2624
    %v2626 = vpop.f32.mrf.mxu0
    %2627 = vmatprep.mubr.f32.mxu0 0.0
    %2628 = vmatmul.mubr.f32.gmra.mxu0 %v2512
    %v2629 = vpop.f32.mrf.mxu0
    %v2630 = vadd.f32 %v2536, %v2629
    %v2631 = vpop.f32.mrf.mxu0
    %2632 = vmatprep.mubr.f32.mxu0 0.0
    %2633 = vmatmul.mubr.f32.gmra.mxu0 %v2513
    %v2634 = vpop.f32.mrf.mxu0
    %v2635 = vadd.f32 %v2536, %v2634
    %v2636 = vpop.f32.mrf.mxu0
    %2637 = vmatprep.mubr.f32.mxu0 0.0
    %2638 = vmatmul.mubr.f32.gmra.mxu0 %v2514
    %v2639 = vpop.f32.mrf.mxu0
    %v2640 = vadd.f32 %v2536, %v2639
    %v2641 = vpop.f32.mrf.mxu0
    %2642 = vdwg.mxu0
    %2643 = vst [vmem:[#allocation16] sm:$0xff] %v2605
    %2644 = vst [vmem:[#allocation16 + $0x8] sm:$0xff] %v2610
    %2645 = vst [vmem:[#allocation16 + $0x10] sm:$0xff] %v2615
    %2646 = vst [vmem:[#allocation16 + $0x18] sm:$0xff] %v2620
    %2647 = vst [vmem:[#allocation16 + $0x20] sm:$0xff] %v2625
    %2648 = vst [vmem:[#allocation16 + $0x28] sm:$0xff] %v2630
    %2649 = vst [vmem:[#allocation16 + $0x30] sm:$0xff] %v2635
    %2650 = vst [vmem:[#allocation16 + $0x38] sm:$0xff] %v2640
    %v2651 = vld [vmem:[#allocation3] sm:$0xff]
    %2652 = vst [vmem:[#allocation17] sm:$0xff] %v2651
    // Predicated region
    $region62: #{tpu_custom_call.1} parent=1 // pred_check
      _
    $region63: #{tpu_custom_call.1} parent=1 // pred_check_branch
      %2654 = sbr.rel (0) target = $region65
    $region64: #{tpu_custom_call.1} parent=1 // pred_region
      %s2656 = ssub.s32 1024, 1024
      %2657 = vsyncadd [#allocation7], %s2656
      %s2658 = sshll.u32 [#allocation16], 4
      %s2659 = int_to_ptr.vmem [resolvable:$true] %s2658
      %2664 = dma.vmem_to_hbm [thread:$0]  %s2659, 1024, %s9, [#allocation7], 128, 128, 8
    $region65: #{tpu_custom_call.1} parent=1 // pred_fallthru
      _
    // Predicated region
    $region66: #{tpu_custom_call.1} parent=1 // pred_check
      _
    $region67: #{tpu_custom_call.1} parent=1 // pred_check_branch
      %2666 = sbr.rel (0) target = $region69
    $region68: #{tpu_custom_call.1} parent=1 // pred_region
      %s2668 = ssub.s32 128, 128
      %2669 = vsyncadd [#allocation18], %s2668
      %s2671 = sshll.u32 [#allocation17], 4
      %s2672 = int_to_ptr.vmem [resolvable:$true] %s2671
      %2674 = dma.vmem_to_hbm [thread:$0]  %s2672, 128, %s10, [#allocation18]
    $region69: #{tpu_custom_call.1} parent=1 // pred_fallthru
      _
    // Predicated region
    $region70: #{tpu_custom_call.1} parent=1 // pred_check
      _
    $region71: #{tpu_custom_call.1} parent=1 // pred_check_branch
      %2676 = sbr.rel (0) target = $region73
    $region72: #{tpu_custom_call.1} parent=1 // pred_region
      %2677 = dma.done [#allocation7], 1024
    $region73: #{tpu_custom_call.1} parent=1 // pred_fallthru
      _
    // Predicated region
    $region74: #{tpu_custom_call.1} parent=1 // pred_check
      _
    $region75: #{tpu_custom_call.1} parent=1 // pred_check_branch
      %2679 = sbr.rel (0) target = $region77
    $region76: #{tpu_custom_call.1} parent=1 // pred_region
      %2680 = dma.done [#allocation18], 128
    $region77: #{tpu_custom_call.1} parent=1 // pred_fallthru
      _
    %2681 = vsyncpa [#allocation6], 1
    %2682 = vsyncpa [#allocation9], 1
    %2683 = vsyncpa [#allocation12], 1
    %2684 = vsyncpa [#allocation15], 1
    %2685 = vsyncpa [#allocation7], 1
    %2686 = vsyncpa [#allocation18], 1

</llo_original>
